<compile_context>
chip_gen: v5e
topology: v5e:2x2
jax: 0.10.0
libtpu: 0.0.40
codegen_flags: <defaults>
</compile_context>

<pallas_src>
import functools
import math

import numpy as np
import jax
import jax.numpy as jnp
from jax.experimental import pallas as pl
from jax.experimental.pallas import tpu as pltpu


def _ru(x, m):
    return ((x + m - 1) // m) * m


def _pick_tm(M):
    if M >= 2048:
        return 512
    if M >= 512:
        return 256
    return _ru(M, 16)


# ---------------------------------------------------------------------------
# Pallas kernel 1: one lane-dense matmul + bias + activation.
#   x: (TM, K) bf16, w: (K, Cp) bf16, b: (1, Cp) f32  ->  o: (TM, Cp) f32
# ---------------------------------------------------------------------------
def _mm_bias_act_kernel(x_ref, w_ref, b_ref, o_ref, *, act):
    y = jnp.dot(x_ref[...], w_ref[...], preferred_element_type=jnp.float32)
    y = y + b_ref[...]
    if act == "relu":
        y = jnp.maximum(y, 0.0)
    elif act == "lrelu":
        y = jnp.where(y > 0, y, 0.1 * y)
    o_ref[...] = y.astype(o_ref.dtype)


def matmul_bias_act(x2d, w2d, bias, act):
    """(M, K) @ (K, Cout) + bias with fused activation. Returns (M, Cout) f32."""
    M, K = x2d.shape
    Cout = w2d.shape[1]

    Cp = _ru(max(Cout, 128), 128)           # lane-dense output -> unmasked vst
    TM = _pick_tm(M)                        # 16-aligned for bf16 sublanes
    Mp = _ru(M, TM)

    xb = jnp.pad(x2d.astype(jnp.bfloat16), ((0, Mp - M), (0, 0)))
    wb = jnp.pad(w2d.astype(jnp.bfloat16), ((0, 0), (0, Cp - Cout)))
    bb = jnp.pad(bias.astype(jnp.float32), (0, Cp - Cout)).reshape(1, Cp)

    out = pl.pallas_call(
        functools.partial(_mm_bias_act_kernel, act=act),
        out_shape=jax.ShapeDtypeStruct((Mp, Cp), jnp.float32),
        grid_spec=pltpu.PrefetchScalarGridSpec(
            num_scalar_prefetch=0,
            grid=(Mp // TM,),
            in_specs=[
                pl.BlockSpec((TM, K), lambda i: (i, 0)),
                pl.BlockSpec((K, Cp), lambda i: (0, 0)),   # whole weight, fetched once
                pl.BlockSpec((1, Cp), lambda i: (0, 0)),
            ],
            out_specs=pl.BlockSpec((TM, Cp), lambda i: (i, 0)),
        ),
        compiler_params=pltpu.CompilerParams(
            dimension_semantics=("parallel",),   # megacore: split M over TCs
        ),
    )(xb, wb, bb)
    return out[:M, :Cout]


# ---------------------------------------------------------------------------
# Pallas kernel 2: two chained 1x1 matmuls (ConvLinear1 + LeakyReLU, then the
# four fused stage-2 stems + ReLU) — the intermediate stays in VMEM/vregs.
#   x: (TM, Cin) bf16, w1: (Cin, C1p) bf16, b1: (1, C1p) f32,
#   w2: (C1p, C2p) bf16, b2: (1, C2p) f32  ->  o: (TM, C2p) f32
# ---------------------------------------------------------------------------
def _mm2_lrelu_relu_kernel(x_ref, w1_ref, b1_ref, w2_ref, b2_ref, o_ref):
    y = jnp.dot(x_ref[...], w1_ref[...], preferred_element_type=jnp.float32)
    y = y + b1_ref[...]
    y = jnp.where(y > 0, y, 0.1 * y)                       # LeakyReLU(0.1)
    z = jnp.dot(y.astype(jnp.bfloat16), w2_ref[...],
                preferred_element_type=jnp.float32)
    z = jnp.maximum(z + b2_ref[...], 0.0)                  # ReLU
    o_ref[...] = z.astype(o_ref.dtype)


# ---------------------------------------------------------------------------
# Conv2d wrapper (NHWC). im2col folds all kernel taps into the K dimension so
# the whole conv is a single matmul kernel call.
# ---------------------------------------------------------------------------
def conv2d_nhwc(x, weight, bias, *, stride=(1, 1), padding=(0, 0),
                dilation=(1, 1), act="none"):
    """x: (N, H, W, Cin); weight: (Cout, Cin, kh, kw) (PyTorch layout); bias: (Cout,)."""
    N, H, W, Cin = x.shape
    Cout, _, kh, kw = weight.shape
    sh, sw = stride
    ph, pw = padding
    dh, dw = dilation

    Hout = (H + 2 * ph - dh * (kh - 1) - 1) // sh + 1
    Wout = (W + 2 * pw - dw * (kw - 1) - 1) // sw + 1

    x = x.astype(jnp.bfloat16)

    if kh == 1 and kw == 1 and ph == 0 and pw == 0:
        cols = x[:, ::sh, ::sw, :].reshape(-1, Cin)
    else:
        xp = jnp.pad(x, ((0, 0), (ph, ph), (pw, pw), (0, 0)))
        patches = []
        for ky in range(kh):
            for kx in range(kw):
                patches.append(xp[:, ky * dh: ky * dh + sh * Hout: sh,
                                     kx * dw: kx * dw + sw * Wout: sw, :])
        # tap-major, then Cin -> matches weight flattening below
        cols = jnp.concatenate(patches, axis=-1).reshape(-1, kh * kw * Cin)

    # (Cout, Cin, kh, kw) -> (kh, kw, Cin, Cout) -> (kh*kw*Cin, Cout)
    w2d = jnp.transpose(weight, (2, 3, 1, 0)).reshape(kh * kw * Cin, Cout)

    out = matmul_bias_act(cols, w2d, bias, act)       # (M, Cout) f32
    return out.reshape(N, Hout, Wout, Cout)


def fused_1x1_stems(x, stem_params, stride):
    """All four branches' first 1x1 convs (same input, same stride) in ONE matmul.

    Returns the list of per-branch ReLU'd outputs (NHWC)."""
    xs = x[:, ::stride, ::stride, :]
    N, Hs, Ws, Cin = xs.shape

    ws = [jnp.transpose(p["w"][:, :, 0, 0], (1, 0)) for p in stem_params]  # (Cin, Cb)
    w_all = jnp.concatenate(ws, axis=1)
    b_all = jnp.concatenate([p["b"] for p in stem_params])
    sizes = [int(p["b"].shape[0]) for p in stem_params]

    out = matmul_bias_act(xs.reshape(-1, Cin), w_all, b_all, "relu")
    out = out.reshape(N, Hs, Ws, sum(sizes))

    splits = [int(v) for v in np.cumsum(sizes)[:-1]]
    return jnp.split(out, splits, axis=-1)


def fused_linear1_stems(x, lin_p, stem_params, stride):
    """lrelu(ConvLinear1(x)) followed by the four stride-S 1x1 stems (+ReLU),
    all in one pallas_call (two chained matmuls per row-tile).

    Valid because every op is 1x1: the stride subsample commutes with
    ConvLinear1 and the unsampled pixels are never consumed downstream."""
    xs = x[:, ::stride, ::stride, :]
    N, Hs, Ws, Cin = xs.shape
    M = N * Hs * Ws

    C1 = int(lin_p["b"].shape[0])                                   # = in_channels
    w1 = jnp.transpose(lin_p["w"][:, :, 0, 0], (1, 0))              # (Cin, C1)
    b1 = lin_p["b"]

    ws = [jnp.transpose(p["w"][:, :, 0, 0], (1, 0)) for p in stem_params]  # (C1, Cb)
    w2 = jnp.concatenate(ws, axis=1)
    b2 = jnp.concatenate([p["b"] for p in stem_params])
    sizes = [int(p["b"].shape[0]) for p in stem_params]
    C2 = sum(sizes)

    C1p = _ru(max(C1, 128), 128)
    C2p = _ru(max(C2, 128), 128)
    TM = _pick_tm(M)
    Mp = _ru(M, TM)

    # Padded columns of the intermediate are exactly 0 (0 matmul + 0 bias,
    # lrelu(0)=0) and the padded rows of w2 are 0, so padding is value-safe.
    xb = jnp.pad(xs.reshape(M, Cin).astype(jnp.bfloat16), ((0, Mp - M), (0, 0)))
    w1b = jnp.pad(w1.astype(jnp.bfloat16), ((0, 0), (0, C1p - C1)))
    b1b = jnp.pad(b1.astype(jnp.float32), (0, C1p - C1)).reshape(1, C1p)
    w2b = jnp.pad(w2.astype(jnp.bfloat16), ((0, C1p - C1), (0, C2p - C2)))
    b2b = jnp.pad(b2.astype(jnp.float32), (0, C2p - C2)).reshape(1, C2p)

    out = pl.pallas_call(
        _mm2_lrelu_relu_kernel,
        out_shape=jax.ShapeDtypeStruct((Mp, C2p), jnp.float32),
        grid_spec=pltpu.PrefetchScalarGridSpec(
            num_scalar_prefetch=0,
            grid=(Mp // TM,),
            in_specs=[
                pl.BlockSpec((TM, Cin), lambda i: (i, 0)),
                pl.BlockSpec((Cin, C1p), lambda i: (0, 0)),
                pl.BlockSpec((1, C1p), lambda i: (0, 0)),
                pl.BlockSpec((C1p, C2p), lambda i: (0, 0)),
                pl.BlockSpec((1, C2p), lambda i: (0, 0)),
            ],
            out_specs=pl.BlockSpec((TM, C2p), lambda i: (i, 0)),
        ),
        compiler_params=pltpu.CompilerParams(
            dimension_semantics=("parallel",),
        ),
    )(xb, w1b, b1b, w2b, b2b)

    out = out[:M, :C2].reshape(N, Hs, Ws, C2)
    splits = [int(v) for v in np.cumsum(sizes)[:-1]]
    return jnp.split(out, splits, axis=-1)


# ---------------------------------------------------------------------------
# Parameter initialization (deterministic, PyTorch-like fan-in uniform).
# ---------------------------------------------------------------------------
def _init_conv(key, cout, cin, kh, kw):
    kw_, kb_ = jax.random.split(key)
    bound = 1.0 / math.sqrt(cin * kh * kw)
    w = jax.random.uniform(kw_, (cout, cin, kh, kw), jnp.float32, -bound, bound)
    b = jax.random.uniform(kb_, (cout,), jnp.float32, -bound, bound)
    return {"w": w, "b": b}


def _branch_configs(cin, cout, stride_):
    """Per-branch conv configs for one stage (cin -> cout)."""
    c4 = cout // 4
    c8 = cout // 8
    c316 = cout * 3 // 16
    rest = cout - 3 * c4
    s = (stride_, stride_)
    one = (1, 1)
    return {
        "branch1": [
            dict(cin=cin, cout=c4, k=(1, 1), s=s, p=(0, 0), d=one, act="relu"),
            dict(cin=c4, cout=rest, k=(3, 3), s=one, p=(1, 1), d=one, act="none"),
        ],
        "branch2": [
            dict(cin=cin, cout=c4, k=(1, 1), s=s, p=(0, 0), d=one, act="relu"),
            dict(cin=c4, cout=c4, k=(3, 1), s=one, p=(1, 0), d=one, act="relu"),
            dict(cin=c4, cout=c4, k=(3, 3), s=one, p=(3, 3), d=(3, 3), act="none"),
        ],
        "branch3": [
            dict(cin=cin, cout=c4, k=(1, 1), s=s, p=(0, 0), d=one, act="relu"),
            dict(cin=c4, cout=c4, k=(1, 3), s=one, p=(0, 1), d=one, act="relu"),
            dict(cin=c4, cout=c4, k=(3, 3), s=one, p=(3, 3), d=(3, 3), act="none"),
        ],
        "branch4": [
            dict(cin=cin, cout=c8, k=(1, 1), s=s, p=(0, 0), d=one, act="relu"),
            dict(cin=c8, cout=c316, k=(1, 3), s=one, p=(0, 1), d=one, act="relu"),
            dict(cin=c316, cout=c4, k=(3, 1), s=one, p=(1, 0), d=one, act="relu"),
            dict(cin=c4, cout=c4, k=(3, 3), s=one, p=(5, 5), d=(5, 5), act="none"),
        ],
    }


def init_unet_hdc(key, in_channels, out_channels, stride_=1):
    params = {}
    cfg1 = _branch_configs(in_channels, in_channels, 1)
    cfg2 = _branch_configs(in_channels, out_channels, stride_)

    keys = jax.random.split(key, 64)
    ki = iter(range(64))

    for stage_name, cfg in (("stage1", cfg1), ("stage2", cfg2)):
        params[stage_name] = {}
        for bname, convs in cfg.items():
            plist = []
            for c in convs:
                plist.append(_init_conv(keys[next(ki)], c["cout"], c["cin"],
                                        c["k"][0], c["k"][1]))
            params[stage_name][bname] = plist

    params["ConvLinear1"] = _init_conv(keys[next(ki)], in_channels, in_channels, 1, 1)
    params["ConvLinear2"] = _init_conv(keys[next(ki)], out_channels, out_channels, 1, 1)
    return params


# ---------------------------------------------------------------------------
# Forward pass (NHWC internally, NCHW at the interface).
# ---------------------------------------------------------------------------
_BNAMES = ("branch1", "branch2", "branch3", "branch4")


def _run_branch_chains(stem_outs, stage_params, cfg):
    """Run the remaining convs of every branch (stem output already computed)."""
    outs = []
    for bo, bname in zip(stem_outs, _BNAMES):
        out = bo
        for p, c in zip(stage_params[bname][1:], cfg[bname][1:]):
            out = conv2d_nhwc(out, p["w"], p["b"], stride=c["s"],
                              padding=c["p"], dilation=c["d"], act=c["act"])
        outs.append(out)
    return jnp.concatenate(outs, axis=-1)


def unet_hdc_forward(x_nchw, params, in_channels, out_channels, stride_=1):
    cfg1 = _branch_configs(in_channels, in_channels, 1)
    cfg2 = _branch_configs(in_channels, out_channels, stride_)

    x = jnp.transpose(x_nchw, (0, 2, 3, 1))              # NCHW -> NHWC (once)

    # _forward1: four fused stems (one matmul) + per-branch chain convs + concat
    stems1 = fused_1x1_stems(x, [params["stage1"][b][0] for b in _BNAMES], 1)
    y = _run_branch_chains(stems1, params["stage1"], cfg1)

    # lrelu(ConvLinear1(y)) fused with the four stage-2 stems (one pallas_call)
    stems2 = fused_linear1_stems(y, params["ConvLinear1"],
                                 [params["stage2"][b][0] for b in _BNAMES],
                                 stride_)
    z = _run_branch_chains(stems2, params["stage2"], cfg2)

    # ConvLinear2 + LeakyReLU(0.1)
    p = params["ConvLinear2"]
    z = conv2d_nhwc(z, p["w"], p["b"], act="lrelu")

    return jnp.transpose(z, (0, 3, 1, 2))                 # NHWC -> NCHW (once)


# ---------------------------------------------------------------------------
# Main
# ---------------------------------------------------------------------------
if __name__ == "__main__":
    IN_CH, OUT_CH, STRIDE = 16, 16, 1
    N, H, W = 2, 16, 16

    root = jax.random.PRNGKey(0)
    k_param, k_x = jax.random.split(root)

    params = init_unet_hdc(k_param, IN_CH, OUT_CH, STRIDE)
    x = jax.random.normal(k_x, (N, IN_CH, H, W), dtype=jnp.float32)

    fwd = jax.jit(functools.partial(unet_hdc_forward,
                                    in_channels=IN_CH,
                                    out_channels=OUT_CH,
                                    stride_=STRIDE))
    out = fwd(x, params)
    jax.block_until_ready(out)

    assert out.shape == (N, OUT_CH, H, W), out.shape
    assert jnp.all(jnp.isfinite(out))
    print("KERNEL_OK")
</pallas_src>

<mosaic_0001>
module attributes {stable_mosaic.version = 11 : i64} {
  func.func @_mm_bias_act_kernel(%arg0: i32, %arg1: memref<256x16xbf16, #tpu.memory_space<vmem>>, %arg2: memref<16x128xbf16, #tpu.memory_space<vmem>>, %arg3: memref<1x128xf32, #tpu.memory_space<vmem>>, %arg4: memref<256x128xf32, #tpu.memory_space<vmem>>) attributes {dimension_semantics = [#tpu.dimension_semantics<parallel>], iteration_bounds = array<i64: 2>, scalar_prefetch = 0 : i64, scratch_operands = 0 : i64, tpu.core_type = #tpu.core_type<tc>, window_params = [{transform_indices = @transform_0, window_bounds = array<i64: 256, 16>}, {pipeline_mode = #tpu.pipeline_mode<synchronous>, transform_indices = @transform_1, window_bounds = array<i64: 16, 128>}, {pipeline_mode = #tpu.pipeline_mode<synchronous>, transform_indices = @transform_2, window_bounds = array<i64: 1, 128>}, {transform_indices = @transform_3, window_bounds = array<i64: 256, 128>}]} {
    %c0 = arith.constant 0 : index
    %c0_0 = arith.constant 0 : index
    %0 = vector.load %arg1[%c0, %c0_0] : memref<256x16xbf16, #tpu.memory_space<vmem>>, vector<256x16xbf16>
    %c0_1 = arith.constant 0 : index
    %c0_2 = arith.constant 0 : index
    %1 = vector.load %arg2[%c0_1, %c0_2] : memref<16x128xbf16, #tpu.memory_space<vmem>>, vector<16x128xbf16>
    %cst = arith.constant dense<0.000000e+00> : vector<256x128xf32>
    %2 = tpu.matmul %0, %1, %cst {dimension_numbers = #tpu.dot_dimension_numbers<[1], [0], [0], [1], [0, 0, 1, 1], [], []>} : vector<256x16xbf16>, vector<16x128xbf16>, vector<256x128xf32> -> vector<256x128xf32>
    %c0_3 = arith.constant 0 : index
    %c0_4 = arith.constant 0 : index
    %3 = vector.load %arg3[%c0_3, %c0_4] : memref<1x128xf32, #tpu.memory_space<vmem>>, vector<1x128xf32>
    %4 = vector.broadcast %3 : vector<1x128xf32> to vector<256x128xf32>
    %5 = arith.addf %2, %4 : vector<256x128xf32>
    %cst_5 = arith.constant 0.000000e+00 : f32
    %6 = vector.broadcast %cst_5 : f32 to vector<256x128xf32>
    %7 = arith.maximumf %5, %6 : vector<256x128xf32>
    %c0_6 = arith.constant 0 : index
    %c0_7 = arith.constant 0 : index
    %8 = vector.load %arg4[%c0_6, %c0_7] : memref<256x128xf32, #tpu.memory_space<vmem>>, vector<256x128xf32>
    tpu.vector_store %arg4[%c0_6, %c0_7], %7 {strides = array<i32>} : memref<256x128xf32, #tpu.memory_space<vmem>>, vector<256x128xf32>,
    return
  }
  func.func @transform_0(%arg0: i32) -> (i32, i32) {
    %c0_i32 = arith.constant 0 : i32
    %c0_i32_0 = arith.constant 0 : i32
    return %arg0, %c0_i32 : i32, i32
  }
  func.func @transform_1(%arg0: i32) -> (i32, i32) {
    %c0_i32 = arith.constant 0 : i32
    %c0_i32_0 = arith.constant 0 : i32
    %c0_i32_1 = arith.constant 0 : i32
    return %c0_i32, %c0_i32_0 : i32, i32
  }
  func.func @transform_2(%arg0: i32) -> (i32, i32) {
    %c0_i32 = arith.constant 0 : i32
    %c0_i32_0 = arith.constant 0 : i32
    %c0_i32_1 = arith.constant 0 : i32
    return %c0_i32, %c0_i32_0 : i32, i32
  }
  func.func @transform_3(%arg0: i32) -> (i32, i32) {
    %c0_i32 = arith.constant 0 : i32
    %c0_i32_0 = arith.constant 0 : i32
    return %arg0, %c0_i32 : i32, i32
  }
}

module attributes {stable_mosaic.version = 11 : i64} {
  func.func @_mm_bias_act_kernel(%arg0: i32, %arg1: memref<256x6xbf16, #tpu.memory_space<vmem>>, %arg2: memref<6x128xbf16, #tpu.memory_space<vmem>>, %arg3: memref<1x128xf32, #tpu.memory_space<vmem>>, %arg4: memref<256x128xf32, #tpu.memory_space<vmem>>) attributes {dimension_semantics = [#tpu.dimension_semantics<parallel>], iteration_bounds = array<i64: 2>, scalar_prefetch = 0 : i64, scratch_operands = 0 : i64, tpu.core_type = #tpu.core_type<tc>, window_params = [{transform_indices = @transform_0, window_bounds = array<i64: 256, 6>}, {pipeline_mode = #tpu.pipeline_mode<synchronous>, transform_indices = @transform_1, window_bounds = array<i64: 6, 128>}, {pipeline_mode = #tpu.pipeline_mode<synchronous>, transform_indices = @transform_2, window_bounds = array<i64: 1, 128>}, {transform_indices = @transform_3, window_bounds = array<i64: 256, 128>}]} {
    %c0 = arith.constant 0 : index
    %c0_0 = arith.constant 0 : index
    %0 = vector.load %arg1[%c0, %c0_0] : memref<256x6xbf16, #tpu.memory_space<vmem>>, vector<256x6xbf16>
    %c0_1 = arith.constant 0 : index
    %c0_2 = arith.constant 0 : index
    %1 = vector.load %arg2[%c0_1, %c0_2] : memref<6x128xbf16, #tpu.memory_space<vmem>>, vector<6x128xbf16>
    %cst = arith.constant dense<0.000000e+00> : vector<256x128xf32>
    %2 = tpu.matmul %0, %1, %cst {dimension_numbers = #tpu.dot_dimension_numbers<[1], [0], [0], [1], [0, 0, 1, 1], [], []>} : vector<256x6xbf16>, vector<6x128xbf16>, vector<256x128xf32> -> vector<256x128xf32>
    %c0_3 = arith.constant 0 : index
    %c0_4 = arith.constant 0 : index
    %3 = vector.load %arg3[%c0_3, %c0_4] : memref<1x128xf32, #tpu.memory_space<vmem>>, vector<1x128xf32>
    %4 = vector.broadcast %3 : vector<1x128xf32> to vector<256x128xf32>
    %5 = arith.addf %2, %4 : vector<256x128xf32>
    %cst_5 = arith.constant 0.000000e+00 : f32
    %6 = vector.broadcast %cst_5 : f32 to vector<256x128xf32>
    %7 = arith.maximumf %5, %6 : vector<256x128xf32>
    %c0_6 = arith.constant 0 : index
    %c0_7 = arith.constant 0 : index
    %8 = vector.load %arg4[%c0_6, %c0_7] : memref<256x128xf32, #tpu.memory_space<vmem>>, vector<256x128xf32>
    tpu.vector_store %arg4[%c0_6, %c0_7], %7 {strides = array<i32>} : memref<256x128xf32, #tpu.memory_space<vmem>>, vector<256x128xf32>,
    return
  }
  func.func @transform_0(%arg0: i32) -> (i32, i32) {
    %c0_i32 = arith.constant 0 : i32
    %c0_i32_0 = arith.constant 0 : i32
    return %arg0, %c0_i32 : i32, i32
  }
  func.func @transform_1(%arg0: i32) -> (i32, i32) {
    %c0_i32 = arith.constant 0 : i32
    %c0_i32_0 = arith.constant 0 : i32
    %c0_i32_1 = arith.constant 0 : i32
    return %c0_i32, %c0_i32_0 : i32, i32
  }
  func.func @transform_2(%arg0: i32) -> (i32, i32) {
    %c0_i32 = arith.constant 0 : i32
    %c0_i32_0 = arith.constant 0 : i32
    %c0_i32_1 = arith.constant 0 : i32
    return %c0_i32, %c0_i32_0 : i32, i32
  }
  func.func @transform_3(%arg0: i32) -> (i32, i32) {
    %c0_i32 = arith.constant 0 : i32
    %c0_i32_0 = arith.constant 0 : i32
    return %arg0, %c0_i32 : i32, i32
  }
}

module attributes {stable_mosaic.version = 11 : i64} {
  func.func @_mm_bias_act_kernel(%arg0: i32, %arg1: memref<256x9xbf16, #tpu.memory_space<vmem>>, %arg2: memref<9x128xbf16, #tpu.memory_space<vmem>>, %arg3: memref<1x128xf32, #tpu.memory_space<vmem>>, %arg4: memref<256x128xf32, #tpu.memory_space<vmem>>) attributes {dimension_semantics = [#tpu.dimension_semantics<parallel>], iteration_bounds = array<i64: 2>, scalar_prefetch = 0 : i64, scratch_operands = 0 : i64, tpu.core_type = #tpu.core_type<tc>, window_params = [{transform_indices = @transform_0, window_bounds = array<i64: 256, 9>}, {pipeline_mode = #tpu.pipeline_mode<synchronous>, transform_indices = @transform_1, window_bounds = array<i64: 9, 128>}, {pipeline_mode = #tpu.pipeline_mode<synchronous>, transform_indices = @transform_2, window_bounds = array<i64: 1, 128>}, {transform_indices = @transform_3, window_bounds = array<i64: 256, 128>}]} {
    %c0 = arith.constant 0 : index
    %c0_0 = arith.constant 0 : index
    %0 = vector.load %arg1[%c0, %c0_0] : memref<256x9xbf16, #tpu.memory_space<vmem>>, vector<256x9xbf16>
    %c0_1 = arith.constant 0 : index
    %c0_2 = arith.constant 0 : index
    %1 = vector.load %arg2[%c0_1, %c0_2] : memref<9x128xbf16, #tpu.memory_space<vmem>>, vector<9x128xbf16>
    %cst = arith.constant dense<0.000000e+00> : vector<256x128xf32>
    %2 = tpu.matmul %0, %1, %cst {dimension_numbers = #tpu.dot_dimension_numbers<[1], [0], [0], [1], [0, 0, 1, 1], [], []>} : vector<256x9xbf16>, vector<9x128xbf16>, vector<256x128xf32> -> vector<256x128xf32>
    %c0_3 = arith.constant 0 : index
    %c0_4 = arith.constant 0 : index
    %3 = vector.load %arg3[%c0_3, %c0_4] : memref<1x128xf32, #tpu.memory_space<vmem>>, vector<1x128xf32>
    %4 = vector.broadcast %3 : vector<1x128xf32> to vector<256x128xf32>
    %5 = arith.addf %2, %4 : vector<256x128xf32>
    %cst_5 = arith.constant 0.000000e+00 : f32
    %6 = vector.broadcast %cst_5 : f32 to vector<256x128xf32>
    %7 = arith.maximumf %5, %6 : vector<256x128xf32>
    %c0_6 = arith.constant 0 : index
    %c0_7 = arith.constant 0 : index
    %8 = vector.load %arg4[%c0_6, %c0_7] : memref<256x128xf32, #tpu.memory_space<vmem>>, vector<256x128xf32>
    tpu.vector_store %arg4[%c0_6, %c0_7], %7 {strides = array<i32>} : memref<256x128xf32, #tpu.memory_space<vmem>>, vector<256x128xf32>,
    return
  }
  func.func @transform_0(%arg0: i32) -> (i32, i32) {
    %c0_i32 = arith.constant 0 : i32
    %c0_i32_0 = arith.constant 0 : i32
    return %arg0, %c0_i32 : i32, i32
  }
  func.func @transform_1(%arg0: i32) -> (i32, i32) {
    %c0_i32 = arith.constant 0 : i32
    %c0_i32_0 = arith.constant 0 : i32
    %c0_i32_1 = arith.constant 0 : i32
    return %c0_i32, %c0_i32_0 : i32, i32
  }
  func.func @transform_2(%arg0: i32) -> (i32, i32) {
    %c0_i32 = arith.constant 0 : i32
    %c0_i32_0 = arith.constant 0 : i32
    %c0_i32_1 = arith.constant 0 : i32
    return %c0_i32, %c0_i32_0 : i32, i32
  }
  func.func @transform_3(%arg0: i32) -> (i32, i32) {
    %c0_i32 = arith.constant 0 : i32
    %c0_i32_0 = arith.constant 0 : i32
    return %arg0, %c0_i32 : i32, i32
  }
}

module attributes {stable_mosaic.version = 11 : i64} {
  func.func @_mm_bias_act_kernel(%arg0: i32, %arg1: memref<256x36xbf16, #tpu.memory_space<vmem>>, %arg2: memref<36x128xbf16, #tpu.memory_space<vmem>>, %arg3: memref<1x128xf32, #tpu.memory_space<vmem>>, %arg4: memref<256x128xf32, #tpu.memory_space<vmem>>) attributes {dimension_semantics = [#tpu.dimension_semantics<parallel>], iteration_bounds = array<i64: 2>, scalar_prefetch = 0 : i64, scratch_operands = 0 : i64, tpu.core_type = #tpu.core_type<tc>, window_params = [{transform_indices = @transform_0, window_bounds = array<i64: 256, 36>}, {pipeline_mode = #tpu.pipeline_mode<synchronous>, transform_indices = @transform_1, window_bounds = array<i64: 36, 128>}, {pipeline_mode = #tpu.pipeline_mode<synchronous>, transform_indices = @transform_2, window_bounds = array<i64: 1, 128>}, {transform_indices = @transform_3, window_bounds = array<i64: 256, 128>}]} {
    %c0 = arith.constant 0 : index
    %c0_0 = arith.constant 0 : index
    %0 = vector.load %arg1[%c0, %c0_0] : memref<256x36xbf16, #tpu.memory_space<vmem>>, vector<256x36xbf16>
    %c0_1 = arith.constant 0 : index
    %c0_2 = arith.constant 0 : index
    %1 = vector.load %arg2[%c0_1, %c0_2] : memref<36x128xbf16, #tpu.memory_space<vmem>>, vector<36x128xbf16>
    %cst = arith.constant dense<0.000000e+00> : vector<256x128xf32>
    %2 = tpu.matmul %0, %1, %cst {dimension_numbers = #tpu.dot_dimension_numbers<[1], [0], [0], [1], [0, 0, 1, 1], [], []>} : vector<256x36xbf16>, vector<36x128xbf16>, vector<256x128xf32> -> vector<256x128xf32>
    %c0_3 = arith.constant 0 : index
    %c0_4 = arith.constant 0 : index
    %3 = vector.load %arg3[%c0_3, %c0_4] : memref<1x128xf32, #tpu.memory_space<vmem>>, vector<1x128xf32>
    %4 = vector.broadcast %3 : vector<1x128xf32> to vector<256x128xf32>
    %5 = arith.addf %2, %4 : vector<256x128xf32>
    %c0_5 = arith.constant 0 : index
    %c0_6 = arith.constant 0 : index
    %6 = vector.load %arg4[%c0_5, %c0_6] : memref<256x128xf32, #tpu.memory_space<vmem>>, vector<256x128xf32>
    tpu.vector_store %arg4[%c0_5, %c0_6], %5 {strides = array<i32>} : memref<256x128xf32, #tpu.memory_space<vmem>>, vector<256x128xf32>,
    return
  }
  func.func @transform_0(%arg0: i32) -> (i32, i32) {
    %c0_i32 = arith.constant 0 : i32
    %c0_i32_0 = arith.constant 0 : i32
    return %arg0, %c0_i32 : i32, i32
  }
  func.func @transform_1(%arg0: i32) -> (i32, i32) {
    %c0_i32 = arith.constant 0 : i32
    %c0_i32_0 = arith.constant 0 : i32
    %c0_i32_1 = arith.constant 0 : i32
    return %c0_i32, %c0_i32_0 : i32, i32
  }
  func.func @transform_2(%arg0: i32) -> (i32, i32) {
    %c0_i32 = arith.constant 0 : i32
    %c0_i32_0 = arith.constant 0 : i32
    %c0_i32_1 = arith.constant 0 : i32
    return %c0_i32, %c0_i32_0 : i32, i32
  }
  func.func @transform_3(%arg0: i32) -> (i32, i32) {
    %c0_i32 = arith.constant 0 : i32
    %c0_i32_0 = arith.constant 0 : i32
    return %arg0, %c0_i32 : i32, i32
  }
}

module attributes {stable_mosaic.version = 11 : i64} {
  func.func @_mm_bias_act_kernel(%arg0: i32, %arg1: memref<256x12xbf16, #tpu.memory_space<vmem>>, %arg2: memref<12x128xbf16, #tpu.memory_space<vmem>>, %arg3: memref<1x128xf32, #tpu.memory_space<vmem>>, %arg4: memref<256x128xf32, #tpu.memory_space<vmem>>) attributes {dimension_semantics = [#tpu.dimension_semantics<parallel>], iteration_bounds = array<i64: 2>, scalar_prefetch = 0 : i64, scratch_operands = 0 : i64, tpu.core_type = #tpu.core_type<tc>, window_params = [{transform_indices = @transform_0, window_bounds = array<i64: 256, 12>}, {pipeline_mode = #tpu.pipeline_mode<synchronous>, transform_indices = @transform_1, window_bounds = array<i64: 12, 128>}, {pipeline_mode = #tpu.pipeline_mode<synchronous>, transform_indices = @transform_2, window_bounds = array<i64: 1, 128>}, {transform_indices = @transform_3, window_bounds = array<i64: 256, 128>}]} {
    %c0 = arith.constant 0 : index
    %c0_0 = arith.constant 0 : index
    %0 = vector.load %arg1[%c0, %c0_0] : memref<256x12xbf16, #tpu.memory_space<vmem>>, vector<256x12xbf16>
    %c0_1 = arith.constant 0 : index
    %c0_2 = arith.constant 0 : index
    %1 = vector.load %arg2[%c0_1, %c0_2] : memref<12x128xbf16, #tpu.memory_space<vmem>>, vector<12x128xbf16>
    %cst = arith.constant dense<0.000000e+00> : vector<256x128xf32>
    %2 = tpu.matmul %0, %1, %cst {dimension_numbers = #tpu.dot_dimension_numbers<[1], [0], [0], [1], [0, 0, 1, 1], [], []>} : vector<256x12xbf16>, vector<12x128xbf16>, vector<256x128xf32> -> vector<256x128xf32>
    %c0_3 = arith.constant 0 : index
    %c0_4 = arith.constant 0 : index
    %3 = vector.load %arg3[%c0_3, %c0_4] : memref<1x128xf32, #tpu.memory_space<vmem>>, vector<1x128xf32>
    %4 = vector.broadcast %3 : vector<1x128xf32> to vector<256x128xf32>
    %5 = arith.addf %2, %4 : vector<256x128xf32>
    %cst_5 = arith.constant 0.000000e+00 : f32
    %6 = vector.broadcast %cst_5 : f32 to vector<256x128xf32>
    %7 = arith.maximumf %5, %6 : vector<256x128xf32>
    %c0_6 = arith.constant 0 : index
    %c0_7 = arith.constant 0 : index
    %8 = vector.load %arg4[%c0_6, %c0_7] : memref<256x128xf32, #tpu.memory_space<vmem>>, vector<256x128xf32>
    tpu.vector_store %arg4[%c0_6, %c0_7], %7 {strides = array<i32>} : memref<256x128xf32, #tpu.memory_space<vmem>>, vector<256x128xf32>,
    return
  }
  func.func @transform_0(%arg0: i32) -> (i32, i32) {
    %c0_i32 = arith.constant 0 : i32
    %c0_i32_0 = arith.constant 0 : i32
    return %arg0, %c0_i32 : i32, i32
  }
  func.func @transform_1(%arg0: i32) -> (i32, i32) {
    %c0_i32 = arith.constant 0 : i32
    %c0_i32_0 = arith.constant 0 : i32
    %c0_i32_1 = arith.constant 0 : i32
    return %c0_i32, %c0_i32_0 : i32, i32
  }
  func.func @transform_2(%arg0: i32) -> (i32, i32) {
    %c0_i32 = arith.constant 0 : i32
    %c0_i32_0 = arith.constant 0 : i32
    %c0_i32_1 = arith.constant 0 : i32
    return %c0_i32, %c0_i32_0 : i32, i32
  }
  func.func @transform_3(%arg0: i32) -> (i32, i32) {
    %c0_i32 = arith.constant 0 : i32
    %c0_i32_0 = arith.constant 0 : i32
    return %arg0, %c0_i32 : i32, i32
  }
}

module attributes {stable_mosaic.version = 11 : i64} {
  func.func @_mm2_lrelu_relu_kernel(%arg0: i32, %arg1: memref<256x16xbf16, #tpu.memory_space<vmem>>, %arg2: memref<16x128xbf16, #tpu.memory_space<vmem>>, %arg3: memref<1x128xf32, #tpu.memory_space<vmem>>, %arg4: memref<128x128xbf16, #tpu.memory_space<vmem>>, %arg5: memref<1x128xf32, #tpu.memory_space<vmem>>, %arg6: memref<256x128xf32, #tpu.memory_space<vmem>>) attributes {dimension_semantics = [#tpu.dimension_semantics<parallel>], iteration_bounds = array<i64: 2>, scalar_prefetch = 0 : i64, scratch_operands = 0 : i64, tpu.core_type = #tpu.core_type<tc>, window_params = [{transform_indices = @transform_0, window_bounds = array<i64: 256, 16>}, {pipeline_mode = #tpu.pipeline_mode<synchronous>, transform_indices = @transform_1, window_bounds = array<i64: 16, 128>}, {pipeline_mode = #tpu.pipeline_mode<synchronous>, transform_indices = @transform_2, window_bounds = array<i64: 1, 128>}, {pipeline_mode = #tpu.pipeline_mode<synchronous>, transform_indices = @transform_3, window_bounds = array<i64: 128, 128>}, {pipeline_mode = #tpu.pipeline_mode<synchronous>, transform_indices = @transform_4, window_bounds = array<i64: 1, 128>}, {transform_indices = @transform_5, window_bounds = array<i64: 256, 128>}]} {
    %c0 = arith.constant 0 : index
    %c0_0 = arith.constant 0 : index
    %0 = vector.load %arg1[%c0, %c0_0] : memref<256x16xbf16, #tpu.memory_space<vmem>>, vector<256x16xbf16>
    %c0_1 = arith.constant 0 : index
    %c0_2 = arith.constant 0 : index
    %1 = vector.load %arg2[%c0_1, %c0_2] : memref<16x128xbf16, #tpu.memory_space<vmem>>, vector<16x128xbf16>
    %cst = arith.constant dense<0.000000e+00> : vector<256x128xf32>
    %2 = tpu.matmul %0, %1, %cst {dimension_numbers = #tpu.dot_dimension_numbers<[1], [0], [0], [1], [0, 0, 1, 1], [], []>} : vector<256x16xbf16>, vector<16x128xbf16>, vector<256x128xf32> -> vector<256x128xf32>
    %c0_3 = arith.constant 0 : index
    %c0_4 = arith.constant 0 : index
    %3 = vector.load %arg3[%c0_3, %c0_4] : memref<1x128xf32, #tpu.memory_space<vmem>>, vector<1x128xf32>
    %4 = vector.broadcast %3 : vector<1x128xf32> to vector<256x128xf32>
    %5 = arith.addf %2, %4 : vector<256x128xf32>
    %cst_5 = arith.constant 0.000000e+00 : f32
    %6 = vector.broadcast %cst_5 : f32 to vector<256x128xf32>
    %7 = arith.cmpf ogt, %5, %6 : vector<256x128xf32>
    %cst_6 = arith.constant 1.000000e-01 : f32
    %8 = vector.broadcast %cst_6 : f32 to vector<256x128xf32>
    %9 = arith.mulf %8, %5 : vector<256x128xf32>
    %10 = arith.select %7, %5, %9 : vector<256x128xi1>, vector<256x128xf32>
    %11 = arith.truncf %10 : vector<256x128xf32> to vector<256x128xbf16>
    %c0_7 = arith.constant 0 : index
    %c0_8 = arith.constant 0 : index
    %12 = vector.load %arg4[%c0_7, %c0_8] : memref<128x128xbf16, #tpu.memory_space<vmem>>, vector<128x128xbf16>
    %cst_9 = arith.constant dense<0.000000e+00> : vector<256x128xf32>
    %13 = tpu.matmul %11, %12, %cst_9 {dimension_numbers = #tpu.dot_dimension_numbers<[1], [0], [0], [1], [0, 0, 1, 1], [], []>} : vector<256x128xbf16>, vector<128x128xbf16>, vector<256x128xf32> -> vector<256x128xf32>
    %c0_10 = arith.constant 0 : index
    %c0_11 = arith.constant 0 : index
    %14 = vector.load %arg5[%c0_10, %c0_11] : memref<1x128xf32, #tpu.memory_space<vmem>>, vector<1x128xf32>
    %15 = vector.broadcast %14 : vector<1x128xf32> to vector<256x128xf32>
    %16 = arith.addf %13, %15 : vector<256x128xf32>
    %cst_12 = arith.constant 0.000000e+00 : f32
    %17 = vector.broadcast %cst_12 : f32 to vector<256x128xf32>
    %18 = arith.maximumf %16, %17 : vector<256x128xf32>
    %c0_13 = arith.constant 0 : index
    %c0_14 = arith.constant 0 : index
    %19 = vector.load %arg6[%c0_13, %c0_14] : memref<256x128xf32, #tpu.memory_space<vmem>>, vector<256x128xf32>
    tpu.vector_store %arg6[%c0_13, %c0_14], %18 {strides = array<i32>} : memref<256x128xf32, #tpu.memory_space<vmem>>, vector<256x128xf32>,
    return
  }
  func.func @transform_0(%arg0: i32) -> (i32, i32) {
    %c0_i32 = arith.constant 0 : i32
    %c0_i32_0 = arith.constant 0 : i32
    return %arg0, %c0_i32 : i32, i32
  }
  func.func @transform_1(%arg0: i32) -> (i32, i32) {
    %c0_i32 = arith.constant 0 : i32
    %c0_i32_0 = arith.constant 0 : i32
    %c0_i32_1 = arith.constant 0 : i32
    return %c0_i32, %c0_i32_0 : i32, i32
  }
  func.func @transform_2(%arg0: i32) -> (i32, i32) {
    %c0_i32 = arith.constant 0 : i32
    %c0_i32_0 = arith.constant 0 : i32
    %c0_i32_1 = arith.constant 0 : i32
    return %c0_i32, %c0_i32_0 : i32, i32
  }
  func.func @transform_3(%arg0: i32) -> (i32, i32) {
    %c0_i32 = arith.constant 0 : i32
    %c0_i32_0 = arith.constant 0 : i32
    %c0_i32_1 = arith.constant 0 : i32
    return %c0_i32, %c0_i32_0 : i32, i32
  }
  func.func @transform_4(%arg0: i32) -> (i32, i32) {
    %c0_i32 = arith.constant 0 : i32
    %c0_i32_0 = arith.constant 0 : i32
    %c0_i32_1 = arith.constant 0 : i32
    return %c0_i32, %c0_i32_0 : i32, i32
  }
  func.func @transform_5(%arg0: i32) -> (i32, i32) {
    %c0_i32 = arith.constant 0 : i32
    %c0_i32_0 = arith.constant 0 : i32
    return %arg0, %c0_i32 : i32, i32
  }
}

module attributes {stable_mosaic.version = 11 : i64} {
  func.func @_mm_bias_act_kernel(%arg0: i32, %arg1: memref<256x16xbf16, #tpu.memory_space<vmem>>, %arg2: memref<16x128xbf16, #tpu.memory_space<vmem>>, %arg3: memref<1x128xf32, #tpu.memory_space<vmem>>, %arg4: memref<256x128xf32, #tpu.memory_space<vmem>>) attributes {dimension_semantics = [#tpu.dimension_semantics<parallel>], iteration_bounds = array<i64: 2>, scalar_prefetch = 0 : i64, scratch_operands = 0 : i64, tpu.core_type = #tpu.core_type<tc>, window_params = [{transform_indices = @transform_0, window_bounds = array<i64: 256, 16>}, {pipeline_mode = #tpu.pipeline_mode<synchronous>, transform_indices = @transform_1, window_bounds = array<i64: 16, 128>}, {pipeline_mode = #tpu.pipeline_mode<synchronous>, transform_indices = @transform_2, window_bounds = array<i64: 1, 128>}, {transform_indices = @transform_3, window_bounds = array<i64: 256, 128>}]} {
    %c0 = arith.constant 0 : index
    %c0_0 = arith.constant 0 : index
    %0 = vector.load %arg1[%c0, %c0_0] : memref<256x16xbf16, #tpu.memory_space<vmem>>, vector<256x16xbf16>
    %c0_1 = arith.constant 0 : index
    %c0_2 = arith.constant 0 : index
    %1 = vector.load %arg2[%c0_1, %c0_2] : memref<16x128xbf16, #tpu.memory_space<vmem>>, vector<16x128xbf16>
    %cst = arith.constant dense<0.000000e+00> : vector<256x128xf32>
    %2 = tpu.matmul %0, %1, %cst {dimension_numbers = #tpu.dot_dimension_numbers<[1], [0], [0], [1], [0, 0, 1, 1], [], []>} : vector<256x16xbf16>, vector<16x128xbf16>, vector<256x128xf32> -> vector<256x128xf32>
    %c0_3 = arith.constant 0 : index
    %c0_4 = arith.constant 0 : index
    %3 = vector.load %arg3[%c0_3, %c0_4] : memref<1x128xf32, #tpu.memory_space<vmem>>, vector<1x128xf32>
    %4 = vector.broadcast %3 : vector<1x128xf32> to vector<256x128xf32>
    %5 = arith.addf %2, %4 : vector<256x128xf32>
    %cst_5 = arith.constant 0.000000e+00 : f32
    %6 = vector.broadcast %cst_5 : f32 to vector<256x128xf32>
    %7 = arith.cmpf ogt, %5, %6 : vector<256x128xf32>
    %cst_6 = arith.constant 1.000000e-01 : f32
    %8 = vector.broadcast %cst_6 : f32 to vector<256x128xf32>
    %9 = arith.mulf %8, %5 : vector<256x128xf32>
    %10 = arith.select %7, %5, %9 : vector<256x128xi1>, vector<256x128xf32>
    %c0_7 = arith.constant 0 : index
    %c0_8 = arith.constant 0 : index
    %11 = vector.load %arg4[%c0_7, %c0_8] : memref<256x128xf32, #tpu.memory_space<vmem>>, vector<256x128xf32>
    tpu.vector_store %arg4[%c0_7, %c0_8], %10 {strides = array<i32>} : memref<256x128xf32, #tpu.memory_space<vmem>>, vector<256x128xf32>,
    return
  }
  func.func @transform_0(%arg0: i32) -> (i32, i32) {
    %c0_i32 = arith.constant 0 : i32
    %c0_i32_0 = arith.constant 0 : i32
    return %arg0, %c0_i32 : i32, i32
  }
  func.func @transform_1(%arg0: i32) -> (i32, i32) {
    %c0_i32 = arith.constant 0 : i32
    %c0_i32_0 = arith.constant 0 : i32
    %c0_i32_1 = arith.constant 0 : i32
    return %c0_i32, %c0_i32_0 : i32, i32
  }
  func.func @transform_2(%arg0: i32) -> (i32, i32) {
    %c0_i32 = arith.constant 0 : i32
    %c0_i32_0 = arith.constant 0 : i32
    %c0_i32_1 = arith.constant 0 : i32
    return %c0_i32, %c0_i32_0 : i32, i32
  }
  func.func @transform_3(%arg0: i32) -> (i32, i32) {
    %c0_i32 = arith.constant 0 : i32
    %c0_i32_0 = arith.constant 0 : i32
    return %arg0, %c0_i32 : i32, i32
  }
}

</mosaic_0001>

<llo_original>
// kernel: split.19
$region0: #{split.19}
  #allocation0 [shape = 'u32[2048]{0}', space=vmem, size = 0x2000, scoped, tag = 'scoped memory for split.19']
  #allocation1 [shape = 'u32[2048]{0}', space=vmem, size = 0x2000, scoped, tag = 'scoped memory for split.19']
  #allocation2 [shape = 'u32[2048]{0}', space=vmem, size = 0x2000, scoped, tag = 'scoped memory for split.19']
  #allocation3 [shape = 'u32[2048]{0}', space=vmem, size = 0x2000, scoped, tag = 'scoped memory for split.19']
  #allocation4 [shape = 'u32[2048]{0}', space=vmem, size = 0x2000, scoped, tag = 'scoped memory for split.19']
  #allocation5 [shape = 's32[1]{0}', space=sflag, size = 0x4, scoped, tag = 'scoped memory for split.19']
  %s0 = inlined_call_operand.vmem [shape: bf16[2,16,16,14], index: 0, kind: input, shape index: {}]
  %s1 = inlined_call_operand.vmem [shape: bf16[2,16,16,2], index: 1, kind: output, shape index: {}]
  %v2 = vld [vmem:[%s0] sm:$0xf]
  %v3 = vunpack.c.l.bf16 %v2
  %v4 = vunpack.c.h.bf16 %v2
  %v5 = vlaneseq
  %v6 = vand.u32 %v5, 127
  %vm7 = vcmp.lt.s32.totalorder %v6, 12
  %v8 = vsel %vm7, 0, %v3
  %9 = vrot.lane.b32.xlu0 %v8, 116
  %v10 = vpop.permute.xlu0 %9
  %v11 = vpack.c.bf16 0.0, %v10
  %12 = vst [vmem:[%s1] sm:$0xf] %v11
  %s13 = scalar_lea.vmem %s0, 128
  %v14 = vld [vmem:[%s13] sm:$0xf]
  %v15 = vunpack.c.l.bf16 %v14
  %v16 = vunpack.c.h.bf16 %v14
  %v17 = vlaneseq
  %v18 = vand.u32 %v17, 127
  %vm19 = vcmp.lt.s32.totalorder %v18, 12
  %v20 = vsel %vm19, 0, %v15
  %21 = vrot.lane.b32.xlu0 %v20, 116
  %v22 = vpop.permute.xlu0 %21
  %s23 = scalar_lea.vmem %s1, 128
  %v24 = vpack.c.bf16 0.0, %v22
  %25 = vst [vmem:[%s23] sm:$0xf] %v24
  %s26 = scalar_lea.vmem %s0, 8
  %v27 = vld [vmem:[%s26] sm:$0xf]
  %v28 = vunpack.c.l.bf16 %v27
  %v29 = vunpack.c.h.bf16 %v27
  %v30 = vlaneseq
  %v31 = vand.u32 %v30, 127
  %vm32 = vcmp.lt.s32.totalorder %v31, 12
  %v33 = vsel %vm32, 0, %v28
  %34 = vrot.lane.b32.xlu0 %v33, 116
  %v35 = vpop.permute.xlu0 %34
  %s36 = scalar_lea.vmem %s1, 8
  %v37 = vpack.c.bf16 0.0, %v35
  %38 = vst [vmem:[%s36] sm:$0xf] %v37
  %s39 = scalar_lea.vmem %s0, 136
  %v40 = vld [vmem:[%s39] sm:$0xf]
  %v41 = vunpack.c.l.bf16 %v40
  %v42 = vunpack.c.h.bf16 %v40
  %v43 = vlaneseq
  %v44 = vand.u32 %v43, 127
  %vm45 = vcmp.lt.s32.totalorder %v44, 12
  %v46 = vsel %vm45, 0, %v41
  %47 = vrot.lane.b32.xlu0 %v46, 116
  %v48 = vpop.permute.xlu0 %47
  %s49 = scalar_lea.vmem %s1, 136
  %v50 = vpack.c.bf16 0.0, %v48
  %51 = vst [vmem:[%s49] sm:$0xf] %v50
  %s52 = scalar_lea.vmem %s0, 16
  %v53 = vld [vmem:[%s52] sm:$0xf]
  %v54 = vunpack.c.l.bf16 %v53
  %v55 = vunpack.c.h.bf16 %v53
  %v56 = vlaneseq
  %v57 = vand.u32 %v56, 127
  %vm58 = vcmp.lt.s32.totalorder %v57, 12
  %v59 = vsel %vm58, 0, %v54
  %60 = vrot.lane.b32.xlu0 %v59, 116
  %v61 = vpop.permute.xlu0 %60
  %s62 = scalar_lea.vmem %s1, 16
  %v63 = vpack.c.bf16 0.0, %v61
  %64 = vst [vmem:[%s62] sm:$0xf] %v63
  %s65 = scalar_lea.vmem %s0, 144
  %v66 = vld [vmem:[%s65] sm:$0xf]
  %v67 = vunpack.c.l.bf16 %v66
  %v68 = vunpack.c.h.bf16 %v66
  %v69 = vlaneseq
  %v70 = vand.u32 %v69, 127
  %vm71 = vcmp.lt.s32.totalorder %v70, 12
  %v72 = vsel %vm71, 0, %v67
  %73 = vrot.lane.b32.xlu0 %v72, 116
  %v74 = vpop.permute.xlu0 %73
  %s75 = scalar_lea.vmem %s1, 144
  %v76 = vpack.c.bf16 0.0, %v74
  %77 = vst [vmem:[%s75] sm:$0xf] %v76
  %s78 = scalar_lea.vmem %s0, 24
  %v79 = vld [vmem:[%s78] sm:$0xf]
  %v80 = vunpack.c.l.bf16 %v79
  %v81 = vunpack.c.h.bf16 %v79
  %v82 = vlaneseq
  %v83 = vand.u32 %v82, 127
  %vm84 = vcmp.lt.s32.totalorder %v83, 12
  %v85 = vsel %vm84, 0, %v80
  %86 = vrot.lane.b32.xlu0 %v85, 116
  %v87 = vpop.permute.xlu0 %86
  %s88 = scalar_lea.vmem %s1, 24
  %v89 = vpack.c.bf16 0.0, %v87
  %90 = vst [vmem:[%s88] sm:$0xf] %v89
  %s91 = scalar_lea.vmem %s0, 152
  %v92 = vld [vmem:[%s91] sm:$0xf]
  %v93 = vunpack.c.l.bf16 %v92
  %v94 = vunpack.c.h.bf16 %v92
  %v95 = vlaneseq
  %v96 = vand.u32 %v95, 127
  %vm97 = vcmp.lt.s32.totalorder %v96, 12
  %v98 = vsel %vm97, 0, %v93
  %99 = vrot.lane.b32.xlu0 %v98, 116
  %v100 = vpop.permute.xlu0 %99
  %s101 = scalar_lea.vmem %s1, 152
  %v102 = vpack.c.bf16 0.0, %v100
  %103 = vst [vmem:[%s101] sm:$0xf] %v102
  %s104 = scalar_lea.vmem %s0, 32
  %v105 = vld [vmem:[%s104] sm:$0xf]
  %v106 = vunpack.c.l.bf16 %v105
  %v107 = vunpack.c.h.bf16 %v105
  %v108 = vlaneseq
  %v109 = vand.u32 %v108, 127
  %vm110 = vcmp.lt.s32.totalorder %v109, 12
  %v111 = vsel %vm110, 0, %v106
  %112 = vrot.lane.b32.xlu0 %v111, 116
  %v113 = vpop.permute.xlu0 %112
  %s114 = scalar_lea.vmem %s1, 32
  %v115 = vpack.c.bf16 0.0, %v113
  %116 = vst [vmem:[%s114] sm:$0xf] %v115
  %s117 = scalar_lea.vmem %s0, 160
  %v118 = vld [vmem:[%s117] sm:$0xf]
  %v119 = vunpack.c.l.bf16 %v118
  %v120 = vunpack.c.h.bf16 %v118
  %v121 = vlaneseq
  %v122 = vand.u32 %v121, 127
  %vm123 = vcmp.lt.s32.totalorder %v122, 12
  %v124 = vsel %vm123, 0, %v119
  %125 = vrot.lane.b32.xlu0 %v124, 116
  %v126 = vpop.permute.xlu0 %125
  %s127 = scalar_lea.vmem %s1, 160
  %v128 = vpack.c.bf16 0.0, %v126
  %129 = vst [vmem:[%s127] sm:$0xf] %v128
  %s130 = scalar_lea.vmem %s0, 40
  %v131 = vld [vmem:[%s130] sm:$0xf]
  %v132 = vunpack.c.l.bf16 %v131
  %v133 = vunpack.c.h.bf16 %v131
  %v134 = vlaneseq
  %v135 = vand.u32 %v134, 127
  %vm136 = vcmp.lt.s32.totalorder %v135, 12
  %v137 = vsel %vm136, 0, %v132
  %138 = vrot.lane.b32.xlu0 %v137, 116
  %v139 = vpop.permute.xlu0 %138
  %s140 = scalar_lea.vmem %s1, 40
  %v141 = vpack.c.bf16 0.0, %v139
  %142 = vst [vmem:[%s140] sm:$0xf] %v141
  %s143 = scalar_lea.vmem %s0, 168
  %v144 = vld [vmem:[%s143] sm:$0xf]
  %v145 = vunpack.c.l.bf16 %v144
  %v146 = vunpack.c.h.bf16 %v144
  %v147 = vlaneseq
  %v148 = vand.u32 %v147, 127
  %vm149 = vcmp.lt.s32.totalorder %v148, 12
  %v150 = vsel %vm149, 0, %v145
  %151 = vrot.lane.b32.xlu0 %v150, 116
  %v152 = vpop.permute.xlu0 %151
  %s153 = scalar_lea.vmem %s1, 168
  %v154 = vpack.c.bf16 0.0, %v152
  %155 = vst [vmem:[%s153] sm:$0xf] %v154
  %s156 = scalar_lea.vmem %s0, 48
  %v157 = vld [vmem:[%s156] sm:$0xf]
  %v158 = vunpack.c.l.bf16 %v157
  %v159 = vunpack.c.h.bf16 %v157
  %v160 = vlaneseq
  %v161 = vand.u32 %v160, 127
  %vm162 = vcmp.lt.s32.totalorder %v161, 12
  %v163 = vsel %vm162, 0, %v158
  %164 = vrot.lane.b32.xlu0 %v163, 116
  %v165 = vpop.permute.xlu0 %164
  %s166 = scalar_lea.vmem %s1, 48
  %v167 = vpack.c.bf16 0.0, %v165
  %168 = vst [vmem:[%s166] sm:$0xf] %v167
  %s169 = scalar_lea.vmem %s0, 176
  %v170 = vld [vmem:[%s169] sm:$0xf]
  %v171 = vunpack.c.l.bf16 %v170
  %v172 = vunpack.c.h.bf16 %v170
  %v173 = vlaneseq
  %v174 = vand.u32 %v173, 127
  %vm175 = vcmp.lt.s32.totalorder %v174, 12
  %v176 = vsel %vm175, 0, %v171
  %177 = vrot.lane.b32.xlu0 %v176, 116
  %v178 = vpop.permute.xlu0 %177
  %s179 = scalar_lea.vmem %s1, 176
  %v180 = vpack.c.bf16 0.0, %v178
  %181 = vst [vmem:[%s179] sm:$0xf] %v180
  %s182 = scalar_lea.vmem %s0, 56
  %v183 = vld [vmem:[%s182] sm:$0xf]
  %v184 = vunpack.c.l.bf16 %v183
  %v185 = vunpack.c.h.bf16 %v183
  %v186 = vlaneseq
  %v187 = vand.u32 %v186, 127
  %vm188 = vcmp.lt.s32.totalorder %v187, 12
  %v189 = vsel %vm188, 0, %v184
  %190 = vrot.lane.b32.xlu0 %v189, 116
  %v191 = vpop.permute.xlu0 %190
  %s192 = scalar_lea.vmem %s1, 56
  %v193 = vpack.c.bf16 0.0, %v191
  %194 = vst [vmem:[%s192] sm:$0xf] %v193
  %s195 = scalar_lea.vmem %s0, 184
  %v196 = vld [vmem:[%s195] sm:$0xf]
  %v197 = vunpack.c.l.bf16 %v196
  %v198 = vunpack.c.h.bf16 %v196
  %v199 = vlaneseq
  %v200 = vand.u32 %v199, 127
  %vm201 = vcmp.lt.s32.totalorder %v200, 12
  %v202 = vsel %vm201, 0, %v197
  %203 = vrot.lane.b32.xlu0 %v202, 116
  %v204 = vpop.permute.xlu0 %203
  %s205 = scalar_lea.vmem %s1, 184
  %v206 = vpack.c.bf16 0.0, %v204
  %207 = vst [vmem:[%s205] sm:$0xf] %v206
  %s208 = scalar_lea.vmem %s0, 64
  %v209 = vld [vmem:[%s208] sm:$0xf]
  %v210 = vunpack.c.l.bf16 %v209
  %v211 = vunpack.c.h.bf16 %v209
  %v212 = vlaneseq
  %v213 = vand.u32 %v212, 127
  %vm214 = vcmp.lt.s32.totalorder %v213, 12
  %v215 = vsel %vm214, 0, %v210
  %216 = vrot.lane.b32.xlu0 %v215, 116
  %v217 = vpop.permute.xlu0 %216
  %s218 = scalar_lea.vmem %s1, 64
  %v219 = vpack.c.bf16 0.0, %v217
  %220 = vst [vmem:[%s218] sm:$0xf] %v219
  %s221 = scalar_lea.vmem %s0, 192
  %v222 = vld [vmem:[%s221] sm:$0xf]
  %v223 = vunpack.c.l.bf16 %v222
  %v224 = vunpack.c.h.bf16 %v222
  %v225 = vlaneseq
  %v226 = vand.u32 %v225, 127
  %vm227 = vcmp.lt.s32.totalorder %v226, 12
  %v228 = vsel %vm227, 0, %v223
  %229 = vrot.lane.b32.xlu0 %v228, 116
  %v230 = vpop.permute.xlu0 %229
  %s231 = scalar_lea.vmem %s1, 192
  %v232 = vpack.c.bf16 0.0, %v230
  %233 = vst [vmem:[%s231] sm:$0xf] %v232
  %s234 = scalar_lea.vmem %s0, 72
  %v235 = vld [vmem:[%s234] sm:$0xf]
  %v236 = vunpack.c.l.bf16 %v235
  %v237 = vunpack.c.h.bf16 %v235
  %v238 = vlaneseq
  %v239 = vand.u32 %v238, 127
  %vm240 = vcmp.lt.s32.totalorder %v239, 12
  %v241 = vsel %vm240, 0, %v236
  %242 = vrot.lane.b32.xlu0 %v241, 116
  %v243 = vpop.permute.xlu0 %242
  %s244 = scalar_lea.vmem %s1, 72
  %v245 = vpack.c.bf16 0.0, %v243
  %246 = vst [vmem:[%s244] sm:$0xf] %v245
  %s247 = scalar_lea.vmem %s0, 200
  %v248 = vld [vmem:[%s247] sm:$0xf]
  %v249 = vunpack.c.l.bf16 %v248
  %v250 = vunpack.c.h.bf16 %v248
  %v251 = vlaneseq
  %v252 = vand.u32 %v251, 127
  %vm253 = vcmp.lt.s32.totalorder %v252, 12
  %v254 = vsel %vm253, 0, %v249
  %255 = vrot.lane.b32.xlu0 %v254, 116
  %v256 = vpop.permute.xlu0 %255
  %s257 = scalar_lea.vmem %s1, 200
  %v258 = vpack.c.bf16 0.0, %v256
  %259 = vst [vmem:[%s257] sm:$0xf] %v258
  %s260 = scalar_lea.vmem %s0, 80
  %v261 = vld [vmem:[%s260] sm:$0xf]
  %v262 = vunpack.c.l.bf16 %v261
  %v263 = vunpack.c.h.bf16 %v261
  %v264 = vlaneseq
  %v265 = vand.u32 %v264, 127
  %vm266 = vcmp.lt.s32.totalorder %v265, 12
  %v267 = vsel %vm266, 0, %v262
  %268 = vrot.lane.b32.xlu0 %v267, 116
  %v269 = vpop.permute.xlu0 %268
  %s270 = scalar_lea.vmem %s1, 80
  %v271 = vpack.c.bf16 0.0, %v269
  %272 = vst [vmem:[%s270] sm:$0xf] %v271
  %s273 = scalar_lea.vmem %s0, 208
  %v274 = vld [vmem:[%s273] sm:$0xf]
  %v275 = vunpack.c.l.bf16 %v274
  %v276 = vunpack.c.h.bf16 %v274
  %v277 = vlaneseq
  %v278 = vand.u32 %v277, 127
  %vm279 = vcmp.lt.s32.totalorder %v278, 12
  %v280 = vsel %vm279, 0, %v275
  %281 = vrot.lane.b32.xlu0 %v280, 116
  %v282 = vpop.permute.xlu0 %281
  %s283 = scalar_lea.vmem %s1, 208
  %v284 = vpack.c.bf16 0.0, %v282
  %285 = vst [vmem:[%s283] sm:$0xf] %v284
  %s286 = scalar_lea.vmem %s0, 88
  %v287 = vld [vmem:[%s286] sm:$0xf]
  %v288 = vunpack.c.l.bf16 %v287
  %v289 = vunpack.c.h.bf16 %v287
  %v290 = vlaneseq
  %v291 = vand.u32 %v290, 127
  %vm292 = vcmp.lt.s32.totalorder %v291, 12
  %v293 = vsel %vm292, 0, %v288
  %294 = vrot.lane.b32.xlu0 %v293, 116
  %v295 = vpop.permute.xlu0 %294
  %s296 = scalar_lea.vmem %s1, 88
  %v297 = vpack.c.bf16 0.0, %v295
  %298 = vst [vmem:[%s296] sm:$0xf] %v297
  %s299 = scalar_lea.vmem %s0, 216
  %v300 = vld [vmem:[%s299] sm:$0xf]
  %v301 = vunpack.c.l.bf16 %v300
  %v302 = vunpack.c.h.bf16 %v300
  %v303 = vlaneseq
  %v304 = vand.u32 %v303, 127
  %vm305 = vcmp.lt.s32.totalorder %v304, 12
  %v306 = vsel %vm305, 0, %v301
  %307 = vrot.lane.b32.xlu0 %v306, 116
  %v308 = vpop.permute.xlu0 %307
  %s309 = scalar_lea.vmem %s1, 216
  %v310 = vpack.c.bf16 0.0, %v308
  %311 = vst [vmem:[%s309] sm:$0xf] %v310
  %s312 = scalar_lea.vmem %s0, 96
  %v313 = vld [vmem:[%s312] sm:$0xf]
  %v314 = vunpack.c.l.bf16 %v313
  %v315 = vunpack.c.h.bf16 %v313
  %v316 = vlaneseq
  %v317 = vand.u32 %v316, 127
  %vm318 = vcmp.lt.s32.totalorder %v317, 12
  %v319 = vsel %vm318, 0, %v314
  %320 = vrot.lane.b32.xlu0 %v319, 116
  %v321 = vpop.permute.xlu0 %320
  %s322 = scalar_lea.vmem %s1, 96
  %v323 = vpack.c.bf16 0.0, %v321
  %324 = vst [vmem:[%s322] sm:$0xf] %v323
  %s325 = scalar_lea.vmem %s0, 224
  %v326 = vld [vmem:[%s325] sm:$0xf]
  %v327 = vunpack.c.l.bf16 %v326
  %v328 = vunpack.c.h.bf16 %v326
  %v329 = vlaneseq
  %v330 = vand.u32 %v329, 127
  %vm331 = vcmp.lt.s32.totalorder %v330, 12
  %v332 = vsel %vm331, 0, %v327
  %333 = vrot.lane.b32.xlu0 %v332, 116
  %v334 = vpop.permute.xlu0 %333
  %s335 = scalar_lea.vmem %s1, 224
  %v336 = vpack.c.bf16 0.0, %v334
  %337 = vst [vmem:[%s335] sm:$0xf] %v336
  %s338 = scalar_lea.vmem %s0, 104
  %v339 = vld [vmem:[%s338] sm:$0xf]
  %v340 = vunpack.c.l.bf16 %v339
  %v341 = vunpack.c.h.bf16 %v339
  %v342 = vlaneseq
  %v343 = vand.u32 %v342, 127
  %vm344 = vcmp.lt.s32.totalorder %v343, 12
  %v345 = vsel %vm344, 0, %v340
  %346 = vrot.lane.b32.xlu0 %v345, 116
  %v347 = vpop.permute.xlu0 %346
  %s348 = scalar_lea.vmem %s1, 104
  %v349 = vpack.c.bf16 0.0, %v347
  %350 = vst [vmem:[%s348] sm:$0xf] %v349
  %s351 = scalar_lea.vmem %s0, 232
  %v352 = vld [vmem:[%s351] sm:$0xf]
  %v353 = vunpack.c.l.bf16 %v352
  %v354 = vunpack.c.h.bf16 %v352
  %v355 = vlaneseq
  %v356 = vand.u32 %v355, 127
  %vm357 = vcmp.lt.s32.totalorder %v356, 12
  %v358 = vsel %vm357, 0, %v353
  %359 = vrot.lane.b32.xlu0 %v358, 116
  %v360 = vpop.permute.xlu0 %359
  %s361 = scalar_lea.vmem %s1, 232
  %v362 = vpack.c.bf16 0.0, %v360
  %363 = vst [vmem:[%s361] sm:$0xf] %v362
  %s364 = scalar_lea.vmem %s0, 112
  %v365 = vld [vmem:[%s364] sm:$0xf]
  %v366 = vunpack.c.l.bf16 %v365
  %v367 = vunpack.c.h.bf16 %v365
  %v368 = vlaneseq
  %v369 = vand.u32 %v368, 127
  %vm370 = vcmp.lt.s32.totalorder %v369, 12
  %v371 = vsel %vm370, 0, %v366
  %372 = vrot.lane.b32.xlu0 %v371, 116
  %v373 = vpop.permute.xlu0 %372
  %s374 = scalar_lea.vmem %s1, 112
  %v375 = vpack.c.bf16 0.0, %v373
  %376 = vst [vmem:[%s374] sm:$0xf] %v375
  %s377 = scalar_lea.vmem %s0, 240
  %v378 = vld [vmem:[%s377] sm:$0xf]
  %v379 = vunpack.c.l.bf16 %v378
  %v380 = vunpack.c.h.bf16 %v378
  %v381 = vlaneseq
  %v382 = vand.u32 %v381, 127
  %vm383 = vcmp.lt.s32.totalorder %v382, 12
  %v384 = vsel %vm383, 0, %v379
  %385 = vrot.lane.b32.xlu0 %v384, 116
  %v386 = vpop.permute.xlu0 %385
  %s387 = scalar_lea.vmem %s1, 240
  %v388 = vpack.c.bf16 0.0, %v386
  %389 = vst [vmem:[%s387] sm:$0xf] %v388
  %s390 = scalar_lea.vmem %s0, 120
  %v391 = vld [vmem:[%s390] sm:$0xf]
  %v392 = vunpack.c.l.bf16 %v391
  %v393 = vunpack.c.h.bf16 %v391
  %v394 = vlaneseq
  %v395 = vand.u32 %v394, 127
  %vm396 = vcmp.lt.s32.totalorder %v395, 12
  %v397 = vsel %vm396, 0, %v392
  %398 = vrot.lane.b32.xlu0 %v397, 116
  %v399 = vpop.permute.xlu0 %398
  %s400 = scalar_lea.vmem %s1, 120
  %v401 = vpack.c.bf16 0.0, %v399
  %402 = vst [vmem:[%s400] sm:$0xf] %v401
  %s403 = scalar_lea.vmem %s0, 248
  %v404 = vld [vmem:[%s403] sm:$0xf]
  %v405 = vunpack.c.l.bf16 %v404
  %v406 = vunpack.c.h.bf16 %v404
  %v407 = vlaneseq
  %v408 = vand.u32 %v407, 127
  %vm409 = vcmp.lt.s32.totalorder %v408, 12
  %v410 = vsel %vm409, 0, %v405
  %411 = vrot.lane.b32.xlu0 %v410, 116
  %v412 = vpop.permute.xlu0 %411
  %s413 = scalar_lea.vmem %s1, 248
  %v414 = vpack.c.bf16 0.0, %v412
  %415 = vst [vmem:[%s413] sm:$0xf] %v414
  %s416 = scalar_lea.vmem %s0, 4
  %v417 = vld [vmem:[%s416] sm:$0xf]
  %v418 = vunpack.c.l.bf16 %v417
  %v419 = vunpack.c.h.bf16 %v417
  %v420 = vlaneseq
  %v421 = vand.u32 %v420, 127
  %vm422 = vcmp.lt.s32.totalorder %v421, 12
  %v423 = vsel %vm422, 0, %v418
  %424 = vrot.lane.b32.xlu0 %v423, 116
  %v425 = vpop.permute.xlu0 %424
  %s426 = scalar_lea.vmem %s1, 4
  %v427 = vpack.c.bf16 0.0, %v425
  %428 = vst [vmem:[%s426] sm:$0xf] %v427
  %s429 = scalar_lea.vmem %s0, 132
  %v430 = vld [vmem:[%s429] sm:$0xf]
  %v431 = vunpack.c.l.bf16 %v430
  %v432 = vunpack.c.h.bf16 %v430
  %v433 = vlaneseq
  %v434 = vand.u32 %v433, 127
  %vm435 = vcmp.lt.s32.totalorder %v434, 12
  %v436 = vsel %vm435, 0, %v431
  %437 = vrot.lane.b32.xlu0 %v436, 116
  %v438 = vpop.permute.xlu0 %437
  %s439 = scalar_lea.vmem %s1, 132
  %v440 = vpack.c.bf16 0.0, %v438
  %441 = vst [vmem:[%s439] sm:$0xf] %v440
  %s442 = scalar_lea.vmem %s0, 12
  %v443 = vld [vmem:[%s442] sm:$0xf]
  %v444 = vunpack.c.l.bf16 %v443
  %v445 = vunpack.c.h.bf16 %v443
  %v446 = vlaneseq
  %v447 = vand.u32 %v446, 127
  %vm448 = vcmp.lt.s32.totalorder %v447, 12
  %v449 = vsel %vm448, 0, %v444
  %450 = vrot.lane.b32.xlu0 %v449, 116
  %v451 = vpop.permute.xlu0 %450
  %s452 = scalar_lea.vmem %s1, 12
  %v453 = vpack.c.bf16 0.0, %v451
  %454 = vst [vmem:[%s452] sm:$0xf] %v453
  %s455 = scalar_lea.vmem %s0, 140
  %v456 = vld [vmem:[%s455] sm:$0xf]
  %v457 = vunpack.c.l.bf16 %v456
  %v458 = vunpack.c.h.bf16 %v456
  %v459 = vlaneseq
  %v460 = vand.u32 %v459, 127
  %vm461 = vcmp.lt.s32.totalorder %v460, 12
  %v462 = vsel %vm461, 0, %v457
  %463 = vrot.lane.b32.xlu0 %v462, 116
  %v464 = vpop.permute.xlu0 %463
  %s465 = scalar_lea.vmem %s1, 140
  %v466 = vpack.c.bf16 0.0, %v464
  %467 = vst [vmem:[%s465] sm:$0xf] %v466
  %s468 = scalar_lea.vmem %s0, 20
  %v469 = vld [vmem:[%s468] sm:$0xf]
  %v470 = vunpack.c.l.bf16 %v469
  %v471 = vunpack.c.h.bf16 %v469
  %v472 = vlaneseq
  %v473 = vand.u32 %v472, 127
  %vm474 = vcmp.lt.s32.totalorder %v473, 12
  %v475 = vsel %vm474, 0, %v470
  %476 = vrot.lane.b32.xlu0 %v475, 116
  %v477 = vpop.permute.xlu0 %476
  %s478 = scalar_lea.vmem %s1, 20
  %v479 = vpack.c.bf16 0.0, %v477
  %480 = vst [vmem:[%s478] sm:$0xf] %v479
  %s481 = scalar_lea.vmem %s0, 148
  %v482 = vld [vmem:[%s481] sm:$0xf]
  %v483 = vunpack.c.l.bf16 %v482
  %v484 = vunpack.c.h.bf16 %v482
  %v485 = vlaneseq
  %v486 = vand.u32 %v485, 127
  %vm487 = vcmp.lt.s32.totalorder %v486, 12
  %v488 = vsel %vm487, 0, %v483
  %489 = vrot.lane.b32.xlu0 %v488, 116
  %v490 = vpop.permute.xlu0 %489
  %s491 = scalar_lea.vmem %s1, 148
  %v492 = vpack.c.bf16 0.0, %v490
  %493 = vst [vmem:[%s491] sm:$0xf] %v492
  %s494 = scalar_lea.vmem %s0, 28
  %v495 = vld [vmem:[%s494] sm:$0xf]
  %v496 = vunpack.c.l.bf16 %v495
  %v497 = vunpack.c.h.bf16 %v495
  %v498 = vlaneseq
  %v499 = vand.u32 %v498, 127
  %vm500 = vcmp.lt.s32.totalorder %v499, 12
  %v501 = vsel %vm500, 0, %v496
  %502 = vrot.lane.b32.xlu0 %v501, 116
  %v503 = vpop.permute.xlu0 %502
  %s504 = scalar_lea.vmem %s1, 28
  %v505 = vpack.c.bf16 0.0, %v503
  %506 = vst [vmem:[%s504] sm:$0xf] %v505
  %s507 = scalar_lea.vmem %s0, 156
  %v508 = vld [vmem:[%s507] sm:$0xf]
  %v509 = vunpack.c.l.bf16 %v508
  %v510 = vunpack.c.h.bf16 %v508
  %v511 = vlaneseq
  %v512 = vand.u32 %v511, 127
  %vm513 = vcmp.lt.s32.totalorder %v512, 12
  %v514 = vsel %vm513, 0, %v509
  %515 = vrot.lane.b32.xlu0 %v514, 116
  %v516 = vpop.permute.xlu0 %515
  %s517 = scalar_lea.vmem %s1, 156
  %v518 = vpack.c.bf16 0.0, %v516
  %519 = vst [vmem:[%s517] sm:$0xf] %v518
  %s520 = scalar_lea.vmem %s0, 36
  %v521 = vld [vmem:[%s520] sm:$0xf]
  %v522 = vunpack.c.l.bf16 %v521
  %v523 = vunpack.c.h.bf16 %v521
  %v524 = vlaneseq
  %v525 = vand.u32 %v524, 127
  %vm526 = vcmp.lt.s32.totalorder %v525, 12
  %v527 = vsel %vm526, 0, %v522
  %528 = vrot.lane.b32.xlu0 %v527, 116
  %v529 = vpop.permute.xlu0 %528
  %s530 = scalar_lea.vmem %s1, 36
  %v531 = vpack.c.bf16 0.0, %v529
  %532 = vst [vmem:[%s530] sm:$0xf] %v531
  %s533 = scalar_lea.vmem %s0, 164
  %v534 = vld [vmem:[%s533] sm:$0xf]
  %v535 = vunpack.c.l.bf16 %v534
  %v536 = vunpack.c.h.bf16 %v534
  %v537 = vlaneseq
  %v538 = vand.u32 %v537, 127
  %vm539 = vcmp.lt.s32.totalorder %v538, 12
  %v540 = vsel %vm539, 0, %v535
  %541 = vrot.lane.b32.xlu0 %v540, 116
  %v542 = vpop.permute.xlu0 %541
  %s543 = scalar_lea.vmem %s1, 164
  %v544 = vpack.c.bf16 0.0, %v542
  %545 = vst [vmem:[%s543] sm:$0xf] %v544
  %s546 = scalar_lea.vmem %s0, 44
  %v547 = vld [vmem:[%s546] sm:$0xf]
  %v548 = vunpack.c.l.bf16 %v547
  %v549 = vunpack.c.h.bf16 %v547
  %v550 = vlaneseq
  %v551 = vand.u32 %v550, 127
  %vm552 = vcmp.lt.s32.totalorder %v551, 12
  %v553 = vsel %vm552, 0, %v548
  %554 = vrot.lane.b32.xlu0 %v553, 116
  %v555 = vpop.permute.xlu0 %554
  %s556 = scalar_lea.vmem %s1, 44
  %v557 = vpack.c.bf16 0.0, %v555
  %558 = vst [vmem:[%s556] sm:$0xf] %v557
  %s559 = scalar_lea.vmem %s0, 172
  %v560 = vld [vmem:[%s559] sm:$0xf]
  %v561 = vunpack.c.l.bf16 %v560
  %v562 = vunpack.c.h.bf16 %v560
  %v563 = vlaneseq
  %v564 = vand.u32 %v563, 127
  %vm565 = vcmp.lt.s32.totalorder %v564, 12
  %v566 = vsel %vm565, 0, %v561
  %567 = vrot.lane.b32.xlu0 %v566, 116
  %v568 = vpop.permute.xlu0 %567
  %s569 = scalar_lea.vmem %s1, 172
  %v570 = vpack.c.bf16 0.0, %v568
  %571 = vst [vmem:[%s569] sm:$0xf] %v570
  %s572 = scalar_lea.vmem %s0, 52
  %v573 = vld [vmem:[%s572] sm:$0xf]
  %v574 = vunpack.c.l.bf16 %v573
  %v575 = vunpack.c.h.bf16 %v573
  %v576 = vlaneseq
  %v577 = vand.u32 %v576, 127
  %vm578 = vcmp.lt.s32.totalorder %v577, 12
  %v579 = vsel %vm578, 0, %v574
  %580 = vrot.lane.b32.xlu0 %v579, 116
  %v581 = vpop.permute.xlu0 %580
  %s582 = scalar_lea.vmem %s1, 52
  %v583 = vpack.c.bf16 0.0, %v581
  %584 = vst [vmem:[%s582] sm:$0xf] %v583
  %s585 = scalar_lea.vmem %s0, 180
  %v586 = vld [vmem:[%s585] sm:$0xf]
  %v587 = vunpack.c.l.bf16 %v586
  %v588 = vunpack.c.h.bf16 %v586
  %v589 = vlaneseq
  %v590 = vand.u32 %v589, 127
  %vm591 = vcmp.lt.s32.totalorder %v590, 12
  %v592 = vsel %vm591, 0, %v587
  %593 = vrot.lane.b32.xlu0 %v592, 116
  %v594 = vpop.permute.xlu0 %593
  %s595 = scalar_lea.vmem %s1, 180
  %v596 = vpack.c.bf16 0.0, %v594
  %597 = vst [vmem:[%s595] sm:$0xf] %v596
  %s598 = scalar_lea.vmem %s0, 60
  %v599 = vld [vmem:[%s598] sm:$0xf]
  %v600 = vunpack.c.l.bf16 %v599
  %v601 = vunpack.c.h.bf16 %v599
  %v602 = vlaneseq
  %v603 = vand.u32 %v602, 127
  %vm604 = vcmp.lt.s32.totalorder %v603, 12
  %v605 = vsel %vm604, 0, %v600
  %606 = vrot.lane.b32.xlu0 %v605, 116
  %v607 = vpop.permute.xlu0 %606
  %s608 = scalar_lea.vmem %s1, 60
  %v609 = vpack.c.bf16 0.0, %v607
  %610 = vst [vmem:[%s608] sm:$0xf] %v609
  %s611 = scalar_lea.vmem %s0, 188
  %v612 = vld [vmem:[%s611] sm:$0xf]
  %v613 = vunpack.c.l.bf16 %v612
  %v614 = vunpack.c.h.bf16 %v612
  %v615 = vlaneseq
  %v616 = vand.u32 %v615, 127
  %vm617 = vcmp.lt.s32.totalorder %v616, 12
  %v618 = vsel %vm617, 0, %v613
  %619 = vrot.lane.b32.xlu0 %v618, 116
  %v620 = vpop.permute.xlu0 %619
  %s621 = scalar_lea.vmem %s1, 188
  %v622 = vpack.c.bf16 0.0, %v620
  %623 = vst [vmem:[%s621] sm:$0xf] %v622
  %s624 = scalar_lea.vmem %s0, 68
  %v625 = vld [vmem:[%s624] sm:$0xf]
  %v626 = vunpack.c.l.bf16 %v625
  %v627 = vunpack.c.h.bf16 %v625
  %v628 = vlaneseq
  %v629 = vand.u32 %v628, 127
  %vm630 = vcmp.lt.s32.totalorder %v629, 12
  %v631 = vsel %vm630, 0, %v626
  %632 = vrot.lane.b32.xlu0 %v631, 116
  %v633 = vpop.permute.xlu0 %632
  %s634 = scalar_lea.vmem %s1, 68
  %v635 = vpack.c.bf16 0.0, %v633
  %636 = vst [vmem:[%s634] sm:$0xf] %v635
  %s637 = scalar_lea.vmem %s0, 196
  %v638 = vld [vmem:[%s637] sm:$0xf]
  %v639 = vunpack.c.l.bf16 %v638
  %v640 = vunpack.c.h.bf16 %v638
  %v641 = vlaneseq
  %v642 = vand.u32 %v641, 127
  %vm643 = vcmp.lt.s32.totalorder %v642, 12
  %v644 = vsel %vm643, 0, %v639
  %645 = vrot.lane.b32.xlu0 %v644, 116
  %v646 = vpop.permute.xlu0 %645
  %s647 = scalar_lea.vmem %s1, 196
  %v648 = vpack.c.bf16 0.0, %v646
  %649 = vst [vmem:[%s647] sm:$0xf] %v648
  %s650 = scalar_lea.vmem %s0, 76
  %v651 = vld [vmem:[%s650] sm:$0xf]
  %v652 = vunpack.c.l.bf16 %v651
  %v653 = vunpack.c.h.bf16 %v651
  %v654 = vlaneseq
  %v655 = vand.u32 %v654, 127
  %vm656 = vcmp.lt.s32.totalorder %v655, 12
  %v657 = vsel %vm656, 0, %v652
  %658 = vrot.lane.b32.xlu0 %v657, 116
  %v659 = vpop.permute.xlu0 %658
  %s660 = scalar_lea.vmem %s1, 76
  %v661 = vpack.c.bf16 0.0, %v659
  %662 = vst [vmem:[%s660] sm:$0xf] %v661
  %s663 = scalar_lea.vmem %s0, 204
  %v664 = vld [vmem:[%s663] sm:$0xf]
  %v665 = vunpack.c.l.bf16 %v664
  %v666 = vunpack.c.h.bf16 %v664
  %v667 = vlaneseq
  %v668 = vand.u32 %v667, 127
  %vm669 = vcmp.lt.s32.totalorder %v668, 12
  %v670 = vsel %vm669, 0, %v665
  %671 = vrot.lane.b32.xlu0 %v670, 116
  %v672 = vpop.permute.xlu0 %671
  %s673 = scalar_lea.vmem %s1, 204
  %v674 = vpack.c.bf16 0.0, %v672
  %675 = vst [vmem:[%s673] sm:$0xf] %v674
  %s676 = scalar_lea.vmem %s0, 84
  %v677 = vld [vmem:[%s676] sm:$0xf]
  %v678 = vunpack.c.l.bf16 %v677
  %v679 = vunpack.c.h.bf16 %v677
  %v680 = vlaneseq
  %v681 = vand.u32 %v680, 127
  %vm682 = vcmp.lt.s32.totalorder %v681, 12
  %v683 = vsel %vm682, 0, %v678
  %684 = vrot.lane.b32.xlu0 %v683, 116
  %v685 = vpop.permute.xlu0 %684
  %s686 = scalar_lea.vmem %s1, 84
  %v687 = vpack.c.bf16 0.0, %v685
  %688 = vst [vmem:[%s686] sm:$0xf] %v687
  %s689 = scalar_lea.vmem %s0, 212
  %v690 = vld [vmem:[%s689] sm:$0xf]
  %v691 = vunpack.c.l.bf16 %v690
  %v692 = vunpack.c.h.bf16 %v690
  %v693 = vlaneseq
  %v694 = vand.u32 %v693, 127
  %vm695 = vcmp.lt.s32.totalorder %v694, 12
  %v696 = vsel %vm695, 0, %v691
  %697 = vrot.lane.b32.xlu0 %v696, 116
  %v698 = vpop.permute.xlu0 %697
  %s699 = scalar_lea.vmem %s1, 212
  %v700 = vpack.c.bf16 0.0, %v698
  %701 = vst [vmem:[%s699] sm:$0xf] %v700
  %s702 = scalar_lea.vmem %s0, 92
  %v703 = vld [vmem:[%s702] sm:$0xf]
  %v704 = vunpack.c.l.bf16 %v703
  %v705 = vunpack.c.h.bf16 %v703
  %v706 = vlaneseq
  %v707 = vand.u32 %v706, 127
  %vm708 = vcmp.lt.s32.totalorder %v707, 12
  %v709 = vsel %vm708, 0, %v704
  %710 = vrot.lane.b32.xlu0 %v709, 116
  %v711 = vpop.permute.xlu0 %710
  %s712 = scalar_lea.vmem %s1, 92
  %v713 = vpack.c.bf16 0.0, %v711
  %714 = vst [vmem:[%s712] sm:$0xf] %v713
  %s715 = scalar_lea.vmem %s0, 220
  %v716 = vld [vmem:[%s715] sm:$0xf]
  %v717 = vunpack.c.l.bf16 %v716
  %v718 = vunpack.c.h.bf16 %v716
  %v719 = vlaneseq
  %v720 = vand.u32 %v719, 127
  %vm721 = vcmp.lt.s32.totalorder %v720, 12
  %v722 = vsel %vm721, 0, %v717
  %723 = vrot.lane.b32.xlu0 %v722, 116
  %v724 = vpop.permute.xlu0 %723
  %s725 = scalar_lea.vmem %s1, 220
  %v726 = vpack.c.bf16 0.0, %v724
  %727 = vst [vmem:[%s725] sm:$0xf] %v726
  %s728 = scalar_lea.vmem %s0, 100
  %v729 = vld [vmem:[%s728] sm:$0xf]
  %v730 = vunpack.c.l.bf16 %v729
  %v731 = vunpack.c.h.bf16 %v729
  %v732 = vlaneseq
  %v733 = vand.u32 %v732, 127
  %vm734 = vcmp.lt.s32.totalorder %v733, 12
  %v735 = vsel %vm734, 0, %v730
  %736 = vrot.lane.b32.xlu0 %v735, 116
  %v737 = vpop.permute.xlu0 %736
  %s738 = scalar_lea.vmem %s1, 100
  %v739 = vpack.c.bf16 0.0, %v737
  %740 = vst [vmem:[%s738] sm:$0xf] %v739
  %s741 = scalar_lea.vmem %s0, 228
  %v742 = vld [vmem:[%s741] sm:$0xf]
  %v743 = vunpack.c.l.bf16 %v742
  %v744 = vunpack.c.h.bf16 %v742
  %v745 = vlaneseq
  %v746 = vand.u32 %v745, 127
  %vm747 = vcmp.lt.s32.totalorder %v746, 12
  %v748 = vsel %vm747, 0, %v743
  %749 = vrot.lane.b32.xlu0 %v748, 116
  %v750 = vpop.permute.xlu0 %749
  %s751 = scalar_lea.vmem %s1, 228
  %v752 = vpack.c.bf16 0.0, %v750
  %753 = vst [vmem:[%s751] sm:$0xf] %v752
  %s754 = scalar_lea.vmem %s0, 108
  %v755 = vld [vmem:[%s754] sm:$0xf]
  %v756 = vunpack.c.l.bf16 %v755
  %v757 = vunpack.c.h.bf16 %v755
  %v758 = vlaneseq
  %v759 = vand.u32 %v758, 127
  %vm760 = vcmp.lt.s32.totalorder %v759, 12
  %v761 = vsel %vm760, 0, %v756
  %762 = vrot.lane.b32.xlu0 %v761, 116
  %v763 = vpop.permute.xlu0 %762
  %s764 = scalar_lea.vmem %s1, 108
  %v765 = vpack.c.bf16 0.0, %v763
  %766 = vst [vmem:[%s764] sm:$0xf] %v765
  %s767 = scalar_lea.vmem %s0, 236
  %v768 = vld [vmem:[%s767] sm:$0xf]
  %v769 = vunpack.c.l.bf16 %v768
  %v770 = vunpack.c.h.bf16 %v768
  %v771 = vlaneseq
  %v772 = vand.u32 %v771, 127
  %vm773 = vcmp.lt.s32.totalorder %v772, 12
  %v774 = vsel %vm773, 0, %v769
  %775 = vrot.lane.b32.xlu0 %v774, 116
  %v776 = vpop.permute.xlu0 %775
  %s777 = scalar_lea.vmem %s1, 236
  %v778 = vpack.c.bf16 0.0, %v776
  %779 = vst [vmem:[%s777] sm:$0xf] %v778
  %s780 = scalar_lea.vmem %s0, 116
  %v781 = vld [vmem:[%s780] sm:$0xf]
  %v782 = vunpack.c.l.bf16 %v781
  %v783 = vunpack.c.h.bf16 %v781
  %v784 = vlaneseq
  %v785 = vand.u32 %v784, 127
  %vm786 = vcmp.lt.s32.totalorder %v785, 12
  %v787 = vsel %vm786, 0, %v782
  %788 = vrot.lane.b32.xlu0 %v787, 116
  %v789 = vpop.permute.xlu0 %788
  %s790 = scalar_lea.vmem %s1, 116
  %v791 = vpack.c.bf16 0.0, %v789
  %792 = vst [vmem:[%s790] sm:$0xf] %v791
  %s793 = scalar_lea.vmem %s0, 244
  %v794 = vld [vmem:[%s793] sm:$0xf]
  %v795 = vunpack.c.l.bf16 %v794
  %v796 = vunpack.c.h.bf16 %v794
  %v797 = vlaneseq
  %v798 = vand.u32 %v797, 127
  %vm799 = vcmp.lt.s32.totalorder %v798, 12
  %v800 = vsel %vm799, 0, %v795
  %801 = vrot.lane.b32.xlu0 %v800, 116
  %v802 = vpop.permute.xlu0 %801
  %s803 = scalar_lea.vmem %s1, 244
  %v804 = vpack.c.bf16 0.0, %v802
  %805 = vst [vmem:[%s803] sm:$0xf] %v804
  %s806 = scalar_lea.vmem %s0, 124
  %v807 = vld [vmem:[%s806] sm:$0xf]
  %v808 = vunpack.c.l.bf16 %v807
  %v809 = vunpack.c.h.bf16 %v807
  %v810 = vlaneseq
  %v811 = vand.u32 %v810, 127
  %vm812 = vcmp.lt.s32.totalorder %v811, 12
  %v813 = vsel %vm812, 0, %v808
  %814 = vrot.lane.b32.xlu0 %v813, 116
  %v815 = vpop.permute.xlu0 %814
  %s816 = scalar_lea.vmem %s1, 124
  %v817 = vpack.c.bf16 0.0, %v815
  %818 = vst [vmem:[%s816] sm:$0xf] %v817
  %s819 = scalar_lea.vmem %s0, 252
  %v820 = vld [vmem:[%s819] sm:$0xf]
  %v821 = vunpack.c.l.bf16 %v820
  %v822 = vunpack.c.h.bf16 %v820
  %v823 = vlaneseq
  %v824 = vand.u32 %v823, 127
  %vm825 = vcmp.lt.s32.totalorder %v824, 12
  %v826 = vsel %vm825, 0, %v821
  %827 = vrot.lane.b32.xlu0 %v826, 116
  %v828 = vpop.permute.xlu0 %827
  %s829 = scalar_lea.vmem %s1, 252
  %v830 = vpack.c.bf16 0.0, %v828
  %831 = vst [vmem:[%s829] sm:$0xf] %v830

// kernel: unet_hdc_forward.19
$region0: #{unet_hdc_forward.19}
  #allocation0 [shape = 'u32[]', space=smem, size = 0x4, offset = 0x4, fixed_abs, tag = 'smem constant byte address 0x4 - core index']
  #allocation1 [shape = 'u32[72,128]{1,0:T(1,128)}', space=vmem, size = 0x9000, scoped, tag = 'internal scratch']
  %s0 = inlined_call_operand.vmem [shape: bf16[512,16], index: 0, kind: input, shape index: {}]
  %s1 = inlined_call_operand.vmem [shape: bf16[16,128], index: 1, kind: input, shape index: {}]
  %s2 = inlined_call_operand.vmem [shape: f32[1,128], index: 2, kind: input, shape index: {}]
  %s3 = inlined_call_operand.vmem [shape: f32[512,128], index: 3, kind: output, shape index: {}]
  %s4 = sld [smem:[#allocation0]]
  $region45: #{unet_hdc_forward.19} parent=0
    _
  %s6 = ssub.s32 1, %s4
  %s7 = scalar_select 0, %s6, %s4
  loop: start=0, step=1, limit=4
  $region2: #{unet_hdc_forward.19} parent=0 // loop_pre_header
    _
  $region3: #{unet_hdc_forward.19} parent=0 // loop_header
    %s9 = sphi 0, %s13
    %p10 = scmp.ge.s32.totalorder %s9, 4
    %s19 = sphi 0, %s21
    %s22 = sphi 0, %s19
    %s23 = sphi 0, %s22
    %s39 = sphi 0, %s23
    %s43 = sphi 0, %s43
    %s45 = sphi 0, %s43
    %s46 = sphi 0, %s45
    %s60 = sphi 0, %s46
    %s64 = sphi 0, %s64
    %s66 = sphi 0, %s64
    %s67 = sphi 0, %s66
    %s81 = sphi 0, %s67
    %s87 = sphi 0, %s89
    %s90 = sphi 0, %s87
    %s91 = sphi 0, %s90
    %s107 = sphi 0, %s91
  $region4: #{unet_hdc_forward.19} parent=0 // loop_header_branch
    %12 = sbr.rel (%p10) target = $region8
  $region5: #{unet_hdc_forward.19} parent=0 // loop_body
    %s14 = ssub.s32 %s9, 1
    %s15 = ssub.s32 %s9, 2
    %s16 = sadd.s32 %s9, 1
    %s17 = ssub.s32 %s9, %s16
    %p18 = scmp.eq.s32.totalorder %s17, 0
    %s20 = sadd.s32 %s19, 1
    %s21 = scalar_select %p18, %s19, %s20
    %p24 = pneg %p18
    %p25 = scmp.eq.s32.totalorder %s9, 1
    %p26 = por %p24, %p25
    %p27 = scmp.ne.s32.totalorder %s19, %s22
    %p28 = scmp.eq.s32.totalorder %s9, 0
    %p29 = por %p27, %p28
    %p30 = scmp.ne.s32.totalorder %s19, %s22
    %p31 = scmp.eq.s32.totalorder %s14, 1
    %p32 = por %p30, %p31
    %p33 = scmp.ne.s32.totalorder %s22, %s23
    %p34 = scmp.eq.s32.totalorder %s14, 0
    %p35 = por %p33, %p34
    %p36 = scmp.ne.s32.totalorder %s22, %s23
    %p37 = scmp.eq.s32.totalorder %s15, 1
    %p38 = por %p36, %p37
    %p40 = scmp.ne.s32.totalorder %s23, %s39
    %p41 = scmp.eq.s32.totalorder %s15, 0
    %p42 = por %p40, %p41
    %s44 = sadd.s32 %s43, 1
    %p47 = scmp.eq.s32.totalorder %s9, 1
    %p48 = scmp.ne.s32.totalorder %s43, %s45
    %p49 = scmp.eq.s32.totalorder %s9, 0
    %p50 = por %p48, %p49
    %p51 = scmp.ne.s32.totalorder %s43, %s45
    %p52 = scmp.eq.s32.totalorder %s14, 1
    %p53 = por %p51, %p52
    %p54 = scmp.ne.s32.totalorder %s45, %s46
    %p55 = scmp.eq.s32.totalorder %s14, 0
    %p56 = por %p54, %p55
    %p57 = scmp.ne.s32.totalorder %s45, %s46
    %p58 = scmp.eq.s32.totalorder %s15, 1
    %p59 = por %p57, %p58
    %p61 = scmp.ne.s32.totalorder %s46, %s60
    %p62 = scmp.eq.s32.totalorder %s15, 0
    %p63 = por %p61, %p62
    %s65 = sadd.s32 %s64, 1
    %p68 = scmp.eq.s32.totalorder %s9, 1
    %p69 = scmp.ne.s32.totalorder %s64, %s66
    %p70 = scmp.eq.s32.totalorder %s9, 0
    %p71 = por %p69, %p70
    %p72 = scmp.ne.s32.totalorder %s64, %s66
    %p73 = scmp.eq.s32.totalorder %s14, 1
    %p74 = por %p72, %p73
    %p75 = scmp.ne.s32.totalorder %s66, %s67
    %p76 = scmp.eq.s32.totalorder %s14, 0
    %p77 = por %p75, %p76
    %p78 = scmp.ne.s32.totalorder %s66, %s67
    %p79 = scmp.eq.s32.totalorder %s15, 1
    %p80 = por %p78, %p79
    %p82 = scmp.ne.s32.totalorder %s67, %s81
    %p83 = scmp.eq.s32.totalorder %s15, 0
    %p84 = por %p82, %p83
    %s85 = ssub.s32 %s9, %s16
    %p86 = scmp.eq.s32.totalorder %s85, 0
    %s88 = sadd.s32 %s87, 1
    %s89 = scalar_select %p86, %s87, %s88
    %p92 = pneg %p86
    %p93 = scmp.eq.s32.totalorder %s9, 1
    %p94 = por %p92, %p93
    %p95 = scmp.ne.s32.totalorder %s87, %s90
    %p96 = scmp.eq.s32.totalorder %s9, 0
    %p97 = por %p95, %p96
    %p98 = scmp.ne.s32.totalorder %s87, %s90
    %p99 = scmp.eq.s32.totalorder %s14, 1
    %p100 = por %p98, %p99
    %p101 = scmp.ne.s32.totalorder %s90, %s91
    %p102 = scmp.eq.s32.totalorder %s14, 0
    %p103 = por %p101, %p102
    %p104 = scmp.ne.s32.totalorder %s90, %s91
    %p105 = scmp.eq.s32.totalorder %s15, 1
    %p106 = por %p104, %p105
    %p108 = scmp.ne.s32.totalorder %s91, %s107
    %p109 = scmp.eq.s32.totalorder %s15, 0
    %p110 = por %p108, %p109
    %p111 = scmp.le.s32.totalorder 1, %s9
    %p112 = scmp.lt.s32.totalorder %s9, 3
    %p113 = pnand %p111, %p112
    %p114 = pneg %p113
    // Predicated region
    $region9: #{unet_hdc_forward.19} parent=5 // pred_check
      _
    $region10: #{unet_hdc_forward.19} parent=5 // pred_check_branch
      %116 = sbr.rel (%p113) target = $region12
    $region11: #{unet_hdc_forward.19} parent=5 // pred_region
      %s117 = ssub.s32 %s9, 1
      // Predicated region
      $region13: #{unet_hdc_forward.19} parent=11 // pred_check
        %p118 = pneg %p56
      $region14: #{unet_hdc_forward.19} parent=11 // pred_check_branch
        %120 = sbr.rel (%p118) target = $region16
      $region15: #{unet_hdc_forward.19} parent=11 // pred_region
        _
      $region16: #{unet_hdc_forward.19} parent=11 // pred_fallthru
        _
      // Predicated region
      $region17: #{unet_hdc_forward.19} parent=11 // pred_check
        %p121 = pneg %p77
      $region18: #{unet_hdc_forward.19} parent=11 // pred_check_branch
        %123 = sbr.rel (%p121) target = $region20
      $region19: #{unet_hdc_forward.19} parent=11 // pred_region
        _
      $region20: #{unet_hdc_forward.19} parent=11 // pred_fallthru
        _
    $region12: #{unet_hdc_forward.19} parent=5 // pred_fallthru
      _
    %p124 = scmp.lt.s32.totalorder %s9, 2
    // Predicated region
    $region21: #{unet_hdc_forward.19} parent=5 // pred_check
      %p125 = pneg %p124
    $region22: #{unet_hdc_forward.19} parent=5 // pred_check_branch
      %127 = sbr.rel (%p125) target = $region24
    $region23: #{unet_hdc_forward.19} parent=5 // pred_region
      // Predicated region
      $region25: #{unet_hdc_forward.19} parent=23 // pred_check
        %p128 = pneg %p29
      $region26: #{unet_hdc_forward.19} parent=23 // pred_check_branch
        %130 = sbr.rel (%p128) target = $region28
      $region27: #{unet_hdc_forward.19} parent=23 // pred_region
        %s131 = smul.u32 32, %s9
        %p132 = scmp.lt.s32.totalorder %s131, 63
        %s133 = scalar_select %p132, %s131, 63
        %s134 = smul.addr %s133, 4
        %s135 = scalar_lea.vmem %s0, %s134
        %s136 = smul.u32 32, %s9
      $region28: #{unet_hdc_forward.19} parent=23 // pred_fallthru
        _
    $region24: #{unet_hdc_forward.19} parent=5 // pred_fallthru
      _
    %p137 = scmp.le.s32.totalorder 1, %s9
    %p138 = scmp.lt.s32.totalorder %s9, 3
    %p139 = pnand %p137, %p138
    %p140 = pneg %p139
    // Predicated region
    $region29: #{unet_hdc_forward.19} parent=5 // pred_check
      _
    $region30: #{unet_hdc_forward.19} parent=5 // pred_check_branch
      %142 = sbr.rel (%p139) target = $region32
    $region31: #{unet_hdc_forward.19} parent=5 // pred_region
      %s143 = ssub.s32 %s9, 1
      %s144 = smul.u32 32, %s14
      %p145 = scmp.lt.s32.totalorder %s144, 63
      %s146 = scalar_select %p145, %s144, 63
      %s147 = smul.addr %s146, 4
      %s148 = scalar_lea.vmem %s0, %s147
      %p149 = pneg %p35
      %p150 = pneg %p32
      %p151 = pneg %p56
      %p152 = pneg %p53
      %p153 = pneg %p77
      %p154 = pneg %p74
      %p155 = pneg %p103
      %p156 = pneg %p100
      %s157 = smul.u32 32, %s14
      %p158 = scmp.lt.s32.totalorder %s157, 63
      %s159 = scalar_select %p158, %s157, 63
      %s160 = smul.addr %s159, 8
      %s161 = scalar_lea.vmem %s3, %s160
      %s162 = smul.u32 32, %s14
      %p163 = scmp.lt.s32.totalorder %s162, 63
      %s164 = scalar_select %p163, %s162, 63
      %s165 = smul.addr %s164, 4
      %s166 = scalar_lea.vmem %s0, %s165
      %s167 = smul.u32 32, %s14
      %s168 = smul.u32 32, %s14
      %p169 = scmp.lt.s32.totalorder %s168, 63
      %s170 = scalar_select %p169, %s168, 63
      %s171 = smul.addr %s170, 8
      %s172 = scalar_lea.vmem %s3, %s171
      %s173 = smul.u32 32, %s14
      %v175 = vld [vmem:[%s166] sm:$0xf]
      %v176 = vld [vmem:[%s166 + $0x4] sm:$0xf]
      %v177 = vld [vmem:[%s166 + $0x8] sm:$0xf]
      %v178 = vld [vmem:[%s166 + $0xc] sm:$0xf]
      %v179 = vld [vmem:[%s166 + $0x10] sm:$0xf]
      %v180 = vld [vmem:[%s166 + $0x14] sm:$0xf]
      %v181 = vld [vmem:[%s166 + $0x18] sm:$0xf]
      %v182 = vld [vmem:[%s166 + $0x1c] sm:$0xf]
      %v183 = vld [vmem:[%s166 + $0x20] sm:$0xf]
      %v184 = vld [vmem:[%s166 + $0x24] sm:$0xf]
      %v185 = vld [vmem:[%s166 + $0x28] sm:$0xf]
      %v186 = vld [vmem:[%s166 + $0x2c] sm:$0xf]
      %v187 = vld [vmem:[%s166 + $0x30] sm:$0xf]
      %v188 = vld [vmem:[%s166 + $0x34] sm:$0xf]
      %v189 = vld [vmem:[%s166 + $0x38] sm:$0xf]
      %v190 = vld [vmem:[%s166 + $0x3c] sm:$0xf]
      %v191 = vld [vmem:[%s166 + $0x40] sm:$0xf]
      %v192 = vld [vmem:[%s166 + $0x44] sm:$0xf]
      %v193 = vld [vmem:[%s166 + $0x48] sm:$0xf]
      %v194 = vld [vmem:[%s166 + $0x4c] sm:$0xf]
      %v195 = vld [vmem:[%s166 + $0x50] sm:$0xf]
      %v196 = vld [vmem:[%s166 + $0x54] sm:$0xf]
      %v197 = vld [vmem:[%s166 + $0x58] sm:$0xf]
      %v198 = vld [vmem:[%s166 + $0x5c] sm:$0xf]
      %v199 = vld [vmem:[%s166 + $0x60] sm:$0xf]
      %v200 = vld [vmem:[%s166 + $0x64] sm:$0xf]
      %v201 = vld [vmem:[%s166 + $0x68] sm:$0xf]
      %v202 = vld [vmem:[%s166 + $0x6c] sm:$0xf]
      %v203 = vld [vmem:[%s166 + $0x70] sm:$0xf]
      %v204 = vld [vmem:[%s166 + $0x74] sm:$0xf]
      %v205 = vld [vmem:[%s166 + $0x78] sm:$0xf]
      %v206 = vld [vmem:[%s166 + $0x7c] sm:$0xf]
      %v207 = vld [vmem:[%s1] sm:$0xf]
      %v208 = vld [vmem:[%s1 + $0x4] sm:$0xf]
      %v209 = vld [vmem:[%s2] sm:$0x1]
      %v211 = vperm.slane %v209, 0
      %v245 = vunpack.c.l.b16 %v175
      %v246 = vunpack.c.l.b16 %v176
      %v247 = vunpack.c.l.b16 %v177
      %v248 = vunpack.c.l.b16 %v178
      %v249 = vunpack.c.l.b16 %v179
      %v250 = vunpack.c.l.b16 %v180
      %v251 = vunpack.c.l.b16 %v181
      %v252 = vunpack.c.l.b16 %v182
      %v253 = vunpack.c.l.b16 %v183
      %v254 = vunpack.c.l.b16 %v184
      %v255 = vunpack.c.l.b16 %v185
      %v256 = vunpack.c.l.b16 %v186
      %v257 = vunpack.c.l.b16 %v187
      %v258 = vunpack.c.l.b16 %v188
      %v259 = vunpack.c.l.b16 %v189
      %v260 = vunpack.c.l.b16 %v190
      %v261 = vunpack.c.l.b16 %v191
      %v262 = vunpack.c.l.b16 %v192
      %v263 = vunpack.c.l.b16 %v193
      %v264 = vunpack.c.l.b16 %v194
      %v265 = vunpack.c.l.b16 %v195
      %v266 = vunpack.c.l.b16 %v196
      %v267 = vunpack.c.l.b16 %v197
      %v268 = vunpack.c.l.b16 %v198
      %v269 = vunpack.c.l.b16 %v199
      %v270 = vunpack.c.l.b16 %v200
      %v271 = vunpack.c.l.b16 %v201
      %v272 = vunpack.c.l.b16 %v202
      %v273 = vunpack.c.l.b16 %v203
      %v274 = vunpack.c.l.b16 %v204
      %v275 = vunpack.c.l.b16 %v205
      %v276 = vunpack.c.l.b16 %v206
      %v277 = vpack.c.b16 %v246, %v245
      %v278 = vpack.c.b16 %v248, %v247
      %v279 = vpack.c.b16 %v250, %v249
      %v280 = vpack.c.b16 %v252, %v251
      %v281 = vpack.c.b16 %v254, %v253
      %v282 = vpack.c.b16 %v256, %v255
      %v283 = vpack.c.b16 %v258, %v257
      %v284 = vpack.c.b16 %v260, %v259
      %v285 = vpack.c.b16 %v262, %v261
      %v286 = vpack.c.b16 %v264, %v263
      %v287 = vpack.c.b16 %v266, %v265
      %v288 = vpack.c.b16 %v268, %v267
      %v289 = vpack.c.b16 %v270, %v269
      %v290 = vpack.c.b16 %v272, %v271
      %v291 = vpack.c.b16 %v274, %v273
      %v292 = vpack.c.b16 %v276, %v275
      %v295 = vunpack.c.l.b16 %v207
      %v296 = vunpack.c.l.b16 %v208
      %v297 = vpack.c.b16 %v296, %v295
      %vm299 = vcmask 130048
      %v301 = vsel %vm299, %v277, 0
      %v304 = vsel %vm299, %v278, 0
      %v307 = vsel %vm299, %v279, 0
      %v310 = vsel %vm299, %v280, 0
      %v313 = vsel %vm299, %v281, 0
      %v316 = vsel %vm299, %v282, 0
      %v319 = vsel %vm299, %v283, 0
      %v322 = vsel %vm299, %v284, 0
      %v325 = vsel %vm299, %v285, 0
      %v328 = vsel %vm299, %v286, 0
      %v331 = vsel %vm299, %v287, 0
      %v334 = vsel %vm299, %v288, 0
      %v337 = vsel %vm299, %v289, 0
      %v340 = vsel %vm299, %v290, 0
      %v343 = vsel %vm299, %v291, 0
      %v346 = vsel %vm299, %v292, 0
      %348 = vmatpush.bf16.msra.mxu0 0
      %349 = vmatpush.bf16.msra.mxu0 0
      %350 = vmatpush.bf16.msra.mxu0 0
      %351 = vmatpush.bf16.msra.mxu0 0
      %352 = vmatpush.bf16.msra.mxu0 0
      %353 = vmatpush.bf16.msra.mxu0 0
      %354 = vmatpush.bf16.msra.mxu0 0
      %355 = vmatpush.bf16.msra.mxu0 %v297
      %356 = vmatmul.bf16.gmra.mxu0 %v301
      %v357 = vpop.f32.mrf.mxu0
      %v358 = vadd.f32 %v211, %v357
      %v359 = vpop.f32.mrf.mxu0
      %v360 = vadd.f32 %v211, %v359
      %361 = vmatmul.bf16.gmra.mxu0 %v304
      %v362 = vpop.f32.mrf.mxu0
      %v363 = vadd.f32 %v211, %v362
      %v364 = vpop.f32.mrf.mxu0
      %v365 = vadd.f32 %v211, %v364
      %366 = vmatmul.bf16.gmra.mxu0 %v307
      %v367 = vpop.f32.mrf.mxu0
      %v368 = vadd.f32 %v211, %v367
      %v369 = vpop.f32.mrf.mxu0
      %v370 = vadd.f32 %v211, %v369
      %371 = vmatmul.bf16.gmra.mxu0 %v310
      %v372 = vpop.f32.mrf.mxu0
      %v373 = vadd.f32 %v211, %v372
      %v374 = vpop.f32.mrf.mxu0
      %v375 = vadd.f32 %v211, %v374
      %376 = vmatmul.bf16.gmra.mxu0 %v313
      %v377 = vpop.f32.mrf.mxu0
      %v378 = vadd.f32 %v211, %v377
      %v379 = vpop.f32.mrf.mxu0
      %v380 = vadd.f32 %v211, %v379
      %381 = vmatmul.bf16.gmra.mxu0 %v316
      %v382 = vpop.f32.mrf.mxu0
      %v383 = vadd.f32 %v211, %v382
      %v384 = vpop.f32.mrf.mxu0
      %v385 = vadd.f32 %v211, %v384
      %386 = vmatmul.bf16.gmra.mxu0 %v319
      %v387 = vpop.f32.mrf.mxu0
      %v388 = vadd.f32 %v211, %v387
      %v389 = vpop.f32.mrf.mxu0
      %v390 = vadd.f32 %v211, %v389
      %391 = vmatmul.bf16.gmra.mxu0 %v322
      %v392 = vpop.f32.mrf.mxu0
      %v393 = vadd.f32 %v211, %v392
      %v394 = vpop.f32.mrf.mxu0
      %v395 = vadd.f32 %v211, %v394
      %396 = vmatmul.bf16.gmra.mxu0 %v325
      %v397 = vpop.f32.mrf.mxu0
      %v398 = vadd.f32 %v211, %v397
      %v399 = vpop.f32.mrf.mxu0
      %v400 = vadd.f32 %v211, %v399
      %401 = vmatmul.bf16.gmra.mxu0 %v328
      %v402 = vpop.f32.mrf.mxu0
      %v403 = vadd.f32 %v211, %v402
      %v404 = vpop.f32.mrf.mxu0
      %v405 = vadd.f32 %v211, %v404
      %406 = vmatmul.bf16.gmra.mxu0 %v331
      %v407 = vpop.f32.mrf.mxu0
      %v408 = vadd.f32 %v211, %v407
      %v409 = vpop.f32.mrf.mxu0
      %v410 = vadd.f32 %v211, %v409
      %411 = vmatmul.bf16.gmra.mxu0 %v334
      %v412 = vpop.f32.mrf.mxu0
      %v413 = vadd.f32 %v211, %v412
      %v414 = vpop.f32.mrf.mxu0
      %v415 = vadd.f32 %v211, %v414
      %416 = vmatmul.bf16.gmra.mxu0 %v337
      %v417 = vpop.f32.mrf.mxu0
      %v418 = vadd.f32 %v211, %v417
      %v419 = vpop.f32.mrf.mxu0
      %v420 = vadd.f32 %v211, %v419
      %421 = vmatmul.bf16.gmra.mxu0 %v340
      %v422 = vpop.f32.mrf.mxu0
      %v423 = vadd.f32 %v211, %v422
      %v424 = vpop.f32.mrf.mxu0
      %v425 = vadd.f32 %v211, %v424
      %426 = vmatmul.bf16.gmra.mxu0 %v343
      %v427 = vpop.f32.mrf.mxu0
      %v428 = vadd.f32 %v211, %v427
      %v429 = vpop.f32.mrf.mxu0
      %v430 = vadd.f32 %v211, %v429
      %431 = vmatmul.bf16.gmra.mxu0 %v346
      %v432 = vpop.f32.mrf.mxu0
      %v433 = vadd.f32 %v211, %v432
      %v434 = vpop.f32.mrf.mxu0
      %v435 = vadd.f32 %v211, %v434
      %436 = vdwg.mxu0
      %v437 = vmax.f32 %v358, 0.0
      %v438 = vmax.f32 %v360, 0.0
      %v439 = vmax.f32 %v363, 0.0
      %v440 = vmax.f32 %v365, 0.0
      %v441 = vmax.f32 %v368, 0.0
      %v442 = vmax.f32 %v370, 0.0
      %v443 = vmax.f32 %v373, 0.0
      %v444 = vmax.f32 %v375, 0.0
      %v445 = vmax.f32 %v378, 0.0
      %v446 = vmax.f32 %v380, 0.0
      %v447 = vmax.f32 %v383, 0.0
      %v448 = vmax.f32 %v385, 0.0
      %v449 = vmax.f32 %v388, 0.0
      %v450 = vmax.f32 %v390, 0.0
      %v451 = vmax.f32 %v393, 0.0
      %v452 = vmax.f32 %v395, 0.0
      %v453 = vmax.f32 %v398, 0.0
      %v454 = vmax.f32 %v400, 0.0
      %v455 = vmax.f32 %v403, 0.0
      %v456 = vmax.f32 %v405, 0.0
      %v457 = vmax.f32 %v408, 0.0
      %v458 = vmax.f32 %v410, 0.0
      %v459 = vmax.f32 %v413, 0.0
      %v460 = vmax.f32 %v415, 0.0
      %v461 = vmax.f32 %v418, 0.0
      %v462 = vmax.f32 %v420, 0.0
      %v463 = vmax.f32 %v423, 0.0
      %v464 = vmax.f32 %v425, 0.0
      %v465 = vmax.f32 %v428, 0.0
      %v466 = vmax.f32 %v430, 0.0
      %v467 = vmax.f32 %v433, 0.0
      %v468 = vmax.f32 %v435, 0.0
      %469 = vst [vmem:[%s172] sm:$0xff] %v437
      %470 = vst [vmem:[%s172 + $0x8] sm:$0xff] %v438
      %471 = vst [vmem:[%s172 + $0x10] sm:$0xff] %v439
      %472 = vst [vmem:[%s172 + $0x18] sm:$0xff] %v440
      %473 = vst [vmem:[%s172 + $0x20] sm:$0xff] %v441
      %474 = vst [vmem:[%s172 + $0x28] sm:$0xff] %v442
      %475 = vst [vmem:[%s172 + $0x30] sm:$0xff] %v443
      %476 = vst [vmem:[%s172 + $0x38] sm:$0xff] %v444
      %477 = vst [vmem:[%s172 + $0x40] sm:$0xff] %v445
      %478 = vst [vmem:[%s172 + $0x48] sm:$0xff] %v446
      %479 = vst [vmem:[%s172 + $0x50] sm:$0xff] %v447
      %480 = vst [vmem:[%s172 + $0x58] sm:$0xff] %v448
      %481 = vst [vmem:[%s172 + $0x60] sm:$0xff] %v449
      %482 = vst [vmem:[%s172 + $0x68] sm:$0xff] %v450
      %483 = vst [vmem:[%s172 + $0x70] sm:$0xff] %v451
      %484 = vst [vmem:[%s172 + $0x78] sm:$0xff] %v452
      %485 = vst [vmem:[%s172 + $0x80] sm:$0xff] %v453
      %486 = vst [vmem:[%s172 + $0x88] sm:$0xff] %v454
      %487 = vst [vmem:[%s172 + $0x90] sm:$0xff] %v455
      %488 = vst [vmem:[%s172 + $0x98] sm:$0xff] %v456
      %489 = vst [vmem:[%s172 + $0xa0] sm:$0xff] %v457
      %490 = vst [vmem:[%s172 + $0xa8] sm:$0xff] %v458
      %491 = vst [vmem:[%s172 + $0xb0] sm:$0xff] %v459
      %492 = vst [vmem:[%s172 + $0xb8] sm:$0xff] %v460
      %493 = vst [vmem:[%s172 + $0xc0] sm:$0xff] %v461
      %494 = vst [vmem:[%s172 + $0xc8] sm:$0xff] %v462
      %495 = vst [vmem:[%s172 + $0xd0] sm:$0xff] %v463
      %496 = vst [vmem:[%s172 + $0xd8] sm:$0xff] %v464
      %497 = vst [vmem:[%s172 + $0xe0] sm:$0xff] %v465
      %498 = vst [vmem:[%s172 + $0xe8] sm:$0xff] %v466
      %499 = vst [vmem:[%s172 + $0xf0] sm:$0xff] %v467
      %500 = vst [vmem:[%s172 + $0xf8] sm:$0xff] %v468
      %s501 = smul.u32 32, %s14
      %p502 = scmp.lt.s32.totalorder %s501, 63
      %s503 = scalar_select %p502, %s501, 63
      %s504 = smul.addr %s503, 8
      %s505 = scalar_lea.vmem %s3, %s504
      // Predicated region
      $region33: #{unet_hdc_forward.19} parent=31 // pred_check
        %p506 = pneg %p100
      $region34: #{unet_hdc_forward.19} parent=31 // pred_check_branch
        %508 = sbr.rel (%p506) target = $region36
      $region35: #{unet_hdc_forward.19} parent=31 // pred_region
        %s509 = smul.u32 32, %s14
      $region36: #{unet_hdc_forward.19} parent=31 // pred_fallthru
        _
    $region32: #{unet_hdc_forward.19} parent=5 // pred_fallthru
      _
    %p510 = scmp.le.s32.totalorder 2, %s9
    // Predicated region
    $region37: #{unet_hdc_forward.19} parent=5 // pred_check
      %p511 = pneg %p510
    $region38: #{unet_hdc_forward.19} parent=5 // pred_check_branch
      %513 = sbr.rel (%p511) target = $region40
    $region39: #{unet_hdc_forward.19} parent=5 // pred_region
      %s514 = ssub.s32 %s9, 2
      // Predicated region
      $region41: #{unet_hdc_forward.19} parent=39 // pred_check
        %p515 = pneg %p106
      $region42: #{unet_hdc_forward.19} parent=39 // pred_check_branch
        %517 = sbr.rel (%p515) target = $region44
      $region43: #{unet_hdc_forward.19} parent=39 // pred_region
        %s518 = smul.u32 32, %s15
        %p519 = scmp.lt.s32.totalorder %s518, 63
        %s520 = scalar_select %p519, %s518, 63
        %s521 = smul.addr %s520, 8
        %s522 = scalar_lea.vmem %s3, %s521
      $region44: #{unet_hdc_forward.19} parent=39 // pred_fallthru
        _
    $region40: #{unet_hdc_forward.19} parent=5 // pred_fallthru
      _
  $region6: #{unet_hdc_forward.19} parent=0 // loop_footer
    %s13 = sadd.s32 1, %s9
  $region7: #{unet_hdc_forward.19} parent=0 // loop_footer_branch
    %8 = sbr.rel target = $region3
  $region8: #{unet_hdc_forward.19} parent=0 // loop_exit
    _

// kernel: unet_hdc_forward.25
$region0: #{unet_hdc_forward.25}
  #allocation0 [shape = 'u32[]', space=smem, size = 0x4, offset = 0x4, fixed_abs, tag = 'smem constant byte address 0x4 - core index']
  #allocation1 [shape = 'u32[72,128]{1,0:T(1,128)}', space=vmem, size = 0x9000, scoped, tag = 'internal scratch']
  %s0 = inlined_call_operand.vmem [shape: bf16[512,6], index: 0, kind: input, shape index: {}]
  %s1 = inlined_call_operand.vmem [shape: bf16[6,128], index: 1, kind: input, shape index: {}]
  %s2 = inlined_call_operand.vmem [shape: f32[1,128], index: 2, kind: input, shape index: {}]
  %s3 = inlined_call_operand.vmem [shape: f32[512,128], index: 3, kind: output, shape index: {}]
  %s4 = sld [smem:[#allocation0]]
  $region45: #{unet_hdc_forward.25} parent=0
    _
  %s6 = ssub.s32 1, %s4
  %s7 = scalar_select 0, %s6, %s4
  loop: start=0, step=1, limit=4
  $region2: #{unet_hdc_forward.25} parent=0 // loop_pre_header
    _
  $region3: #{unet_hdc_forward.25} parent=0 // loop_header
    %s9 = sphi 0, %s13
    %p10 = scmp.ge.s32.totalorder %s9, 4
    %s19 = sphi 0, %s21
    %s22 = sphi 0, %s19
    %s23 = sphi 0, %s22
    %s39 = sphi 0, %s23
    %s43 = sphi 0, %s43
    %s45 = sphi 0, %s43
    %s46 = sphi 0, %s45
    %s60 = sphi 0, %s46
    %s64 = sphi 0, %s64
    %s66 = sphi 0, %s64
    %s67 = sphi 0, %s66
    %s81 = sphi 0, %s67
    %s87 = sphi 0, %s89
    %s90 = sphi 0, %s87
    %s91 = sphi 0, %s90
    %s107 = sphi 0, %s91
  $region4: #{unet_hdc_forward.25} parent=0 // loop_header_branch
    %12 = sbr.rel (%p10) target = $region8
  $region5: #{unet_hdc_forward.25} parent=0 // loop_body
    %s14 = ssub.s32 %s9, 1
    %s15 = ssub.s32 %s9, 2
    %s16 = sadd.s32 %s9, 1
    %s17 = ssub.s32 %s9, %s16
    %p18 = scmp.eq.s32.totalorder %s17, 0
    %s20 = sadd.s32 %s19, 1
    %s21 = scalar_select %p18, %s19, %s20
    %p24 = pneg %p18
    %p25 = scmp.eq.s32.totalorder %s9, 1
    %p26 = por %p24, %p25
    %p27 = scmp.ne.s32.totalorder %s19, %s22
    %p28 = scmp.eq.s32.totalorder %s9, 0
    %p29 = por %p27, %p28
    %p30 = scmp.ne.s32.totalorder %s19, %s22
    %p31 = scmp.eq.s32.totalorder %s14, 1
    %p32 = por %p30, %p31
    %p33 = scmp.ne.s32.totalorder %s22, %s23
    %p34 = scmp.eq.s32.totalorder %s14, 0
    %p35 = por %p33, %p34
    %p36 = scmp.ne.s32.totalorder %s22, %s23
    %p37 = scmp.eq.s32.totalorder %s15, 1
    %p38 = por %p36, %p37
    %p40 = scmp.ne.s32.totalorder %s23, %s39
    %p41 = scmp.eq.s32.totalorder %s15, 0
    %p42 = por %p40, %p41
    %s44 = sadd.s32 %s43, 1
    %p47 = scmp.eq.s32.totalorder %s9, 1
    %p48 = scmp.ne.s32.totalorder %s43, %s45
    %p49 = scmp.eq.s32.totalorder %s9, 0
    %p50 = por %p48, %p49
    %p51 = scmp.ne.s32.totalorder %s43, %s45
    %p52 = scmp.eq.s32.totalorder %s14, 1
    %p53 = por %p51, %p52
    %p54 = scmp.ne.s32.totalorder %s45, %s46
    %p55 = scmp.eq.s32.totalorder %s14, 0
    %p56 = por %p54, %p55
    %p57 = scmp.ne.s32.totalorder %s45, %s46
    %p58 = scmp.eq.s32.totalorder %s15, 1
    %p59 = por %p57, %p58
    %p61 = scmp.ne.s32.totalorder %s46, %s60
    %p62 = scmp.eq.s32.totalorder %s15, 0
    %p63 = por %p61, %p62
    %s65 = sadd.s32 %s64, 1
    %p68 = scmp.eq.s32.totalorder %s9, 1
    %p69 = scmp.ne.s32.totalorder %s64, %s66
    %p70 = scmp.eq.s32.totalorder %s9, 0
    %p71 = por %p69, %p70
    %p72 = scmp.ne.s32.totalorder %s64, %s66
    %p73 = scmp.eq.s32.totalorder %s14, 1
    %p74 = por %p72, %p73
    %p75 = scmp.ne.s32.totalorder %s66, %s67
    %p76 = scmp.eq.s32.totalorder %s14, 0
    %p77 = por %p75, %p76
    %p78 = scmp.ne.s32.totalorder %s66, %s67
    %p79 = scmp.eq.s32.totalorder %s15, 1
    %p80 = por %p78, %p79
    %p82 = scmp.ne.s32.totalorder %s67, %s81
    %p83 = scmp.eq.s32.totalorder %s15, 0
    %p84 = por %p82, %p83
    %s85 = ssub.s32 %s9, %s16
    %p86 = scmp.eq.s32.totalorder %s85, 0
    %s88 = sadd.s32 %s87, 1
    %s89 = scalar_select %p86, %s87, %s88
    %p92 = pneg %p86
    %p93 = scmp.eq.s32.totalorder %s9, 1
    %p94 = por %p92, %p93
    %p95 = scmp.ne.s32.totalorder %s87, %s90
    %p96 = scmp.eq.s32.totalorder %s9, 0
    %p97 = por %p95, %p96
    %p98 = scmp.ne.s32.totalorder %s87, %s90
    %p99 = scmp.eq.s32.totalorder %s14, 1
    %p100 = por %p98, %p99
    %p101 = scmp.ne.s32.totalorder %s90, %s91
    %p102 = scmp.eq.s32.totalorder %s14, 0
    %p103 = por %p101, %p102
    %p104 = scmp.ne.s32.totalorder %s90, %s91
    %p105 = scmp.eq.s32.totalorder %s15, 1
    %p106 = por %p104, %p105
    %p108 = scmp.ne.s32.totalorder %s91, %s107
    %p109 = scmp.eq.s32.totalorder %s15, 0
    %p110 = por %p108, %p109
    %p111 = scmp.le.s32.totalorder 1, %s9
    %p112 = scmp.lt.s32.totalorder %s9, 3
    %p113 = pnand %p111, %p112
    %p114 = pneg %p113
    // Predicated region
    $region9: #{unet_hdc_forward.25} parent=5 // pred_check
      _
    $region10: #{unet_hdc_forward.25} parent=5 // pred_check_branch
      %116 = sbr.rel (%p113) target = $region12
    $region11: #{unet_hdc_forward.25} parent=5 // pred_region
      %s117 = ssub.s32 %s9, 1
      // Predicated region
      $region13: #{unet_hdc_forward.25} parent=11 // pred_check
        %p118 = pneg %p56
      $region14: #{unet_hdc_forward.25} parent=11 // pred_check_branch
        %120 = sbr.rel (%p118) target = $region16
      $region15: #{unet_hdc_forward.25} parent=11 // pred_region
        _
      $region16: #{unet_hdc_forward.25} parent=11 // pred_fallthru
        _
      // Predicated region
      $region17: #{unet_hdc_forward.25} parent=11 // pred_check
        %p121 = pneg %p77
      $region18: #{unet_hdc_forward.25} parent=11 // pred_check_branch
        %123 = sbr.rel (%p121) target = $region20
      $region19: #{unet_hdc_forward.25} parent=11 // pred_region
        _
      $region20: #{unet_hdc_forward.25} parent=11 // pred_fallthru
        _
    $region12: #{unet_hdc_forward.25} parent=5 // pred_fallthru
      _
    %p124 = scmp.lt.s32.totalorder %s9, 2
    // Predicated region
    $region21: #{unet_hdc_forward.25} parent=5 // pred_check
      %p125 = pneg %p124
    $region22: #{unet_hdc_forward.25} parent=5 // pred_check_branch
      %127 = sbr.rel (%p125) target = $region24
    $region23: #{unet_hdc_forward.25} parent=5 // pred_region
      // Predicated region
      $region25: #{unet_hdc_forward.25} parent=23 // pred_check
        %p128 = pneg %p29
      $region26: #{unet_hdc_forward.25} parent=23 // pred_check_branch
        %130 = sbr.rel (%p128) target = $region28
      $region27: #{unet_hdc_forward.25} parent=23 // pred_region
        %s131 = smul.u32 32, %s9
        %p132 = scmp.lt.s32.totalorder %s131, 63
        %s133 = scalar_select %p132, %s131, 63
        %s134 = smul.addr %s133, 4
        %s135 = scalar_lea.vmem %s0, %s134
        %s136 = smul.u32 32, %s9
      $region28: #{unet_hdc_forward.25} parent=23 // pred_fallthru
        _
    $region24: #{unet_hdc_forward.25} parent=5 // pred_fallthru
      _
    %p137 = scmp.le.s32.totalorder 1, %s9
    %p138 = scmp.lt.s32.totalorder %s9, 3
    %p139 = pnand %p137, %p138
    %p140 = pneg %p139
    // Predicated region
    $region29: #{unet_hdc_forward.25} parent=5 // pred_check
      _
    $region30: #{unet_hdc_forward.25} parent=5 // pred_check_branch
      %142 = sbr.rel (%p139) target = $region32
    $region31: #{unet_hdc_forward.25} parent=5 // pred_region
      %s143 = ssub.s32 %s9, 1
      %s144 = smul.u32 32, %s14
      %p145 = scmp.lt.s32.totalorder %s144, 63
      %s146 = scalar_select %p145, %s144, 63
      %s147 = smul.addr %s146, 4
      %s148 = scalar_lea.vmem %s0, %s147
      %p149 = pneg %p35
      %p150 = pneg %p32
      %p151 = pneg %p56
      %p152 = pneg %p53
      %p153 = pneg %p77
      %p154 = pneg %p74
      %p155 = pneg %p103
      %p156 = pneg %p100
      %s157 = smul.u32 32, %s14
      %p158 = scmp.lt.s32.totalorder %s157, 63
      %s159 = scalar_select %p158, %s157, 63
      %s160 = smul.addr %s159, 8
      %s161 = scalar_lea.vmem %s3, %s160
      %s162 = smul.u32 32, %s14
      %p163 = scmp.lt.s32.totalorder %s162, 63
      %s164 = scalar_select %p163, %s162, 63
      %s165 = smul.addr %s164, 4
      %s166 = scalar_lea.vmem %s0, %s165
      %s167 = smul.u32 32, %s14
      %s168 = smul.u32 32, %s14
      %p169 = scmp.lt.s32.totalorder %s168, 63
      %s170 = scalar_select %p169, %s168, 63
      %s171 = smul.addr %s170, 8
      %s172 = scalar_lea.vmem %s3, %s171
      %s173 = smul.u32 32, %s14
      %v175 = vld [vmem:[%s166] sm:$0xf]
      %v176 = vld [vmem:[%s166 + $0x4] sm:$0xf]
      %v177 = vld [vmem:[%s166 + $0x8] sm:$0xf]
      %v178 = vld [vmem:[%s166 + $0xc] sm:$0xf]
      %v179 = vld [vmem:[%s166 + $0x10] sm:$0xf]
      %v180 = vld [vmem:[%s166 + $0x14] sm:$0xf]
      %v181 = vld [vmem:[%s166 + $0x18] sm:$0xf]
      %v182 = vld [vmem:[%s166 + $0x1c] sm:$0xf]
      %v183 = vld [vmem:[%s166 + $0x20] sm:$0xf]
      %v184 = vld [vmem:[%s166 + $0x24] sm:$0xf]
      %v185 = vld [vmem:[%s166 + $0x28] sm:$0xf]
      %v186 = vld [vmem:[%s166 + $0x2c] sm:$0xf]
      %v187 = vld [vmem:[%s166 + $0x30] sm:$0xf]
      %v188 = vld [vmem:[%s166 + $0x34] sm:$0xf]
      %v189 = vld [vmem:[%s166 + $0x38] sm:$0xf]
      %v190 = vld [vmem:[%s166 + $0x3c] sm:$0xf]
      %v191 = vld [vmem:[%s166 + $0x40] sm:$0xf]
      %v192 = vld [vmem:[%s166 + $0x44] sm:$0xf]
      %v193 = vld [vmem:[%s166 + $0x48] sm:$0xf]
      %v194 = vld [vmem:[%s166 + $0x4c] sm:$0xf]
      %v195 = vld [vmem:[%s166 + $0x50] sm:$0xf]
      %v196 = vld [vmem:[%s166 + $0x54] sm:$0xf]
      %v197 = vld [vmem:[%s166 + $0x58] sm:$0xf]
      %v198 = vld [vmem:[%s166 + $0x5c] sm:$0xf]
      %v199 = vld [vmem:[%s166 + $0x60] sm:$0xf]
      %v200 = vld [vmem:[%s166 + $0x64] sm:$0xf]
      %v201 = vld [vmem:[%s166 + $0x68] sm:$0xf]
      %v202 = vld [vmem:[%s166 + $0x6c] sm:$0xf]
      %v203 = vld [vmem:[%s166 + $0x70] sm:$0xf]
      %v204 = vld [vmem:[%s166 + $0x74] sm:$0xf]
      %v205 = vld [vmem:[%s166 + $0x78] sm:$0xf]
      %v206 = vld [vmem:[%s166 + $0x7c] sm:$0xf]
      %v207 = vld [vmem:[%s1] sm:$0x7]
      %v208 = vld [vmem:[%s2] sm:$0x1]
      %v210 = vperm.slane %v208, 0
      %v244 = vunpack.c.l.b16 %v175
      %v245 = vunpack.c.l.b16 %v176
      %v246 = vunpack.c.l.b16 %v177
      %v247 = vunpack.c.l.b16 %v178
      %v248 = vunpack.c.l.b16 %v179
      %v249 = vunpack.c.l.b16 %v180
      %v250 = vunpack.c.l.b16 %v181
      %v251 = vunpack.c.l.b16 %v182
      %v252 = vunpack.c.l.b16 %v183
      %v253 = vunpack.c.l.b16 %v184
      %v254 = vunpack.c.l.b16 %v185
      %v255 = vunpack.c.l.b16 %v186
      %v256 = vunpack.c.l.b16 %v187
      %v257 = vunpack.c.l.b16 %v188
      %v258 = vunpack.c.l.b16 %v189
      %v259 = vunpack.c.l.b16 %v190
      %v260 = vunpack.c.l.b16 %v191
      %v261 = vunpack.c.l.b16 %v192
      %v262 = vunpack.c.l.b16 %v193
      %v263 = vunpack.c.l.b16 %v194
      %v264 = vunpack.c.l.b16 %v195
      %v265 = vunpack.c.l.b16 %v196
      %v266 = vunpack.c.l.b16 %v197
      %v267 = vunpack.c.l.b16 %v198
      %v268 = vunpack.c.l.b16 %v199
      %v269 = vunpack.c.l.b16 %v200
      %v270 = vunpack.c.l.b16 %v201
      %v271 = vunpack.c.l.b16 %v202
      %v272 = vunpack.c.l.b16 %v203
      %v273 = vunpack.c.l.b16 %v204
      %v274 = vunpack.c.l.b16 %v205
      %v275 = vunpack.c.l.b16 %v206
      %v276 = vpack.c.b16 %v245, %v244
      %v277 = vpack.c.b16 %v247, %v246
      %v278 = vpack.c.b16 %v249, %v248
      %v279 = vpack.c.b16 %v251, %v250
      %v280 = vpack.c.b16 %v253, %v252
      %v281 = vpack.c.b16 %v255, %v254
      %v282 = vpack.c.b16 %v257, %v256
      %v283 = vpack.c.b16 %v259, %v258
      %v284 = vpack.c.b16 %v261, %v260
      %v285 = vpack.c.b16 %v263, %v262
      %v286 = vpack.c.b16 %v265, %v264
      %v287 = vpack.c.b16 %v267, %v266
      %v288 = vpack.c.b16 %v269, %v268
      %v289 = vpack.c.b16 %v271, %v270
      %v290 = vpack.c.b16 %v273, %v272
      %v291 = vpack.c.b16 %v275, %v274
      %vm292 = vcmask 48128
      %v294 = vsel %vm292, %v276, 0
      %v297 = vsel %vm292, %v277, 0
      %v300 = vsel %vm292, %v278, 0
      %v303 = vsel %vm292, %v279, 0
      %v306 = vsel %vm292, %v280, 0
      %v309 = vsel %vm292, %v281, 0
      %v312 = vsel %vm292, %v282, 0
      %v315 = vsel %vm292, %v283, 0
      %v318 = vsel %vm292, %v284, 0
      %v321 = vsel %vm292, %v285, 0
      %v324 = vsel %vm292, %v286, 0
      %v327 = vsel %vm292, %v287, 0
      %v330 = vsel %vm292, %v288, 0
      %v333 = vsel %vm292, %v289, 0
      %v336 = vsel %vm292, %v290, 0
      %v339 = vsel %vm292, %v291, 0
      %vm341 = vcmask 1042432
      %v343 = vsel %vm341, %v207, 0
      %345 = vmatpush.bf16.msra.mxu0 0
      %346 = vmatpush.bf16.msra.mxu0 0
      %347 = vmatpush.bf16.msra.mxu0 0
      %348 = vmatpush.bf16.msra.mxu0 0
      %349 = vmatpush.bf16.msra.mxu0 0
      %350 = vmatpush.bf16.msra.mxu0 0
      %351 = vmatpush.bf16.msra.mxu0 0
      %352 = vmatpush.bf16.msra.mxu0 %v343
      %353 = vmatmul.bf16.gmra.mxu0 %v294
      %v354 = vpop.f32.mrf.mxu0
      %v355 = vadd.f32 %v210, %v354
      %v356 = vpop.f32.mrf.mxu0
      %v357 = vadd.f32 %v210, %v356
      %358 = vmatmul.bf16.gmra.mxu0 %v297
      %v359 = vpop.f32.mrf.mxu0
      %v360 = vadd.f32 %v210, %v359
      %v361 = vpop.f32.mrf.mxu0
      %v362 = vadd.f32 %v210, %v361
      %363 = vmatmul.bf16.gmra.mxu0 %v300
      %v364 = vpop.f32.mrf.mxu0
      %v365 = vadd.f32 %v210, %v364
      %v366 = vpop.f32.mrf.mxu0
      %v367 = vadd.f32 %v210, %v366
      %368 = vmatmul.bf16.gmra.mxu0 %v303
      %v369 = vpop.f32.mrf.mxu0
      %v370 = vadd.f32 %v210, %v369
      %v371 = vpop.f32.mrf.mxu0
      %v372 = vadd.f32 %v210, %v371
      %373 = vmatmul.bf16.gmra.mxu0 %v306
      %v374 = vpop.f32.mrf.mxu0
      %v375 = vadd.f32 %v210, %v374
      %v376 = vpop.f32.mrf.mxu0
      %v377 = vadd.f32 %v210, %v376
      %378 = vmatmul.bf16.gmra.mxu0 %v309
      %v379 = vpop.f32.mrf.mxu0
      %v380 = vadd.f32 %v210, %v379
      %v381 = vpop.f32.mrf.mxu0
      %v382 = vadd.f32 %v210, %v381
      %383 = vmatmul.bf16.gmra.mxu0 %v312
      %v384 = vpop.f32.mrf.mxu0
      %v385 = vadd.f32 %v210, %v384
      %v386 = vpop.f32.mrf.mxu0
      %v387 = vadd.f32 %v210, %v386
      %388 = vmatmul.bf16.gmra.mxu0 %v315
      %v389 = vpop.f32.mrf.mxu0
      %v390 = vadd.f32 %v210, %v389
      %v391 = vpop.f32.mrf.mxu0
      %v392 = vadd.f32 %v210, %v391
      %393 = vmatmul.bf16.gmra.mxu0 %v318
      %v394 = vpop.f32.mrf.mxu0
      %v395 = vadd.f32 %v210, %v394
      %v396 = vpop.f32.mrf.mxu0
      %v397 = vadd.f32 %v210, %v396
      %398 = vmatmul.bf16.gmra.mxu0 %v321
      %v399 = vpop.f32.mrf.mxu0
      %v400 = vadd.f32 %v210, %v399
      %v401 = vpop.f32.mrf.mxu0
      %v402 = vadd.f32 %v210, %v401
      %403 = vmatmul.bf16.gmra.mxu0 %v324
      %v404 = vpop.f32.mrf.mxu0
      %v405 = vadd.f32 %v210, %v404
      %v406 = vpop.f32.mrf.mxu0
      %v407 = vadd.f32 %v210, %v406
      %408 = vmatmul.bf16.gmra.mxu0 %v327
      %v409 = vpop.f32.mrf.mxu0
      %v410 = vadd.f32 %v210, %v409
      %v411 = vpop.f32.mrf.mxu0
      %v412 = vadd.f32 %v210, %v411
      %413 = vmatmul.bf16.gmra.mxu0 %v330
      %v414 = vpop.f32.mrf.mxu0
      %v415 = vadd.f32 %v210, %v414
      %v416 = vpop.f32.mrf.mxu0
      %v417 = vadd.f32 %v210, %v416
      %418 = vmatmul.bf16.gmra.mxu0 %v333
      %v419 = vpop.f32.mrf.mxu0
      %v420 = vadd.f32 %v210, %v419
      %v421 = vpop.f32.mrf.mxu0
      %v422 = vadd.f32 %v210, %v421
      %423 = vmatmul.bf16.gmra.mxu0 %v336
      %v424 = vpop.f32.mrf.mxu0
      %v425 = vadd.f32 %v210, %v424
      %v426 = vpop.f32.mrf.mxu0
      %v427 = vadd.f32 %v210, %v426
      %428 = vmatmul.bf16.gmra.mxu0 %v339
      %v429 = vpop.f32.mrf.mxu0
      %v430 = vadd.f32 %v210, %v429
      %v431 = vpop.f32.mrf.mxu0
      %v432 = vadd.f32 %v210, %v431
      %433 = vdwg.mxu0
      %v434 = vmax.f32 %v355, 0.0
      %v435 = vmax.f32 %v357, 0.0
      %v436 = vmax.f32 %v360, 0.0
      %v437 = vmax.f32 %v362, 0.0
      %v438 = vmax.f32 %v365, 0.0
      %v439 = vmax.f32 %v367, 0.0
      %v440 = vmax.f32 %v370, 0.0
      %v441 = vmax.f32 %v372, 0.0
      %v442 = vmax.f32 %v375, 0.0
      %v443 = vmax.f32 %v377, 0.0
      %v444 = vmax.f32 %v380, 0.0
      %v445 = vmax.f32 %v382, 0.0
      %v446 = vmax.f32 %v385, 0.0
      %v447 = vmax.f32 %v387, 0.0
      %v448 = vmax.f32 %v390, 0.0
      %v449 = vmax.f32 %v392, 0.0
      %v450 = vmax.f32 %v395, 0.0
      %v451 = vmax.f32 %v397, 0.0
      %v452 = vmax.f32 %v400, 0.0
      %v453 = vmax.f32 %v402, 0.0
      %v454 = vmax.f32 %v405, 0.0
      %v455 = vmax.f32 %v407, 0.0
      %v456 = vmax.f32 %v410, 0.0
      %v457 = vmax.f32 %v412, 0.0
      %v458 = vmax.f32 %v415, 0.0
      %v459 = vmax.f32 %v417, 0.0
      %v460 = vmax.f32 %v420, 0.0
      %v461 = vmax.f32 %v422, 0.0
      %v462 = vmax.f32 %v425, 0.0
      %v463 = vmax.f32 %v427, 0.0
      %v464 = vmax.f32 %v430, 0.0
      %v465 = vmax.f32 %v432, 0.0
      %466 = vst [vmem:[%s172] sm:$0xff] %v434
      %467 = vst [vmem:[%s172 + $0x8] sm:$0xff] %v435
      %468 = vst [vmem:[%s172 + $0x10] sm:$0xff] %v436
      %469 = vst [vmem:[%s172 + $0x18] sm:$0xff] %v437
      %470 = vst [vmem:[%s172 + $0x20] sm:$0xff] %v438
      %471 = vst [vmem:[%s172 + $0x28] sm:$0xff] %v439
      %472 = vst [vmem:[%s172 + $0x30] sm:$0xff] %v440
      %473 = vst [vmem:[%s172 + $0x38] sm:$0xff] %v441
      %474 = vst [vmem:[%s172 + $0x40] sm:$0xff] %v442
      %475 = vst [vmem:[%s172 + $0x48] sm:$0xff] %v443
      %476 = vst [vmem:[%s172 + $0x50] sm:$0xff] %v444
      %477 = vst [vmem:[%s172 + $0x58] sm:$0xff] %v445
      %478 = vst [vmem:[%s172 + $0x60] sm:$0xff] %v446
      %479 = vst [vmem:[%s172 + $0x68] sm:$0xff] %v447
      %480 = vst [vmem:[%s172 + $0x70] sm:$0xff] %v448
      %481 = vst [vmem:[%s172 + $0x78] sm:$0xff] %v449
      %482 = vst [vmem:[%s172 + $0x80] sm:$0xff] %v450
      %483 = vst [vmem:[%s172 + $0x88] sm:$0xff] %v451
      %484 = vst [vmem:[%s172 + $0x90] sm:$0xff] %v452
      %485 = vst [vmem:[%s172 + $0x98] sm:$0xff] %v453
      %486 = vst [vmem:[%s172 + $0xa0] sm:$0xff] %v454
      %487 = vst [vmem:[%s172 + $0xa8] sm:$0xff] %v455
      %488 = vst [vmem:[%s172 + $0xb0] sm:$0xff] %v456
      %489 = vst [vmem:[%s172 + $0xb8] sm:$0xff] %v457
      %490 = vst [vmem:[%s172 + $0xc0] sm:$0xff] %v458
      %491 = vst [vmem:[%s172 + $0xc8] sm:$0xff] %v459
      %492 = vst [vmem:[%s172 + $0xd0] sm:$0xff] %v460
      %493 = vst [vmem:[%s172 + $0xd8] sm:$0xff] %v461
      %494 = vst [vmem:[%s172 + $0xe0] sm:$0xff] %v462
      %495 = vst [vmem:[%s172 + $0xe8] sm:$0xff] %v463
      %496 = vst [vmem:[%s172 + $0xf0] sm:$0xff] %v464
      %497 = vst [vmem:[%s172 + $0xf8] sm:$0xff] %v465
      %s498 = smul.u32 32, %s14
      %p499 = scmp.lt.s32.totalorder %s498, 63
      %s500 = scalar_select %p499, %s498, 63
      %s501 = smul.addr %s500, 8
      %s502 = scalar_lea.vmem %s3, %s501
      // Predicated region
      $region33: #{unet_hdc_forward.25} parent=31 // pred_check
        %p503 = pneg %p100
      $region34: #{unet_hdc_forward.25} parent=31 // pred_check_branch
        %505 = sbr.rel (%p503) target = $region36
      $region35: #{unet_hdc_forward.25} parent=31 // pred_region
        %s506 = smul.u32 32, %s14
      $region36: #{unet_hdc_forward.25} parent=31 // pred_fallthru
        _
    $region32: #{unet_hdc_forward.25} parent=5 // pred_fallthru
      _
    %p507 = scmp.le.s32.totalorder 2, %s9
    // Predicated region
    $region37: #{unet_hdc_forward.25} parent=5 // pred_check
      %p508 = pneg %p507
    $region38: #{unet_hdc_forward.25} parent=5 // pred_check_branch
      %510 = sbr.rel (%p508) target = $region40
    $region39: #{unet_hdc_forward.25} parent=5 // pred_region
      %s511 = ssub.s32 %s9, 2
      // Predicated region
      $region41: #{unet_hdc_forward.25} parent=39 // pred_check
        %p512 = pneg %p106
      $region42: #{unet_hdc_forward.25} parent=39 // pred_check_branch
        %514 = sbr.rel (%p512) target = $region44
      $region43: #{unet_hdc_forward.25} parent=39 // pred_region
        %s515 = smul.u32 32, %s15
        %p516 = scmp.lt.s32.totalorder %s515, 63
        %s517 = scalar_select %p516, %s515, 63
        %s518 = smul.addr %s517, 8
        %s519 = scalar_lea.vmem %s3, %s518
      $region44: #{unet_hdc_forward.25} parent=39 // pred_fallthru
        _
    $region40: #{unet_hdc_forward.25} parent=5 // pred_fallthru
      _
  $region6: #{unet_hdc_forward.25} parent=0 // loop_footer
    %s13 = sadd.s32 1, %s9
  $region7: #{unet_hdc_forward.25} parent=0 // loop_footer_branch
    %8 = sbr.rel target = $region3
  $region8: #{unet_hdc_forward.25} parent=0 // loop_exit
    _

// kernel: unet_hdc_forward.26
$region0: #{unet_hdc_forward.26}
  #allocation0 [shape = 'u32[]', space=smem, size = 0x4, offset = 0x4, fixed_abs, tag = 'smem constant byte address 0x4 - core index']
  #allocation1 [shape = 'u32[72,128]{1,0:T(1,128)}', space=vmem, size = 0x9000, scoped, tag = 'internal scratch']
  %s0 = inlined_call_operand.vmem [shape: bf16[512,9], index: 0, kind: input, shape index: {}]
  %s1 = inlined_call_operand.vmem [shape: bf16[9,128], index: 1, kind: input, shape index: {}]
  %s2 = inlined_call_operand.vmem [shape: f32[1,128], index: 2, kind: input, shape index: {}]
  %s3 = inlined_call_operand.vmem [shape: f32[512,128], index: 3, kind: output, shape index: {}]
  %s4 = sld [smem:[#allocation0]]
  $region45: #{unet_hdc_forward.26} parent=0
    _
  %s6 = ssub.s32 1, %s4
  %s7 = scalar_select 0, %s6, %s4
  loop: start=0, step=1, limit=4
  $region2: #{unet_hdc_forward.26} parent=0 // loop_pre_header
    _
  $region3: #{unet_hdc_forward.26} parent=0 // loop_header
    %s9 = sphi 0, %s13
    %p10 = scmp.ge.s32.totalorder %s9, 4
    %s19 = sphi 0, %s21
    %s22 = sphi 0, %s19
    %s23 = sphi 0, %s22
    %s39 = sphi 0, %s23
    %s43 = sphi 0, %s43
    %s45 = sphi 0, %s43
    %s46 = sphi 0, %s45
    %s60 = sphi 0, %s46
    %s64 = sphi 0, %s64
    %s66 = sphi 0, %s64
    %s67 = sphi 0, %s66
    %s81 = sphi 0, %s67
    %s87 = sphi 0, %s89
    %s90 = sphi 0, %s87
    %s91 = sphi 0, %s90
    %s107 = sphi 0, %s91
  $region4: #{unet_hdc_forward.26} parent=0 // loop_header_branch
    %12 = sbr.rel (%p10) target = $region8
  $region5: #{unet_hdc_forward.26} parent=0 // loop_body
    %s14 = ssub.s32 %s9, 1
    %s15 = ssub.s32 %s9, 2
    %s16 = sadd.s32 %s9, 1
    %s17 = ssub.s32 %s9, %s16
    %p18 = scmp.eq.s32.totalorder %s17, 0
    %s20 = sadd.s32 %s19, 1
    %s21 = scalar_select %p18, %s19, %s20
    %p24 = pneg %p18
    %p25 = scmp.eq.s32.totalorder %s9, 1
    %p26 = por %p24, %p25
    %p27 = scmp.ne.s32.totalorder %s19, %s22
    %p28 = scmp.eq.s32.totalorder %s9, 0
    %p29 = por %p27, %p28
    %p30 = scmp.ne.s32.totalorder %s19, %s22
    %p31 = scmp.eq.s32.totalorder %s14, 1
    %p32 = por %p30, %p31
    %p33 = scmp.ne.s32.totalorder %s22, %s23
    %p34 = scmp.eq.s32.totalorder %s14, 0
    %p35 = por %p33, %p34
    %p36 = scmp.ne.s32.totalorder %s22, %s23
    %p37 = scmp.eq.s32.totalorder %s15, 1
    %p38 = por %p36, %p37
    %p40 = scmp.ne.s32.totalorder %s23, %s39
    %p41 = scmp.eq.s32.totalorder %s15, 0
    %p42 = por %p40, %p41
    %s44 = sadd.s32 %s43, 1
    %p47 = scmp.eq.s32.totalorder %s9, 1
    %p48 = scmp.ne.s32.totalorder %s43, %s45
    %p49 = scmp.eq.s32.totalorder %s9, 0
    %p50 = por %p48, %p49
    %p51 = scmp.ne.s32.totalorder %s43, %s45
    %p52 = scmp.eq.s32.totalorder %s14, 1
    %p53 = por %p51, %p52
    %p54 = scmp.ne.s32.totalorder %s45, %s46
    %p55 = scmp.eq.s32.totalorder %s14, 0
    %p56 = por %p54, %p55
    %p57 = scmp.ne.s32.totalorder %s45, %s46
    %p58 = scmp.eq.s32.totalorder %s15, 1
    %p59 = por %p57, %p58
    %p61 = scmp.ne.s32.totalorder %s46, %s60
    %p62 = scmp.eq.s32.totalorder %s15, 0
    %p63 = por %p61, %p62
    %s65 = sadd.s32 %s64, 1
    %p68 = scmp.eq.s32.totalorder %s9, 1
    %p69 = scmp.ne.s32.totalorder %s64, %s66
    %p70 = scmp.eq.s32.totalorder %s9, 0
    %p71 = por %p69, %p70
    %p72 = scmp.ne.s32.totalorder %s64, %s66
    %p73 = scmp.eq.s32.totalorder %s14, 1
    %p74 = por %p72, %p73
    %p75 = scmp.ne.s32.totalorder %s66, %s67
    %p76 = scmp.eq.s32.totalorder %s14, 0
    %p77 = por %p75, %p76
    %p78 = scmp.ne.s32.totalorder %s66, %s67
    %p79 = scmp.eq.s32.totalorder %s15, 1
    %p80 = por %p78, %p79
    %p82 = scmp.ne.s32.totalorder %s67, %s81
    %p83 = scmp.eq.s32.totalorder %s15, 0
    %p84 = por %p82, %p83
    %s85 = ssub.s32 %s9, %s16
    %p86 = scmp.eq.s32.totalorder %s85, 0
    %s88 = sadd.s32 %s87, 1
    %s89 = scalar_select %p86, %s87, %s88
    %p92 = pneg %p86
    %p93 = scmp.eq.s32.totalorder %s9, 1
    %p94 = por %p92, %p93
    %p95 = scmp.ne.s32.totalorder %s87, %s90
    %p96 = scmp.eq.s32.totalorder %s9, 0
    %p97 = por %p95, %p96
    %p98 = scmp.ne.s32.totalorder %s87, %s90
    %p99 = scmp.eq.s32.totalorder %s14, 1
    %p100 = por %p98, %p99
    %p101 = scmp.ne.s32.totalorder %s90, %s91
    %p102 = scmp.eq.s32.totalorder %s14, 0
    %p103 = por %p101, %p102
    %p104 = scmp.ne.s32.totalorder %s90, %s91
    %p105 = scmp.eq.s32.totalorder %s15, 1
    %p106 = por %p104, %p105
    %p108 = scmp.ne.s32.totalorder %s91, %s107
    %p109 = scmp.eq.s32.totalorder %s15, 0
    %p110 = por %p108, %p109
    %p111 = scmp.le.s32.totalorder 1, %s9
    %p112 = scmp.lt.s32.totalorder %s9, 3
    %p113 = pnand %p111, %p112
    %p114 = pneg %p113
    // Predicated region
    $region9: #{unet_hdc_forward.26} parent=5 // pred_check
      _
    $region10: #{unet_hdc_forward.26} parent=5 // pred_check_branch
      %116 = sbr.rel (%p113) target = $region12
    $region11: #{unet_hdc_forward.26} parent=5 // pred_region
      %s117 = ssub.s32 %s9, 1
      // Predicated region
      $region13: #{unet_hdc_forward.26} parent=11 // pred_check
        %p118 = pneg %p56
      $region14: #{unet_hdc_forward.26} parent=11 // pred_check_branch
        %120 = sbr.rel (%p118) target = $region16
      $region15: #{unet_hdc_forward.26} parent=11 // pred_region
        _
      $region16: #{unet_hdc_forward.26} parent=11 // pred_fallthru
        _
      // Predicated region
      $region17: #{unet_hdc_forward.26} parent=11 // pred_check
        %p121 = pneg %p77
      $region18: #{unet_hdc_forward.26} parent=11 // pred_check_branch
        %123 = sbr.rel (%p121) target = $region20
      $region19: #{unet_hdc_forward.26} parent=11 // pred_region
        _
      $region20: #{unet_hdc_forward.26} parent=11 // pred_fallthru
        _
    $region12: #{unet_hdc_forward.26} parent=5 // pred_fallthru
      _
    %p124 = scmp.lt.s32.totalorder %s9, 2
    // Predicated region
    $region21: #{unet_hdc_forward.26} parent=5 // pred_check
      %p125 = pneg %p124
    $region22: #{unet_hdc_forward.26} parent=5 // pred_check_branch
      %127 = sbr.rel (%p125) target = $region24
    $region23: #{unet_hdc_forward.26} parent=5 // pred_region
      // Predicated region
      $region25: #{unet_hdc_forward.26} parent=23 // pred_check
        %p128 = pneg %p29
      $region26: #{unet_hdc_forward.26} parent=23 // pred_check_branch
        %130 = sbr.rel (%p128) target = $region28
      $region27: #{unet_hdc_forward.26} parent=23 // pred_region
        %s131 = smul.u32 32, %s9
        %p132 = scmp.lt.s32.totalorder %s131, 63
        %s133 = scalar_select %p132, %s131, 63
        %s134 = smul.addr %s133, 4
        %s135 = scalar_lea.vmem %s0, %s134
        %s136 = smul.u32 32, %s9
      $region28: #{unet_hdc_forward.26} parent=23 // pred_fallthru
        _
    $region24: #{unet_hdc_forward.26} parent=5 // pred_fallthru
      _
    %p137 = scmp.le.s32.totalorder 1, %s9
    %p138 = scmp.lt.s32.totalorder %s9, 3
    %p139 = pnand %p137, %p138
    %p140 = pneg %p139
    // Predicated region
    $region29: #{unet_hdc_forward.26} parent=5 // pred_check
      _
    $region30: #{unet_hdc_forward.26} parent=5 // pred_check_branch
      %142 = sbr.rel (%p139) target = $region32
    $region31: #{unet_hdc_forward.26} parent=5 // pred_region
      %s143 = ssub.s32 %s9, 1
      %s144 = smul.u32 32, %s14
      %p145 = scmp.lt.s32.totalorder %s144, 63
      %s146 = scalar_select %p145, %s144, 63
      %s147 = smul.addr %s146, 4
      %s148 = scalar_lea.vmem %s0, %s147
      %p149 = pneg %p35
      %p150 = pneg %p32
      %p151 = pneg %p56
      %p152 = pneg %p53
      %p153 = pneg %p77
      %p154 = pneg %p74
      %p155 = pneg %p103
      %p156 = pneg %p100
      %s157 = smul.u32 32, %s14
      %p158 = scmp.lt.s32.totalorder %s157, 63
      %s159 = scalar_select %p158, %s157, 63
      %s160 = smul.addr %s159, 8
      %s161 = scalar_lea.vmem %s3, %s160
      %s162 = smul.u32 32, %s14
      %p163 = scmp.lt.s32.totalorder %s162, 63
      %s164 = scalar_select %p163, %s162, 63
      %s165 = smul.addr %s164, 4
      %s166 = scalar_lea.vmem %s0, %s165
      %s167 = smul.u32 32, %s14
      %s168 = smul.u32 32, %s14
      %p169 = scmp.lt.s32.totalorder %s168, 63
      %s170 = scalar_select %p169, %s168, 63
      %s171 = smul.addr %s170, 8
      %s172 = scalar_lea.vmem %s3, %s171
      %s173 = smul.u32 32, %s14
      %v175 = vld [vmem:[%s166] sm:$0xf]
      %v176 = vld [vmem:[%s166 + $0x4] sm:$0xf]
      %v177 = vld [vmem:[%s166 + $0x8] sm:$0xf]
      %v178 = vld [vmem:[%s166 + $0xc] sm:$0xf]
      %v179 = vld [vmem:[%s166 + $0x10] sm:$0xf]
      %v180 = vld [vmem:[%s166 + $0x14] sm:$0xf]
      %v181 = vld [vmem:[%s166 + $0x18] sm:$0xf]
      %v182 = vld [vmem:[%s166 + $0x1c] sm:$0xf]
      %v183 = vld [vmem:[%s166 + $0x20] sm:$0xf]
      %v184 = vld [vmem:[%s166 + $0x24] sm:$0xf]
      %v185 = vld [vmem:[%s166 + $0x28] sm:$0xf]
      %v186 = vld [vmem:[%s166 + $0x2c] sm:$0xf]
      %v187 = vld [vmem:[%s166 + $0x30] sm:$0xf]
      %v188 = vld [vmem:[%s166 + $0x34] sm:$0xf]
      %v189 = vld [vmem:[%s166 + $0x38] sm:$0xf]
      %v190 = vld [vmem:[%s166 + $0x3c] sm:$0xf]
      %v191 = vld [vmem:[%s166 + $0x40] sm:$0xf]
      %v192 = vld [vmem:[%s166 + $0x44] sm:$0xf]
      %v193 = vld [vmem:[%s166 + $0x48] sm:$0xf]
      %v194 = vld [vmem:[%s166 + $0x4c] sm:$0xf]
      %v195 = vld [vmem:[%s166 + $0x50] sm:$0xf]
      %v196 = vld [vmem:[%s166 + $0x54] sm:$0xf]
      %v197 = vld [vmem:[%s166 + $0x58] sm:$0xf]
      %v198 = vld [vmem:[%s166 + $0x5c] sm:$0xf]
      %v199 = vld [vmem:[%s166 + $0x60] sm:$0xf]
      %v200 = vld [vmem:[%s166 + $0x64] sm:$0xf]
      %v201 = vld [vmem:[%s166 + $0x68] sm:$0xf]
      %v202 = vld [vmem:[%s166 + $0x6c] sm:$0xf]
      %v203 = vld [vmem:[%s166 + $0x70] sm:$0xf]
      %v204 = vld [vmem:[%s166 + $0x74] sm:$0xf]
      %v205 = vld [vmem:[%s166 + $0x78] sm:$0xf]
      %v206 = vld [vmem:[%s166 + $0x7c] sm:$0xf]
      %v207 = vld [vmem:[%s1] sm:$0xf]
      %v208 = vld [vmem:[%s1 + $0x4] sm:$0x1]
      %v209 = vld [vmem:[%s2] sm:$0x1]
      %v211 = vperm.slane %v209, 0
      %v245 = vunpack.c.l.b16 %v175
      %v246 = vunpack.c.l.b16 %v176
      %v247 = vunpack.c.l.b16 %v177
      %v248 = vunpack.c.l.b16 %v178
      %v249 = vunpack.c.l.b16 %v179
      %v250 = vunpack.c.l.b16 %v180
      %v251 = vunpack.c.l.b16 %v181
      %v252 = vunpack.c.l.b16 %v182
      %v253 = vunpack.c.l.b16 %v183
      %v254 = vunpack.c.l.b16 %v184
      %v255 = vunpack.c.l.b16 %v185
      %v256 = vunpack.c.l.b16 %v186
      %v257 = vunpack.c.l.b16 %v187
      %v258 = vunpack.c.l.b16 %v188
      %v259 = vunpack.c.l.b16 %v189
      %v260 = vunpack.c.l.b16 %v190
      %v261 = vunpack.c.l.b16 %v191
      %v262 = vunpack.c.l.b16 %v192
      %v263 = vunpack.c.l.b16 %v193
      %v264 = vunpack.c.l.b16 %v194
      %v265 = vunpack.c.l.b16 %v195
      %v266 = vunpack.c.l.b16 %v196
      %v267 = vunpack.c.l.b16 %v197
      %v268 = vunpack.c.l.b16 %v198
      %v269 = vunpack.c.l.b16 %v199
      %v270 = vunpack.c.l.b16 %v200
      %v271 = vunpack.c.l.b16 %v201
      %v272 = vunpack.c.l.b16 %v202
      %v273 = vunpack.c.l.b16 %v203
      %v274 = vunpack.c.l.b16 %v204
      %v275 = vunpack.c.l.b16 %v205
      %v276 = vunpack.c.l.b16 %v206
      %v277 = vpack.c.b16 %v246, %v245
      %v278 = vpack.c.b16 %v248, %v247
      %v279 = vpack.c.b16 %v250, %v249
      %v280 = vpack.c.b16 %v252, %v251
      %v281 = vpack.c.b16 %v254, %v253
      %v282 = vpack.c.b16 %v256, %v255
      %v283 = vpack.c.b16 %v258, %v257
      %v284 = vpack.c.b16 %v260, %v259
      %v285 = vpack.c.b16 %v262, %v261
      %v286 = vpack.c.b16 %v264, %v263
      %v287 = vpack.c.b16 %v266, %v265
      %v288 = vpack.c.b16 %v268, %v267
      %v289 = vpack.c.b16 %v270, %v269
      %v290 = vpack.c.b16 %v272, %v271
      %v291 = vpack.c.b16 %v274, %v273
      %v292 = vpack.c.b16 %v276, %v275
      %v295 = vunpack.c.l.b16 %v207
      %v296 = vunpack.c.l.b16 %v208
      %v297 = vpack.c.b16 %v296, %v295
      %vm298 = vcmask 72704
      %v300 = vsel %vm298, %v277, 0
      %v303 = vsel %vm298, %v278, 0
      %v306 = vsel %vm298, %v279, 0
      %v309 = vsel %vm298, %v280, 0
      %v312 = vsel %vm298, %v281, 0
      %v315 = vsel %vm298, %v282, 0
      %v318 = vsel %vm298, %v283, 0
      %v321 = vsel %vm298, %v284, 0
      %v324 = vsel %vm298, %v285, 0
      %v327 = vsel %vm298, %v286, 0
      %v330 = vsel %vm298, %v287, 0
      %v333 = vsel %vm298, %v288, 0
      %v336 = vsel %vm298, %v289, 0
      %v339 = vsel %vm298, %v290, 0
      %v342 = vsel %vm298, %v291, 0
      %v345 = vsel %vm298, %v292, 0
      %vm347 = vcmask 1043456
      %vm348 = vcmask 1044480
      %v349 = vsel %vm347, 4294967295, 65535
      %v350 = vsel %vm348, %v349, 0
      %v352 = vand.u32 %v297, %v350
      %354 = vmatpush.bf16.msra.mxu0 0
      %355 = vmatpush.bf16.msra.mxu0 0
      %356 = vmatpush.bf16.msra.mxu0 0
      %357 = vmatpush.bf16.msra.mxu0 0
      %358 = vmatpush.bf16.msra.mxu0 0
      %359 = vmatpush.bf16.msra.mxu0 0
      %360 = vmatpush.bf16.msra.mxu0 0
      %361 = vmatpush.bf16.msra.mxu0 %v352
      %362 = vmatmul.bf16.gmra.mxu0 %v300
      %v363 = vpop.f32.mrf.mxu0
      %v364 = vadd.f32 %v211, %v363
      %v365 = vpop.f32.mrf.mxu0
      %v366 = vadd.f32 %v211, %v365
      %367 = vmatmul.bf16.gmra.mxu0 %v303
      %v368 = vpop.f32.mrf.mxu0
      %v369 = vadd.f32 %v211, %v368
      %v370 = vpop.f32.mrf.mxu0
      %v371 = vadd.f32 %v211, %v370
      %372 = vmatmul.bf16.gmra.mxu0 %v306
      %v373 = vpop.f32.mrf.mxu0
      %v374 = vadd.f32 %v211, %v373
      %v375 = vpop.f32.mrf.mxu0
      %v376 = vadd.f32 %v211, %v375
      %377 = vmatmul.bf16.gmra.mxu0 %v309
      %v378 = vpop.f32.mrf.mxu0
      %v379 = vadd.f32 %v211, %v378
      %v380 = vpop.f32.mrf.mxu0
      %v381 = vadd.f32 %v211, %v380
      %382 = vmatmul.bf16.gmra.mxu0 %v312
      %v383 = vpop.f32.mrf.mxu0
      %v384 = vadd.f32 %v211, %v383
      %v385 = vpop.f32.mrf.mxu0
      %v386 = vadd.f32 %v211, %v385
      %387 = vmatmul.bf16.gmra.mxu0 %v315
      %v388 = vpop.f32.mrf.mxu0
      %v389 = vadd.f32 %v211, %v388
      %v390 = vpop.f32.mrf.mxu0
      %v391 = vadd.f32 %v211, %v390
      %392 = vmatmul.bf16.gmra.mxu0 %v318
      %v393 = vpop.f32.mrf.mxu0
      %v394 = vadd.f32 %v211, %v393
      %v395 = vpop.f32.mrf.mxu0
      %v396 = vadd.f32 %v211, %v395
      %397 = vmatmul.bf16.gmra.mxu0 %v321
      %v398 = vpop.f32.mrf.mxu0
      %v399 = vadd.f32 %v211, %v398
      %v400 = vpop.f32.mrf.mxu0
      %v401 = vadd.f32 %v211, %v400
      %402 = vmatmul.bf16.gmra.mxu0 %v324
      %v403 = vpop.f32.mrf.mxu0
      %v404 = vadd.f32 %v211, %v403
      %v405 = vpop.f32.mrf.mxu0
      %v406 = vadd.f32 %v211, %v405
      %407 = vmatmul.bf16.gmra.mxu0 %v327
      %v408 = vpop.f32.mrf.mxu0
      %v409 = vadd.f32 %v211, %v408
      %v410 = vpop.f32.mrf.mxu0
      %v411 = vadd.f32 %v211, %v410
      %412 = vmatmul.bf16.gmra.mxu0 %v330
      %v413 = vpop.f32.mrf.mxu0
      %v414 = vadd.f32 %v211, %v413
      %v415 = vpop.f32.mrf.mxu0
      %v416 = vadd.f32 %v211, %v415
      %417 = vmatmul.bf16.gmra.mxu0 %v333
      %v418 = vpop.f32.mrf.mxu0
      %v419 = vadd.f32 %v211, %v418
      %v420 = vpop.f32.mrf.mxu0
      %v421 = vadd.f32 %v211, %v420
      %422 = vmatmul.bf16.gmra.mxu0 %v336
      %v423 = vpop.f32.mrf.mxu0
      %v424 = vadd.f32 %v211, %v423
      %v425 = vpop.f32.mrf.mxu0
      %v426 = vadd.f32 %v211, %v425
      %427 = vmatmul.bf16.gmra.mxu0 %v339
      %v428 = vpop.f32.mrf.mxu0
      %v429 = vadd.f32 %v211, %v428
      %v430 = vpop.f32.mrf.mxu0
      %v431 = vadd.f32 %v211, %v430
      %432 = vmatmul.bf16.gmra.mxu0 %v342
      %v433 = vpop.f32.mrf.mxu0
      %v434 = vadd.f32 %v211, %v433
      %v435 = vpop.f32.mrf.mxu0
      %v436 = vadd.f32 %v211, %v435
      %437 = vmatmul.bf16.gmra.mxu0 %v345
      %v438 = vpop.f32.mrf.mxu0
      %v439 = vadd.f32 %v211, %v438
      %v440 = vpop.f32.mrf.mxu0
      %v441 = vadd.f32 %v211, %v440
      %442 = vdwg.mxu0
      %v443 = vmax.f32 %v364, 0.0
      %v444 = vmax.f32 %v366, 0.0
      %v445 = vmax.f32 %v369, 0.0
      %v446 = vmax.f32 %v371, 0.0
      %v447 = vmax.f32 %v374, 0.0
      %v448 = vmax.f32 %v376, 0.0
      %v449 = vmax.f32 %v379, 0.0
      %v450 = vmax.f32 %v381, 0.0
      %v451 = vmax.f32 %v384, 0.0
      %v452 = vmax.f32 %v386, 0.0
      %v453 = vmax.f32 %v389, 0.0
      %v454 = vmax.f32 %v391, 0.0
      %v455 = vmax.f32 %v394, 0.0
      %v456 = vmax.f32 %v396, 0.0
      %v457 = vmax.f32 %v399, 0.0
      %v458 = vmax.f32 %v401, 0.0
      %v459 = vmax.f32 %v404, 0.0
      %v460 = vmax.f32 %v406, 0.0
      %v461 = vmax.f32 %v409, 0.0
      %v462 = vmax.f32 %v411, 0.0
      %v463 = vmax.f32 %v414, 0.0
      %v464 = vmax.f32 %v416, 0.0
      %v465 = vmax.f32 %v419, 0.0
      %v466 = vmax.f32 %v421, 0.0
      %v467 = vmax.f32 %v424, 0.0
      %v468 = vmax.f32 %v426, 0.0
      %v469 = vmax.f32 %v429, 0.0
      %v470 = vmax.f32 %v431, 0.0
      %v471 = vmax.f32 %v434, 0.0
      %v472 = vmax.f32 %v436, 0.0
      %v473 = vmax.f32 %v439, 0.0
      %v474 = vmax.f32 %v441, 0.0
      %475 = vst [vmem:[%s172] sm:$0xff] %v443
      %476 = vst [vmem:[%s172 + $0x8] sm:$0xff] %v444
      %477 = vst [vmem:[%s172 + $0x10] sm:$0xff] %v445
      %478 = vst [vmem:[%s172 + $0x18] sm:$0xff] %v446
      %479 = vst [vmem:[%s172 + $0x20] sm:$0xff] %v447
      %480 = vst [vmem:[%s172 + $0x28] sm:$0xff] %v448
      %481 = vst [vmem:[%s172 + $0x30] sm:$0xff] %v449
      %482 = vst [vmem:[%s172 + $0x38] sm:$0xff] %v450
      %483 = vst [vmem:[%s172 + $0x40] sm:$0xff] %v451
      %484 = vst [vmem:[%s172 + $0x48] sm:$0xff] %v452
      %485 = vst [vmem:[%s172 + $0x50] sm:$0xff] %v453
      %486 = vst [vmem:[%s172 + $0x58] sm:$0xff] %v454
      %487 = vst [vmem:[%s172 + $0x60] sm:$0xff] %v455
      %488 = vst [vmem:[%s172 + $0x68] sm:$0xff] %v456
      %489 = vst [vmem:[%s172 + $0x70] sm:$0xff] %v457
      %490 = vst [vmem:[%s172 + $0x78] sm:$0xff] %v458
      %491 = vst [vmem:[%s172 + $0x80] sm:$0xff] %v459
      %492 = vst [vmem:[%s172 + $0x88] sm:$0xff] %v460
      %493 = vst [vmem:[%s172 + $0x90] sm:$0xff] %v461
      %494 = vst [vmem:[%s172 + $0x98] sm:$0xff] %v462
      %495 = vst [vmem:[%s172 + $0xa0] sm:$0xff] %v463
      %496 = vst [vmem:[%s172 + $0xa8] sm:$0xff] %v464
      %497 = vst [vmem:[%s172 + $0xb0] sm:$0xff] %v465
      %498 = vst [vmem:[%s172 + $0xb8] sm:$0xff] %v466
      %499 = vst [vmem:[%s172 + $0xc0] sm:$0xff] %v467
      %500 = vst [vmem:[%s172 + $0xc8] sm:$0xff] %v468
      %501 = vst [vmem:[%s172 + $0xd0] sm:$0xff] %v469
      %502 = vst [vmem:[%s172 + $0xd8] sm:$0xff] %v470
      %503 = vst [vmem:[%s172 + $0xe0] sm:$0xff] %v471
      %504 = vst [vmem:[%s172 + $0xe8] sm:$0xff] %v472
      %505 = vst [vmem:[%s172 + $0xf0] sm:$0xff] %v473
      %506 = vst [vmem:[%s172 + $0xf8] sm:$0xff] %v474
      %s507 = smul.u32 32, %s14
      %p508 = scmp.lt.s32.totalorder %s507, 63
      %s509 = scalar_select %p508, %s507, 63
      %s510 = smul.addr %s509, 8
      %s511 = scalar_lea.vmem %s3, %s510
      // Predicated region
      $region33: #{unet_hdc_forward.26} parent=31 // pred_check
        %p512 = pneg %p100
      $region34: #{unet_hdc_forward.26} parent=31 // pred_check_branch
        %514 = sbr.rel (%p512) target = $region36
      $region35: #{unet_hdc_forward.26} parent=31 // pred_region
        %s515 = smul.u32 32, %s14
      $region36: #{unet_hdc_forward.26} parent=31 // pred_fallthru
        _
    $region32: #{unet_hdc_forward.26} parent=5 // pred_fallthru
      _
    %p516 = scmp.le.s32.totalorder 2, %s9
    // Predicated region
    $region37: #{unet_hdc_forward.26} parent=5 // pred_check
      %p517 = pneg %p516
    $region38: #{unet_hdc_forward.26} parent=5 // pred_check_branch
      %519 = sbr.rel (%p517) target = $region40
    $region39: #{unet_hdc_forward.26} parent=5 // pred_region
      %s520 = ssub.s32 %s9, 2
      // Predicated region
      $region41: #{unet_hdc_forward.26} parent=39 // pred_check
        %p521 = pneg %p106
      $region42: #{unet_hdc_forward.26} parent=39 // pred_check_branch
        %523 = sbr.rel (%p521) target = $region44
      $region43: #{unet_hdc_forward.26} parent=39 // pred_region
        %s524 = smul.u32 32, %s15
        %p525 = scmp.lt.s32.totalorder %s524, 63
        %s526 = scalar_select %p525, %s524, 63
        %s527 = smul.addr %s526, 8
        %s528 = scalar_lea.vmem %s3, %s527
      $region44: #{unet_hdc_forward.26} parent=39 // pred_fallthru
        _
    $region40: #{unet_hdc_forward.26} parent=5 // pred_fallthru
      _
  $region6: #{unet_hdc_forward.26} parent=0 // loop_footer
    %s13 = sadd.s32 1, %s9
  $region7: #{unet_hdc_forward.26} parent=0 // loop_footer_branch
    %8 = sbr.rel target = $region3
  $region8: #{unet_hdc_forward.26} parent=0 // loop_exit
    _

// kernel: unet_hdc_forward.27
$region0: #{unet_hdc_forward.27}
  #allocation0 [shape = 'u32[]', space=smem, size = 0x4, offset = 0x4, fixed_abs, tag = 'smem constant byte address 0x4 - core index']
  #allocation1 [shape = 'u32[72,128]{1,0:T(1,128)}', space=vmem, size = 0x9000, scoped, tag = 'internal scratch']
  %s0 = inlined_call_operand.vmem [shape: bf16[512,36], index: 0, kind: input, shape index: {}]
  %s1 = inlined_call_operand.vmem [shape: bf16[36,128], index: 1, kind: input, shape index: {}]
  %s2 = inlined_call_operand.vmem [shape: f32[1,128], index: 2, kind: input, shape index: {}]
  %s3 = inlined_call_operand.vmem [shape: f32[512,128], index: 3, kind: output, shape index: {}]
  %s4 = sld [smem:[#allocation0]]
  $region45: #{unet_hdc_forward.27} parent=0
    _
  %s6 = ssub.s32 1, %s4
  %s7 = scalar_select 0, %s6, %s4
  loop: start=0, step=1, limit=4
  $region2: #{unet_hdc_forward.27} parent=0 // loop_pre_header
    _
  $region3: #{unet_hdc_forward.27} parent=0 // loop_header
    %s9 = sphi 0, %s13
    %p10 = scmp.ge.s32.totalorder %s9, 4
    %s19 = sphi 0, %s21
    %s22 = sphi 0, %s19
    %s23 = sphi 0, %s22
    %s39 = sphi 0, %s23
    %s43 = sphi 0, %s43
    %s45 = sphi 0, %s43
    %s46 = sphi 0, %s45
    %s60 = sphi 0, %s46
    %s64 = sphi 0, %s64
    %s66 = sphi 0, %s64
    %s67 = sphi 0, %s66
    %s81 = sphi 0, %s67
    %s87 = sphi 0, %s89
    %s90 = sphi 0, %s87
    %s91 = sphi 0, %s90
    %s107 = sphi 0, %s91
  $region4: #{unet_hdc_forward.27} parent=0 // loop_header_branch
    %12 = sbr.rel (%p10) target = $region8
  $region5: #{unet_hdc_forward.27} parent=0 // loop_body
    %s14 = ssub.s32 %s9, 1
    %s15 = ssub.s32 %s9, 2
    %s16 = sadd.s32 %s9, 1
    %s17 = ssub.s32 %s9, %s16
    %p18 = scmp.eq.s32.totalorder %s17, 0
    %s20 = sadd.s32 %s19, 1
    %s21 = scalar_select %p18, %s19, %s20
    %p24 = pneg %p18
    %p25 = scmp.eq.s32.totalorder %s9, 1
    %p26 = por %p24, %p25
    %p27 = scmp.ne.s32.totalorder %s19, %s22
    %p28 = scmp.eq.s32.totalorder %s9, 0
    %p29 = por %p27, %p28
    %p30 = scmp.ne.s32.totalorder %s19, %s22
    %p31 = scmp.eq.s32.totalorder %s14, 1
    %p32 = por %p30, %p31
    %p33 = scmp.ne.s32.totalorder %s22, %s23
    %p34 = scmp.eq.s32.totalorder %s14, 0
    %p35 = por %p33, %p34
    %p36 = scmp.ne.s32.totalorder %s22, %s23
    %p37 = scmp.eq.s32.totalorder %s15, 1
    %p38 = por %p36, %p37
    %p40 = scmp.ne.s32.totalorder %s23, %s39
    %p41 = scmp.eq.s32.totalorder %s15, 0
    %p42 = por %p40, %p41
    %s44 = sadd.s32 %s43, 1
    %p47 = scmp.eq.s32.totalorder %s9, 1
    %p48 = scmp.ne.s32.totalorder %s43, %s45
    %p49 = scmp.eq.s32.totalorder %s9, 0
    %p50 = por %p48, %p49
    %p51 = scmp.ne.s32.totalorder %s43, %s45
    %p52 = scmp.eq.s32.totalorder %s14, 1
    %p53 = por %p51, %p52
    %p54 = scmp.ne.s32.totalorder %s45, %s46
    %p55 = scmp.eq.s32.totalorder %s14, 0
    %p56 = por %p54, %p55
    %p57 = scmp.ne.s32.totalorder %s45, %s46
    %p58 = scmp.eq.s32.totalorder %s15, 1
    %p59 = por %p57, %p58
    %p61 = scmp.ne.s32.totalorder %s46, %s60
    %p62 = scmp.eq.s32.totalorder %s15, 0
    %p63 = por %p61, %p62
    %s65 = sadd.s32 %s64, 1
    %p68 = scmp.eq.s32.totalorder %s9, 1
    %p69 = scmp.ne.s32.totalorder %s64, %s66
    %p70 = scmp.eq.s32.totalorder %s9, 0
    %p71 = por %p69, %p70
    %p72 = scmp.ne.s32.totalorder %s64, %s66
    %p73 = scmp.eq.s32.totalorder %s14, 1
    %p74 = por %p72, %p73
    %p75 = scmp.ne.s32.totalorder %s66, %s67
    %p76 = scmp.eq.s32.totalorder %s14, 0
    %p77 = por %p75, %p76
    %p78 = scmp.ne.s32.totalorder %s66, %s67
    %p79 = scmp.eq.s32.totalorder %s15, 1
    %p80 = por %p78, %p79
    %p82 = scmp.ne.s32.totalorder %s67, %s81
    %p83 = scmp.eq.s32.totalorder %s15, 0
    %p84 = por %p82, %p83
    %s85 = ssub.s32 %s9, %s16
    %p86 = scmp.eq.s32.totalorder %s85, 0
    %s88 = sadd.s32 %s87, 1
    %s89 = scalar_select %p86, %s87, %s88
    %p92 = pneg %p86
    %p93 = scmp.eq.s32.totalorder %s9, 1
    %p94 = por %p92, %p93
    %p95 = scmp.ne.s32.totalorder %s87, %s90
    %p96 = scmp.eq.s32.totalorder %s9, 0
    %p97 = por %p95, %p96
    %p98 = scmp.ne.s32.totalorder %s87, %s90
    %p99 = scmp.eq.s32.totalorder %s14, 1
    %p100 = por %p98, %p99
    %p101 = scmp.ne.s32.totalorder %s90, %s91
    %p102 = scmp.eq.s32.totalorder %s14, 0
    %p103 = por %p101, %p102
    %p104 = scmp.ne.s32.totalorder %s90, %s91
    %p105 = scmp.eq.s32.totalorder %s15, 1
    %p106 = por %p104, %p105
    %p108 = scmp.ne.s32.totalorder %s91, %s107
    %p109 = scmp.eq.s32.totalorder %s15, 0
    %p110 = por %p108, %p109
    %p111 = scmp.le.s32.totalorder 1, %s9
    %p112 = scmp.lt.s32.totalorder %s9, 3
    %p113 = pnand %p111, %p112
    %p114 = pneg %p113
    // Predicated region
    $region9: #{unet_hdc_forward.27} parent=5 // pred_check
      _
    $region10: #{unet_hdc_forward.27} parent=5 // pred_check_branch
      %116 = sbr.rel (%p113) target = $region12
    $region11: #{unet_hdc_forward.27} parent=5 // pred_region
      %s117 = ssub.s32 %s9, 1
      // Predicated region
      $region13: #{unet_hdc_forward.27} parent=11 // pred_check
        %p118 = pneg %p56
      $region14: #{unet_hdc_forward.27} parent=11 // pred_check_branch
        %120 = sbr.rel (%p118) target = $region16
      $region15: #{unet_hdc_forward.27} parent=11 // pred_region
        _
      $region16: #{unet_hdc_forward.27} parent=11 // pred_fallthru
        _
      // Predicated region
      $region17: #{unet_hdc_forward.27} parent=11 // pred_check
        %p121 = pneg %p77
      $region18: #{unet_hdc_forward.27} parent=11 // pred_check_branch
        %123 = sbr.rel (%p121) target = $region20
      $region19: #{unet_hdc_forward.27} parent=11 // pred_region
        _
      $region20: #{unet_hdc_forward.27} parent=11 // pred_fallthru
        _
    $region12: #{unet_hdc_forward.27} parent=5 // pred_fallthru
      _
    %p124 = scmp.lt.s32.totalorder %s9, 2
    // Predicated region
    $region21: #{unet_hdc_forward.27} parent=5 // pred_check
      %p125 = pneg %p124
    $region22: #{unet_hdc_forward.27} parent=5 // pred_check_branch
      %127 = sbr.rel (%p125) target = $region24
    $region23: #{unet_hdc_forward.27} parent=5 // pred_region
      // Predicated region
      $region25: #{unet_hdc_forward.27} parent=23 // pred_check
        %p128 = pneg %p29
      $region26: #{unet_hdc_forward.27} parent=23 // pred_check_branch
        %130 = sbr.rel (%p128) target = $region28
      $region27: #{unet_hdc_forward.27} parent=23 // pred_region
        %s131 = smul.u32 32, %s9
        %p132 = scmp.lt.s32.totalorder %s131, 63
        %s133 = scalar_select %p132, %s131, 63
        %s134 = smul.addr %s133, 4
        %s135 = scalar_lea.vmem %s0, %s134
        %s136 = smul.u32 32, %s9
      $region28: #{unet_hdc_forward.27} parent=23 // pred_fallthru
        _
    $region24: #{unet_hdc_forward.27} parent=5 // pred_fallthru
      _
    %p137 = scmp.le.s32.totalorder 1, %s9
    %p138 = scmp.lt.s32.totalorder %s9, 3
    %p139 = pnand %p137, %p138
    %p140 = pneg %p139
    // Predicated region
    $region29: #{unet_hdc_forward.27} parent=5 // pred_check
      _
    $region30: #{unet_hdc_forward.27} parent=5 // pred_check_branch
      %142 = sbr.rel (%p139) target = $region32
    $region31: #{unet_hdc_forward.27} parent=5 // pred_region
      %s143 = ssub.s32 %s9, 1
      %s144 = smul.u32 32, %s14
      %p145 = scmp.lt.s32.totalorder %s144, 63
      %s146 = scalar_select %p145, %s144, 63
      %s147 = smul.addr %s146, 4
      %s148 = scalar_lea.vmem %s0, %s147
      %p149 = pneg %p35
      %p150 = pneg %p32
      %p151 = pneg %p56
      %p152 = pneg %p53
      %p153 = pneg %p77
      %p154 = pneg %p74
      %p155 = pneg %p103
      %p156 = pneg %p100
      %s157 = smul.u32 32, %s14
      %p158 = scmp.lt.s32.totalorder %s157, 63
      %s159 = scalar_select %p158, %s157, 63
      %s160 = smul.addr %s159, 8
      %s161 = scalar_lea.vmem %s3, %s160
      %s162 = smul.u32 32, %s14
      %p163 = scmp.lt.s32.totalorder %s162, 63
      %s164 = scalar_select %p163, %s162, 63
      %s165 = smul.addr %s164, 4
      %s166 = scalar_lea.vmem %s0, %s165
      %s167 = smul.u32 32, %s14
      %s168 = smul.u32 32, %s14
      %p169 = scmp.lt.s32.totalorder %s168, 63
      %s170 = scalar_select %p169, %s168, 63
      %s171 = smul.addr %s170, 8
      %s172 = scalar_lea.vmem %s3, %s171
      %s173 = smul.u32 32, %s14
      %v175 = vld [vmem:[%s166] sm:$0xf]
      %v176 = vld [vmem:[%s166 + $0x4] sm:$0xf]
      %v177 = vld [vmem:[%s166 + $0x8] sm:$0xf]
      %v178 = vld [vmem:[%s166 + $0xc] sm:$0xf]
      %v179 = vld [vmem:[%s166 + $0x10] sm:$0xf]
      %v180 = vld [vmem:[%s166 + $0x14] sm:$0xf]
      %v181 = vld [vmem:[%s166 + $0x18] sm:$0xf]
      %v182 = vld [vmem:[%s166 + $0x1c] sm:$0xf]
      %v183 = vld [vmem:[%s166 + $0x20] sm:$0xf]
      %v184 = vld [vmem:[%s166 + $0x24] sm:$0xf]
      %v185 = vld [vmem:[%s166 + $0x28] sm:$0xf]
      %v186 = vld [vmem:[%s166 + $0x2c] sm:$0xf]
      %v187 = vld [vmem:[%s166 + $0x30] sm:$0xf]
      %v188 = vld [vmem:[%s166 + $0x34] sm:$0xf]
      %v189 = vld [vmem:[%s166 + $0x38] sm:$0xf]
      %v190 = vld [vmem:[%s166 + $0x3c] sm:$0xf]
      %v191 = vld [vmem:[%s166 + $0x40] sm:$0xf]
      %v192 = vld [vmem:[%s166 + $0x44] sm:$0xf]
      %v193 = vld [vmem:[%s166 + $0x48] sm:$0xf]
      %v194 = vld [vmem:[%s166 + $0x4c] sm:$0xf]
      %v195 = vld [vmem:[%s166 + $0x50] sm:$0xf]
      %v196 = vld [vmem:[%s166 + $0x54] sm:$0xf]
      %v197 = vld [vmem:[%s166 + $0x58] sm:$0xf]
      %v198 = vld [vmem:[%s166 + $0x5c] sm:$0xf]
      %v199 = vld [vmem:[%s166 + $0x60] sm:$0xf]
      %v200 = vld [vmem:[%s166 + $0x64] sm:$0xf]
      %v201 = vld [vmem:[%s166 + $0x68] sm:$0xf]
      %v202 = vld [vmem:[%s166 + $0x6c] sm:$0xf]
      %v203 = vld [vmem:[%s166 + $0x70] sm:$0xf]
      %v204 = vld [vmem:[%s166 + $0x74] sm:$0xf]
      %v205 = vld [vmem:[%s166 + $0x78] sm:$0xf]
      %v206 = vld [vmem:[%s166 + $0x7c] sm:$0xf]
      %v207 = vld [vmem:[%s1] sm:$0xf]
      %v208 = vld [vmem:[%s1 + $0x4] sm:$0xf]
      %v209 = vld [vmem:[%s1 + $0x8] sm:$0xf]
      %v210 = vld [vmem:[%s1 + $0xc] sm:$0xf]
      %v211 = vld [vmem:[%s1 + $0x10] sm:$0x3]
      %v212 = vld [vmem:[%s2] sm:$0x1]
      %v214 = vperm.slane %v212, 0
      %v248 = vunpack.c.l.b16 %v175
      %v249 = vunpack.c.l.b16 %v176
      %v250 = vunpack.c.l.b16 %v177
      %v251 = vunpack.c.l.b16 %v178
      %v252 = vunpack.c.l.b16 %v179
      %v253 = vunpack.c.l.b16 %v180
      %v254 = vunpack.c.l.b16 %v181
      %v255 = vunpack.c.l.b16 %v182
      %v256 = vunpack.c.l.b16 %v183
      %v257 = vunpack.c.l.b16 %v184
      %v258 = vunpack.c.l.b16 %v185
      %v259 = vunpack.c.l.b16 %v186
      %v260 = vunpack.c.l.b16 %v187
      %v261 = vunpack.c.l.b16 %v188
      %v262 = vunpack.c.l.b16 %v189
      %v263 = vunpack.c.l.b16 %v190
      %v264 = vunpack.c.l.b16 %v191
      %v265 = vunpack.c.l.b16 %v192
      %v266 = vunpack.c.l.b16 %v193
      %v267 = vunpack.c.l.b16 %v194
      %v268 = vunpack.c.l.b16 %v195
      %v269 = vunpack.c.l.b16 %v196
      %v270 = vunpack.c.l.b16 %v197
      %v271 = vunpack.c.l.b16 %v198
      %v272 = vunpack.c.l.b16 %v199
      %v273 = vunpack.c.l.b16 %v200
      %v274 = vunpack.c.l.b16 %v201
      %v275 = vunpack.c.l.b16 %v202
      %v276 = vunpack.c.l.b16 %v203
      %v277 = vunpack.c.l.b16 %v204
      %v278 = vunpack.c.l.b16 %v205
      %v279 = vunpack.c.l.b16 %v206
      %v280 = vpack.c.b16 %v249, %v248
      %v281 = vpack.c.b16 %v251, %v250
      %v282 = vpack.c.b16 %v253, %v252
      %v283 = vpack.c.b16 %v255, %v254
      %v284 = vpack.c.b16 %v257, %v256
      %v285 = vpack.c.b16 %v259, %v258
      %v286 = vpack.c.b16 %v261, %v260
      %v287 = vpack.c.b16 %v263, %v262
      %v288 = vpack.c.b16 %v265, %v264
      %v289 = vpack.c.b16 %v267, %v266
      %v290 = vpack.c.b16 %v269, %v268
      %v291 = vpack.c.b16 %v271, %v270
      %v292 = vpack.c.b16 %v273, %v272
      %v293 = vpack.c.b16 %v275, %v274
      %v294 = vpack.c.b16 %v277, %v276
      %v295 = vpack.c.b16 %v279, %v278
      %v301 = vunpack.c.l.b16 %v207
      %v302 = vunpack.c.l.b16 %v208
      %v303 = vunpack.c.l.b16 %v209
      %v304 = vunpack.c.l.b16 %v210
      %v305 = vunpack.c.l.b16 %v211
      %v306 = vpack.c.b16 %v302, %v301
      %v307 = vpack.c.b16 %v304, %v303
      %v308 = vpack.c.b16 %v305, %v305
      %vm311 = vcmask 293888
      %v313 = vsel %vm311, %v280, 0
      %v316 = vsel %vm311, %v281, 0
      %v319 = vsel %vm311, %v282, 0
      %v322 = vsel %vm311, %v283, 0
      %v325 = vsel %vm311, %v284, 0
      %v328 = vsel %vm311, %v285, 0
      %v331 = vsel %vm311, %v286, 0
      %v334 = vsel %vm311, %v287, 0
      %v337 = vsel %vm311, %v288, 0
      %v340 = vsel %vm311, %v289, 0
      %v343 = vsel %vm311, %v290, 0
      %v346 = vsel %vm311, %v291, 0
      %v349 = vsel %vm311, %v292, 0
      %v352 = vsel %vm311, %v293, 0
      %v355 = vsel %vm311, %v294, 0
      %v358 = vsel %vm311, %v295, 0
      %vm360 = vcmask 1041408
      %v362 = vsel %vm360, %v308, 0
      %364 = vmatpush.bf16.msra.mxu0 0
      %365 = vmatpush.bf16.msra.mxu0 0
      %366 = vmatpush.bf16.msra.mxu0 0
      %367 = vmatpush.bf16.msra.mxu0 0
      %368 = vmatpush.bf16.msra.mxu0 0
      %369 = vmatpush.bf16.msra.mxu0 %v362
      %370 = vmatpush.bf16.msra.mxu0 %v307
      %371 = vmatpush.bf16.msra.mxu0 %v306
      %372 = vmatmul.bf16.gmra.mxu0 %v313
      %v373 = vpop.f32.mrf.mxu0
      %v374 = vadd.f32 %v214, %v373
      %v375 = vpop.f32.mrf.mxu0
      %v376 = vadd.f32 %v214, %v375
      %377 = vmatmul.bf16.gmra.mxu0 %v316
      %v378 = vpop.f32.mrf.mxu0
      %v379 = vadd.f32 %v214, %v378
      %v380 = vpop.f32.mrf.mxu0
      %v381 = vadd.f32 %v214, %v380
      %382 = vmatmul.bf16.gmra.mxu0 %v319
      %v383 = vpop.f32.mrf.mxu0
      %v384 = vadd.f32 %v214, %v383
      %v385 = vpop.f32.mrf.mxu0
      %v386 = vadd.f32 %v214, %v385
      %387 = vmatmul.bf16.gmra.mxu0 %v322
      %v388 = vpop.f32.mrf.mxu0
      %v389 = vadd.f32 %v214, %v388
      %v390 = vpop.f32.mrf.mxu0
      %v391 = vadd.f32 %v214, %v390
      %392 = vmatmul.bf16.gmra.mxu0 %v325
      %v393 = vpop.f32.mrf.mxu0
      %v394 = vadd.f32 %v214, %v393
      %v395 = vpop.f32.mrf.mxu0
      %v396 = vadd.f32 %v214, %v395
      %397 = vmatmul.bf16.gmra.mxu0 %v328
      %v398 = vpop.f32.mrf.mxu0
      %v399 = vadd.f32 %v214, %v398
      %v400 = vpop.f32.mrf.mxu0
      %v401 = vadd.f32 %v214, %v400
      %402 = vmatmul.bf16.gmra.mxu0 %v331
      %v403 = vpop.f32.mrf.mxu0
      %v404 = vadd.f32 %v214, %v403
      %v405 = vpop.f32.mrf.mxu0
      %v406 = vadd.f32 %v214, %v405
      %407 = vmatmul.bf16.gmra.mxu0 %v334
      %v408 = vpop.f32.mrf.mxu0
      %v409 = vadd.f32 %v214, %v408
      %v410 = vpop.f32.mrf.mxu0
      %v411 = vadd.f32 %v214, %v410
      %412 = vmatmul.bf16.gmra.mxu0 %v337
      %v413 = vpop.f32.mrf.mxu0
      %v414 = vadd.f32 %v214, %v413
      %v415 = vpop.f32.mrf.mxu0
      %v416 = vadd.f32 %v214, %v415
      %417 = vmatmul.bf16.gmra.mxu0 %v340
      %v418 = vpop.f32.mrf.mxu0
      %v419 = vadd.f32 %v214, %v418
      %v420 = vpop.f32.mrf.mxu0
      %v421 = vadd.f32 %v214, %v420
      %422 = vmatmul.bf16.gmra.mxu0 %v343
      %v423 = vpop.f32.mrf.mxu0
      %v424 = vadd.f32 %v214, %v423
      %v425 = vpop.f32.mrf.mxu0
      %v426 = vadd.f32 %v214, %v425
      %427 = vmatmul.bf16.gmra.mxu0 %v346
      %v428 = vpop.f32.mrf.mxu0
      %v429 = vadd.f32 %v214, %v428
      %v430 = vpop.f32.mrf.mxu0
      %v431 = vadd.f32 %v214, %v430
      %432 = vmatmul.bf16.gmra.mxu0 %v349
      %v433 = vpop.f32.mrf.mxu0
      %v434 = vadd.f32 %v214, %v433
      %v435 = vpop.f32.mrf.mxu0
      %v436 = vadd.f32 %v214, %v435
      %437 = vmatmul.bf16.gmra.mxu0 %v352
      %v438 = vpop.f32.mrf.mxu0
      %v439 = vadd.f32 %v214, %v438
      %v440 = vpop.f32.mrf.mxu0
      %v441 = vadd.f32 %v214, %v440
      %442 = vmatmul.bf16.gmra.mxu0 %v355
      %v443 = vpop.f32.mrf.mxu0
      %v444 = vadd.f32 %v214, %v443
      %v445 = vpop.f32.mrf.mxu0
      %v446 = vadd.f32 %v214, %v445
      %447 = vmatmul.bf16.gmra.mxu0 %v358
      %v448 = vpop.f32.mrf.mxu0
      %v449 = vadd.f32 %v214, %v448
      %v450 = vpop.f32.mrf.mxu0
      %v451 = vadd.f32 %v214, %v450
      %452 = vdwg.mxu0
      %453 = vst [vmem:[%s172] sm:$0xff] %v374
      %454 = vst [vmem:[%s172 + $0x8] sm:$0xff] %v376
      %455 = vst [vmem:[%s172 + $0x10] sm:$0xff] %v379
      %456 = vst [vmem:[%s172 + $0x18] sm:$0xff] %v381
      %457 = vst [vmem:[%s172 + $0x20] sm:$0xff] %v384
      %458 = vst [vmem:[%s172 + $0x28] sm:$0xff] %v386
      %459 = vst [vmem:[%s172 + $0x30] sm:$0xff] %v389
      %460 = vst [vmem:[%s172 + $0x38] sm:$0xff] %v391
      %461 = vst [vmem:[%s172 + $0x40] sm:$0xff] %v394
      %462 = vst [vmem:[%s172 + $0x48] sm:$0xff] %v396
      %463 = vst [vmem:[%s172 + $0x50] sm:$0xff] %v399
      %464 = vst [vmem:[%s172 + $0x58] sm:$0xff] %v401
      %465 = vst [vmem:[%s172 + $0x60] sm:$0xff] %v404
      %466 = vst [vmem:[%s172 + $0x68] sm:$0xff] %v406
      %467 = vst [vmem:[%s172 + $0x70] sm:$0xff] %v409
      %468 = vst [vmem:[%s172 + $0x78] sm:$0xff] %v411
      %469 = vst [vmem:[%s172 + $0x80] sm:$0xff] %v414
      %470 = vst [vmem:[%s172 + $0x88] sm:$0xff] %v416
      %471 = vst [vmem:[%s172 + $0x90] sm:$0xff] %v419
      %472 = vst [vmem:[%s172 + $0x98] sm:$0xff] %v421
      %473 = vst [vmem:[%s172 + $0xa0] sm:$0xff] %v424
      %474 = vst [vmem:[%s172 + $0xa8] sm:$0xff] %v426
      %475 = vst [vmem:[%s172 + $0xb0] sm:$0xff] %v429
      %476 = vst [vmem:[%s172 + $0xb8] sm:$0xff] %v431
      %477 = vst [vmem:[%s172 + $0xc0] sm:$0xff] %v434
      %478 = vst [vmem:[%s172 + $0xc8] sm:$0xff] %v436
      %479 = vst [vmem:[%s172 + $0xd0] sm:$0xff] %v439
      %480 = vst [vmem:[%s172 + $0xd8] sm:$0xff] %v441
      %481 = vst [vmem:[%s172 + $0xe0] sm:$0xff] %v444
      %482 = vst [vmem:[%s172 + $0xe8] sm:$0xff] %v446
      %483 = vst [vmem:[%s172 + $0xf0] sm:$0xff] %v449
      %484 = vst [vmem:[%s172 + $0xf8] sm:$0xff] %v451
      %s485 = smul.u32 32, %s14
      %p486 = scmp.lt.s32.totalorder %s485, 63
      %s487 = scalar_select %p486, %s485, 63
      %s488 = smul.addr %s487, 8
      %s489 = scalar_lea.vmem %s3, %s488
      // Predicated region
      $region33: #{unet_hdc_forward.27} parent=31 // pred_check
        %p490 = pneg %p100
      $region34: #{unet_hdc_forward.27} parent=31 // pred_check_branch
        %492 = sbr.rel (%p490) target = $region36
      $region35: #{unet_hdc_forward.27} parent=31 // pred_region
        %s493 = smul.u32 32, %s14
      $region36: #{unet_hdc_forward.27} parent=31 // pred_fallthru
        _
    $region32: #{unet_hdc_forward.27} parent=5 // pred_fallthru
      _
    %p494 = scmp.le.s32.totalorder 2, %s9
    // Predicated region
    $region37: #{unet_hdc_forward.27} parent=5 // pred_check
      %p495 = pneg %p494
    $region38: #{unet_hdc_forward.27} parent=5 // pred_check_branch
      %497 = sbr.rel (%p495) target = $region40
    $region39: #{unet_hdc_forward.27} parent=5 // pred_region
      %s498 = ssub.s32 %s9, 2
      // Predicated region
      $region41: #{unet_hdc_forward.27} parent=39 // pred_check
        %p499 = pneg %p106
      $region42: #{unet_hdc_forward.27} parent=39 // pred_check_branch
        %501 = sbr.rel (%p499) target = $region44
      $region43: #{unet_hdc_forward.27} parent=39 // pred_region
        %s502 = smul.u32 32, %s15
        %p503 = scmp.lt.s32.totalorder %s502, 63
        %s504 = scalar_select %p503, %s502, 63
        %s505 = smul.addr %s504, 8
        %s506 = scalar_lea.vmem %s3, %s505
      $region44: #{unet_hdc_forward.27} parent=39 // pred_fallthru
        _
    $region40: #{unet_hdc_forward.27} parent=5 // pred_fallthru
      _
  $region6: #{unet_hdc_forward.27} parent=0 // loop_footer
    %s13 = sadd.s32 1, %s9
  $region7: #{unet_hdc_forward.27} parent=0 // loop_footer_branch
    %8 = sbr.rel target = $region3
  $region8: #{unet_hdc_forward.27} parent=0 // loop_exit
    _

// kernel: unet_hdc_forward.21
$region0: #{unet_hdc_forward.21}
  #allocation0 [shape = 'u32[]', space=smem, size = 0x4, offset = 0x4, fixed_abs, tag = 'smem constant byte address 0x4 - core index']
  #allocation1 [shape = 'u32[72,128]{1,0:T(1,128)}', space=vmem, size = 0x9000, scoped, tag = 'internal scratch']
  %s0 = inlined_call_operand.vmem [shape: bf16[512,12], index: 0, kind: input, shape index: {}]
  %s1 = inlined_call_operand.vmem [shape: bf16[12,128], index: 1, kind: input, shape index: {}]
  %s2 = inlined_call_operand.vmem [shape: f32[1,128], index: 2, kind: input, shape index: {}]
  %s3 = inlined_call_operand.vmem [shape: f32[512,128], index: 3, kind: output, shape index: {}]
  %s4 = sld [smem:[#allocation0]]
  $region45: #{unet_hdc_forward.21} parent=0
    _
  %s6 = ssub.s32 1, %s4
  %s7 = scalar_select 0, %s6, %s4
  loop: start=0, step=1, limit=4
  $region2: #{unet_hdc_forward.21} parent=0 // loop_pre_header
    _
  $region3: #{unet_hdc_forward.21} parent=0 // loop_header
    %s9 = sphi 0, %s13
    %p10 = scmp.ge.s32.totalorder %s9, 4
    %s19 = sphi 0, %s21
    %s22 = sphi 0, %s19
    %s23 = sphi 0, %s22
    %s39 = sphi 0, %s23
    %s43 = sphi 0, %s43
    %s45 = sphi 0, %s43
    %s46 = sphi 0, %s45
    %s60 = sphi 0, %s46
    %s64 = sphi 0, %s64
    %s66 = sphi 0, %s64
    %s67 = sphi 0, %s66
    %s81 = sphi 0, %s67
    %s87 = sphi 0, %s89
    %s90 = sphi 0, %s87
    %s91 = sphi 0, %s90
    %s107 = sphi 0, %s91
  $region4: #{unet_hdc_forward.21} parent=0 // loop_header_branch
    %12 = sbr.rel (%p10) target = $region8
  $region5: #{unet_hdc_forward.21} parent=0 // loop_body
    %s14 = ssub.s32 %s9, 1
    %s15 = ssub.s32 %s9, 2
    %s16 = sadd.s32 %s9, 1
    %s17 = ssub.s32 %s9, %s16
    %p18 = scmp.eq.s32.totalorder %s17, 0
    %s20 = sadd.s32 %s19, 1
    %s21 = scalar_select %p18, %s19, %s20
    %p24 = pneg %p18
    %p25 = scmp.eq.s32.totalorder %s9, 1
    %p26 = por %p24, %p25
    %p27 = scmp.ne.s32.totalorder %s19, %s22
    %p28 = scmp.eq.s32.totalorder %s9, 0
    %p29 = por %p27, %p28
    %p30 = scmp.ne.s32.totalorder %s19, %s22
    %p31 = scmp.eq.s32.totalorder %s14, 1
    %p32 = por %p30, %p31
    %p33 = scmp.ne.s32.totalorder %s22, %s23
    %p34 = scmp.eq.s32.totalorder %s14, 0
    %p35 = por %p33, %p34
    %p36 = scmp.ne.s32.totalorder %s22, %s23
    %p37 = scmp.eq.s32.totalorder %s15, 1
    %p38 = por %p36, %p37
    %p40 = scmp.ne.s32.totalorder %s23, %s39
    %p41 = scmp.eq.s32.totalorder %s15, 0
    %p42 = por %p40, %p41
    %s44 = sadd.s32 %s43, 1
    %p47 = scmp.eq.s32.totalorder %s9, 1
    %p48 = scmp.ne.s32.totalorder %s43, %s45
    %p49 = scmp.eq.s32.totalorder %s9, 0
    %p50 = por %p48, %p49
    %p51 = scmp.ne.s32.totalorder %s43, %s45
    %p52 = scmp.eq.s32.totalorder %s14, 1
    %p53 = por %p51, %p52
    %p54 = scmp.ne.s32.totalorder %s45, %s46
    %p55 = scmp.eq.s32.totalorder %s14, 0
    %p56 = por %p54, %p55
    %p57 = scmp.ne.s32.totalorder %s45, %s46
    %p58 = scmp.eq.s32.totalorder %s15, 1
    %p59 = por %p57, %p58
    %p61 = scmp.ne.s32.totalorder %s46, %s60
    %p62 = scmp.eq.s32.totalorder %s15, 0
    %p63 = por %p61, %p62
    %s65 = sadd.s32 %s64, 1
    %p68 = scmp.eq.s32.totalorder %s9, 1
    %p69 = scmp.ne.s32.totalorder %s64, %s66
    %p70 = scmp.eq.s32.totalorder %s9, 0
    %p71 = por %p69, %p70
    %p72 = scmp.ne.s32.totalorder %s64, %s66
    %p73 = scmp.eq.s32.totalorder %s14, 1
    %p74 = por %p72, %p73
    %p75 = scmp.ne.s32.totalorder %s66, %s67
    %p76 = scmp.eq.s32.totalorder %s14, 0
    %p77 = por %p75, %p76
    %p78 = scmp.ne.s32.totalorder %s66, %s67
    %p79 = scmp.eq.s32.totalorder %s15, 1
    %p80 = por %p78, %p79
    %p82 = scmp.ne.s32.totalorder %s67, %s81
    %p83 = scmp.eq.s32.totalorder %s15, 0
    %p84 = por %p82, %p83
    %s85 = ssub.s32 %s9, %s16
    %p86 = scmp.eq.s32.totalorder %s85, 0
    %s88 = sadd.s32 %s87, 1
    %s89 = scalar_select %p86, %s87, %s88
    %p92 = pneg %p86
    %p93 = scmp.eq.s32.totalorder %s9, 1
    %p94 = por %p92, %p93
    %p95 = scmp.ne.s32.totalorder %s87, %s90
    %p96 = scmp.eq.s32.totalorder %s9, 0
    %p97 = por %p95, %p96
    %p98 = scmp.ne.s32.totalorder %s87, %s90
    %p99 = scmp.eq.s32.totalorder %s14, 1
    %p100 = por %p98, %p99
    %p101 = scmp.ne.s32.totalorder %s90, %s91
    %p102 = scmp.eq.s32.totalorder %s14, 0
    %p103 = por %p101, %p102
    %p104 = scmp.ne.s32.totalorder %s90, %s91
    %p105 = scmp.eq.s32.totalorder %s15, 1
    %p106 = por %p104, %p105
    %p108 = scmp.ne.s32.totalorder %s91, %s107
    %p109 = scmp.eq.s32.totalorder %s15, 0
    %p110 = por %p108, %p109
    %p111 = scmp.le.s32.totalorder 1, %s9
    %p112 = scmp.lt.s32.totalorder %s9, 3
    %p113 = pnand %p111, %p112
    %p114 = pneg %p113
    // Predicated region
    $region9: #{unet_hdc_forward.21} parent=5 // pred_check
      _
    $region10: #{unet_hdc_forward.21} parent=5 // pred_check_branch
      %116 = sbr.rel (%p113) target = $region12
    $region11: #{unet_hdc_forward.21} parent=5 // pred_region
      %s117 = ssub.s32 %s9, 1
      // Predicated region
      $region13: #{unet_hdc_forward.21} parent=11 // pred_check
        %p118 = pneg %p56
      $region14: #{unet_hdc_forward.21} parent=11 // pred_check_branch
        %120 = sbr.rel (%p118) target = $region16
      $region15: #{unet_hdc_forward.21} parent=11 // pred_region
        _
      $region16: #{unet_hdc_forward.21} parent=11 // pred_fallthru
        _
      // Predicated region
      $region17: #{unet_hdc_forward.21} parent=11 // pred_check
        %p121 = pneg %p77
      $region18: #{unet_hdc_forward.21} parent=11 // pred_check_branch
        %123 = sbr.rel (%p121) target = $region20
      $region19: #{unet_hdc_forward.21} parent=11 // pred_region
        _
      $region20: #{unet_hdc_forward.21} parent=11 // pred_fallthru
        _
    $region12: #{unet_hdc_forward.21} parent=5 // pred_fallthru
      _
    %p124 = scmp.lt.s32.totalorder %s9, 2
    // Predicated region
    $region21: #{unet_hdc_forward.21} parent=5 // pred_check
      %p125 = pneg %p124
    $region22: #{unet_hdc_forward.21} parent=5 // pred_check_branch
      %127 = sbr.rel (%p125) target = $region24
    $region23: #{unet_hdc_forward.21} parent=5 // pred_region
      // Predicated region
      $region25: #{unet_hdc_forward.21} parent=23 // pred_check
        %p128 = pneg %p29
      $region26: #{unet_hdc_forward.21} parent=23 // pred_check_branch
        %130 = sbr.rel (%p128) target = $region28
      $region27: #{unet_hdc_forward.21} parent=23 // pred_region
        %s131 = smul.u32 32, %s9
        %p132 = scmp.lt.s32.totalorder %s131, 63
        %s133 = scalar_select %p132, %s131, 63
        %s134 = smul.addr %s133, 4
        %s135 = scalar_lea.vmem %s0, %s134
        %s136 = smul.u32 32, %s9
      $region28: #{unet_hdc_forward.21} parent=23 // pred_fallthru
        _
    $region24: #{unet_hdc_forward.21} parent=5 // pred_fallthru
      _
    %p137 = scmp.le.s32.totalorder 1, %s9
    %p138 = scmp.lt.s32.totalorder %s9, 3
    %p139 = pnand %p137, %p138
    %p140 = pneg %p139
    // Predicated region
    $region29: #{unet_hdc_forward.21} parent=5 // pred_check
      _
    $region30: #{unet_hdc_forward.21} parent=5 // pred_check_branch
      %142 = sbr.rel (%p139) target = $region32
    $region31: #{unet_hdc_forward.21} parent=5 // pred_region
      %s143 = ssub.s32 %s9, 1
      %s144 = smul.u32 32, %s14
      %p145 = scmp.lt.s32.totalorder %s144, 63
      %s146 = scalar_select %p145, %s144, 63
      %s147 = smul.addr %s146, 4
      %s148 = scalar_lea.vmem %s0, %s147
      %p149 = pneg %p35
      %p150 = pneg %p32
      %p151 = pneg %p56
      %p152 = pneg %p53
      %p153 = pneg %p77
      %p154 = pneg %p74
      %p155 = pneg %p103
      %p156 = pneg %p100
      %s157 = smul.u32 32, %s14
      %p158 = scmp.lt.s32.totalorder %s157, 63
      %s159 = scalar_select %p158, %s157, 63
      %s160 = smul.addr %s159, 8
      %s161 = scalar_lea.vmem %s3, %s160
      %s162 = smul.u32 32, %s14
      %p163 = scmp.lt.s32.totalorder %s162, 63
      %s164 = scalar_select %p163, %s162, 63
      %s165 = smul.addr %s164, 4
      %s166 = scalar_lea.vmem %s0, %s165
      %s167 = smul.u32 32, %s14
      %s168 = smul.u32 32, %s14
      %p169 = scmp.lt.s32.totalorder %s168, 63
      %s170 = scalar_select %p169, %s168, 63
      %s171 = smul.addr %s170, 8
      %s172 = scalar_lea.vmem %s3, %s171
      %s173 = smul.u32 32, %s14
      %v175 = vld [vmem:[%s166] sm:$0xf]
      %v176 = vld [vmem:[%s166 + $0x4] sm:$0xf]
      %v177 = vld [vmem:[%s166 + $0x8] sm:$0xf]
      %v178 = vld [vmem:[%s166 + $0xc] sm:$0xf]
      %v179 = vld [vmem:[%s166 + $0x10] sm:$0xf]
      %v180 = vld [vmem:[%s166 + $0x14] sm:$0xf]
      %v181 = vld [vmem:[%s166 + $0x18] sm:$0xf]
      %v182 = vld [vmem:[%s166 + $0x1c] sm:$0xf]
      %v183 = vld [vmem:[%s166 + $0x20] sm:$0xf]
      %v184 = vld [vmem:[%s166 + $0x24] sm:$0xf]
      %v185 = vld [vmem:[%s166 + $0x28] sm:$0xf]
      %v186 = vld [vmem:[%s166 + $0x2c] sm:$0xf]
      %v187 = vld [vmem:[%s166 + $0x30] sm:$0xf]
      %v188 = vld [vmem:[%s166 + $0x34] sm:$0xf]
      %v189 = vld [vmem:[%s166 + $0x38] sm:$0xf]
      %v190 = vld [vmem:[%s166 + $0x3c] sm:$0xf]
      %v191 = vld [vmem:[%s166 + $0x40] sm:$0xf]
      %v192 = vld [vmem:[%s166 + $0x44] sm:$0xf]
      %v193 = vld [vmem:[%s166 + $0x48] sm:$0xf]
      %v194 = vld [vmem:[%s166 + $0x4c] sm:$0xf]
      %v195 = vld [vmem:[%s166 + $0x50] sm:$0xf]
      %v196 = vld [vmem:[%s166 + $0x54] sm:$0xf]
      %v197 = vld [vmem:[%s166 + $0x58] sm:$0xf]
      %v198 = vld [vmem:[%s166 + $0x5c] sm:$0xf]
      %v199 = vld [vmem:[%s166 + $0x60] sm:$0xf]
      %v200 = vld [vmem:[%s166 + $0x64] sm:$0xf]
      %v201 = vld [vmem:[%s166 + $0x68] sm:$0xf]
      %v202 = vld [vmem:[%s166 + $0x6c] sm:$0xf]
      %v203 = vld [vmem:[%s166 + $0x70] sm:$0xf]
      %v204 = vld [vmem:[%s166 + $0x74] sm:$0xf]
      %v205 = vld [vmem:[%s166 + $0x78] sm:$0xf]
      %v206 = vld [vmem:[%s166 + $0x7c] sm:$0xf]
      %v207 = vld [vmem:[%s1] sm:$0xf]
      %v208 = vld [vmem:[%s1 + $0x4] sm:$0x3]
      %v209 = vld [vmem:[%s2] sm:$0x1]
      %v211 = vperm.slane %v209, 0
      %v245 = vunpack.c.l.b16 %v175
      %v246 = vunpack.c.l.b16 %v176
      %v247 = vunpack.c.l.b16 %v177
      %v248 = vunpack.c.l.b16 %v178
      %v249 = vunpack.c.l.b16 %v179
      %v250 = vunpack.c.l.b16 %v180
      %v251 = vunpack.c.l.b16 %v181
      %v252 = vunpack.c.l.b16 %v182
      %v253 = vunpack.c.l.b16 %v183
      %v254 = vunpack.c.l.b16 %v184
      %v255 = vunpack.c.l.b16 %v185
      %v256 = vunpack.c.l.b16 %v186
      %v257 = vunpack.c.l.b16 %v187
      %v258 = vunpack.c.l.b16 %v188
      %v259 = vunpack.c.l.b16 %v189
      %v260 = vunpack.c.l.b16 %v190
      %v261 = vunpack.c.l.b16 %v191
      %v262 = vunpack.c.l.b16 %v192
      %v263 = vunpack.c.l.b16 %v193
      %v264 = vunpack.c.l.b16 %v194
      %v265 = vunpack.c.l.b16 %v195
      %v266 = vunpack.c.l.b16 %v196
      %v267 = vunpack.c.l.b16 %v197
      %v268 = vunpack.c.l.b16 %v198
      %v269 = vunpack.c.l.b16 %v199
      %v270 = vunpack.c.l.b16 %v200
      %v271 = vunpack.c.l.b16 %v201
      %v272 = vunpack.c.l.b16 %v202
      %v273 = vunpack.c.l.b16 %v203
      %v274 = vunpack.c.l.b16 %v204
      %v275 = vunpack.c.l.b16 %v205
      %v276 = vunpack.c.l.b16 %v206
      %v277 = vpack.c.b16 %v246, %v245
      %v278 = vpack.c.b16 %v248, %v247
      %v279 = vpack.c.b16 %v250, %v249
      %v280 = vpack.c.b16 %v252, %v251
      %v281 = vpack.c.b16 %v254, %v253
      %v282 = vpack.c.b16 %v256, %v255
      %v283 = vpack.c.b16 %v258, %v257
      %v284 = vpack.c.b16 %v260, %v259
      %v285 = vpack.c.b16 %v262, %v261
      %v286 = vpack.c.b16 %v264, %v263
      %v287 = vpack.c.b16 %v266, %v265
      %v288 = vpack.c.b16 %v268, %v267
      %v289 = vpack.c.b16 %v270, %v269
      %v290 = vpack.c.b16 %v272, %v271
      %v291 = vpack.c.b16 %v274, %v273
      %v292 = vpack.c.b16 %v276, %v275
      %v295 = vunpack.c.l.b16 %v207
      %v296 = vunpack.c.l.b16 %v208
      %v297 = vpack.c.b16 %v296, %v295
      %vm298 = vcmask 97280
      %v300 = vsel %vm298, %v277, 0
      %v303 = vsel %vm298, %v278, 0
      %v306 = vsel %vm298, %v279, 0
      %v309 = vsel %vm298, %v280, 0
      %v312 = vsel %vm298, %v281, 0
      %v315 = vsel %vm298, %v282, 0
      %v318 = vsel %vm298, %v283, 0
      %v321 = vsel %vm298, %v284, 0
      %v324 = vsel %vm298, %v285, 0
      %v327 = vsel %vm298, %v286, 0
      %v330 = vsel %vm298, %v287, 0
      %v333 = vsel %vm298, %v288, 0
      %v336 = vsel %vm298, %v289, 0
      %v339 = vsel %vm298, %v290, 0
      %v342 = vsel %vm298, %v291, 0
      %v345 = vsel %vm298, %v292, 0
      %vm347 = vcmask 1045504
      %v349 = vsel %vm347, %v297, 0
      %351 = vmatpush.bf16.msra.mxu0 0
      %352 = vmatpush.bf16.msra.mxu0 0
      %353 = vmatpush.bf16.msra.mxu0 0
      %354 = vmatpush.bf16.msra.mxu0 0
      %355 = vmatpush.bf16.msra.mxu0 0
      %356 = vmatpush.bf16.msra.mxu0 0
      %357 = vmatpush.bf16.msra.mxu0 0
      %358 = vmatpush.bf16.msra.mxu0 %v349
      %359 = vmatmul.bf16.gmra.mxu0 %v300
      %v360 = vpop.f32.mrf.mxu0
      %v361 = vadd.f32 %v211, %v360
      %v362 = vpop.f32.mrf.mxu0
      %v363 = vadd.f32 %v211, %v362
      %364 = vmatmul.bf16.gmra.mxu0 %v303
      %v365 = vpop.f32.mrf.mxu0
      %v366 = vadd.f32 %v211, %v365
      %v367 = vpop.f32.mrf.mxu0
      %v368 = vadd.f32 %v211, %v367
      %369 = vmatmul.bf16.gmra.mxu0 %v306
      %v370 = vpop.f32.mrf.mxu0
      %v371 = vadd.f32 %v211, %v370
      %v372 = vpop.f32.mrf.mxu0
      %v373 = vadd.f32 %v211, %v372
      %374 = vmatmul.bf16.gmra.mxu0 %v309
      %v375 = vpop.f32.mrf.mxu0
      %v376 = vadd.f32 %v211, %v375
      %v377 = vpop.f32.mrf.mxu0
      %v378 = vadd.f32 %v211, %v377
      %379 = vmatmul.bf16.gmra.mxu0 %v312
      %v380 = vpop.f32.mrf.mxu0
      %v381 = vadd.f32 %v211, %v380
      %v382 = vpop.f32.mrf.mxu0
      %v383 = vadd.f32 %v211, %v382
      %384 = vmatmul.bf16.gmra.mxu0 %v315
      %v385 = vpop.f32.mrf.mxu0
      %v386 = vadd.f32 %v211, %v385
      %v387 = vpop.f32.mrf.mxu0
      %v388 = vadd.f32 %v211, %v387
      %389 = vmatmul.bf16.gmra.mxu0 %v318
      %v390 = vpop.f32.mrf.mxu0
      %v391 = vadd.f32 %v211, %v390
      %v392 = vpop.f32.mrf.mxu0
      %v393 = vadd.f32 %v211, %v392
      %394 = vmatmul.bf16.gmra.mxu0 %v321
      %v395 = vpop.f32.mrf.mxu0
      %v396 = vadd.f32 %v211, %v395
      %v397 = vpop.f32.mrf.mxu0
      %v398 = vadd.f32 %v211, %v397
      %399 = vmatmul.bf16.gmra.mxu0 %v324
      %v400 = vpop.f32.mrf.mxu0
      %v401 = vadd.f32 %v211, %v400
      %v402 = vpop.f32.mrf.mxu0
      %v403 = vadd.f32 %v211, %v402
      %404 = vmatmul.bf16.gmra.mxu0 %v327
      %v405 = vpop.f32.mrf.mxu0
      %v406 = vadd.f32 %v211, %v405
      %v407 = vpop.f32.mrf.mxu0
      %v408 = vadd.f32 %v211, %v407
      %409 = vmatmul.bf16.gmra.mxu0 %v330
      %v410 = vpop.f32.mrf.mxu0
      %v411 = vadd.f32 %v211, %v410
      %v412 = vpop.f32.mrf.mxu0
      %v413 = vadd.f32 %v211, %v412
      %414 = vmatmul.bf16.gmra.mxu0 %v333
      %v415 = vpop.f32.mrf.mxu0
      %v416 = vadd.f32 %v211, %v415
      %v417 = vpop.f32.mrf.mxu0
      %v418 = vadd.f32 %v211, %v417
      %419 = vmatmul.bf16.gmra.mxu0 %v336
      %v420 = vpop.f32.mrf.mxu0
      %v421 = vadd.f32 %v211, %v420
      %v422 = vpop.f32.mrf.mxu0
      %v423 = vadd.f32 %v211, %v422
      %424 = vmatmul.bf16.gmra.mxu0 %v339
      %v425 = vpop.f32.mrf.mxu0
      %v426 = vadd.f32 %v211, %v425
      %v427 = vpop.f32.mrf.mxu0
      %v428 = vadd.f32 %v211, %v427
      %429 = vmatmul.bf16.gmra.mxu0 %v342
      %v430 = vpop.f32.mrf.mxu0
      %v431 = vadd.f32 %v211, %v430
      %v432 = vpop.f32.mrf.mxu0
      %v433 = vadd.f32 %v211, %v432
      %434 = vmatmul.bf16.gmra.mxu0 %v345
      %v435 = vpop.f32.mrf.mxu0
      %v436 = vadd.f32 %v211, %v435
      %v437 = vpop.f32.mrf.mxu0
      %v438 = vadd.f32 %v211, %v437
      %439 = vdwg.mxu0
      %v440 = vmax.f32 %v361, 0.0
      %v441 = vmax.f32 %v363, 0.0
      %v442 = vmax.f32 %v366, 0.0
      %v443 = vmax.f32 %v368, 0.0
      %v444 = vmax.f32 %v371, 0.0
      %v445 = vmax.f32 %v373, 0.0
      %v446 = vmax.f32 %v376, 0.0
      %v447 = vmax.f32 %v378, 0.0
      %v448 = vmax.f32 %v381, 0.0
      %v449 = vmax.f32 %v383, 0.0
      %v450 = vmax.f32 %v386, 0.0
      %v451 = vmax.f32 %v388, 0.0
      %v452 = vmax.f32 %v391, 0.0
      %v453 = vmax.f32 %v393, 0.0
      %v454 = vmax.f32 %v396, 0.0
      %v455 = vmax.f32 %v398, 0.0
      %v456 = vmax.f32 %v401, 0.0
      %v457 = vmax.f32 %v403, 0.0
      %v458 = vmax.f32 %v406, 0.0
      %v459 = vmax.f32 %v408, 0.0
      %v460 = vmax.f32 %v411, 0.0
      %v461 = vmax.f32 %v413, 0.0
      %v462 = vmax.f32 %v416, 0.0
      %v463 = vmax.f32 %v418, 0.0
      %v464 = vmax.f32 %v421, 0.0
      %v465 = vmax.f32 %v423, 0.0
      %v466 = vmax.f32 %v426, 0.0
      %v467 = vmax.f32 %v428, 0.0
      %v468 = vmax.f32 %v431, 0.0
      %v469 = vmax.f32 %v433, 0.0
      %v470 = vmax.f32 %v436, 0.0
      %v471 = vmax.f32 %v438, 0.0
      %472 = vst [vmem:[%s172] sm:$0xff] %v440
      %473 = vst [vmem:[%s172 + $0x8] sm:$0xff] %v441
      %474 = vst [vmem:[%s172 + $0x10] sm:$0xff] %v442
      %475 = vst [vmem:[%s172 + $0x18] sm:$0xff] %v443
      %476 = vst [vmem:[%s172 + $0x20] sm:$0xff] %v444
      %477 = vst [vmem:[%s172 + $0x28] sm:$0xff] %v445
      %478 = vst [vmem:[%s172 + $0x30] sm:$0xff] %v446
      %479 = vst [vmem:[%s172 + $0x38] sm:$0xff] %v447
      %480 = vst [vmem:[%s172 + $0x40] sm:$0xff] %v448
      %481 = vst [vmem:[%s172 + $0x48] sm:$0xff] %v449
      %482 = vst [vmem:[%s172 + $0x50] sm:$0xff] %v450
      %483 = vst [vmem:[%s172 + $0x58] sm:$0xff] %v451
      %484 = vst [vmem:[%s172 + $0x60] sm:$0xff] %v452
      %485 = vst [vmem:[%s172 + $0x68] sm:$0xff] %v453
      %486 = vst [vmem:[%s172 + $0x70] sm:$0xff] %v454
      %487 = vst [vmem:[%s172 + $0x78] sm:$0xff] %v455
      %488 = vst [vmem:[%s172 + $0x80] sm:$0xff] %v456
      %489 = vst [vmem:[%s172 + $0x88] sm:$0xff] %v457
      %490 = vst [vmem:[%s172 + $0x90] sm:$0xff] %v458
      %491 = vst [vmem:[%s172 + $0x98] sm:$0xff] %v459
      %492 = vst [vmem:[%s172 + $0xa0] sm:$0xff] %v460
      %493 = vst [vmem:[%s172 + $0xa8] sm:$0xff] %v461
      %494 = vst [vmem:[%s172 + $0xb0] sm:$0xff] %v462
      %495 = vst [vmem:[%s172 + $0xb8] sm:$0xff] %v463
      %496 = vst [vmem:[%s172 + $0xc0] sm:$0xff] %v464
      %497 = vst [vmem:[%s172 + $0xc8] sm:$0xff] %v465
      %498 = vst [vmem:[%s172 + $0xd0] sm:$0xff] %v466
      %499 = vst [vmem:[%s172 + $0xd8] sm:$0xff] %v467
      %500 = vst [vmem:[%s172 + $0xe0] sm:$0xff] %v468
      %501 = vst [vmem:[%s172 + $0xe8] sm:$0xff] %v469
      %502 = vst [vmem:[%s172 + $0xf0] sm:$0xff] %v470
      %503 = vst [vmem:[%s172 + $0xf8] sm:$0xff] %v471
      %s504 = smul.u32 32, %s14
      %p505 = scmp.lt.s32.totalorder %s504, 63
      %s506 = scalar_select %p505, %s504, 63
      %s507 = smul.addr %s506, 8
      %s508 = scalar_lea.vmem %s3, %s507
      // Predicated region
      $region33: #{unet_hdc_forward.21} parent=31 // pred_check
        %p509 = pneg %p100
      $region34: #{unet_hdc_forward.21} parent=31 // pred_check_branch
        %511 = sbr.rel (%p509) target = $region36
      $region35: #{unet_hdc_forward.21} parent=31 // pred_region
        %s512 = smul.u32 32, %s14
      $region36: #{unet_hdc_forward.21} parent=31 // pred_fallthru
        _
    $region32: #{unet_hdc_forward.21} parent=5 // pred_fallthru
      _
    %p513 = scmp.le.s32.totalorder 2, %s9
    // Predicated region
    $region37: #{unet_hdc_forward.21} parent=5 // pred_check
      %p514 = pneg %p513
    $region38: #{unet_hdc_forward.21} parent=5 // pred_check_branch
      %516 = sbr.rel (%p514) target = $region40
    $region39: #{unet_hdc_forward.21} parent=5 // pred_region
      %s517 = ssub.s32 %s9, 2
      // Predicated region
      $region41: #{unet_hdc_forward.21} parent=39 // pred_check
        %p518 = pneg %p106
      $region42: #{unet_hdc_forward.21} parent=39 // pred_check_branch
        %520 = sbr.rel (%p518) target = $region44
      $region43: #{unet_hdc_forward.21} parent=39 // pred_region
        %s521 = smul.u32 32, %s15
        %p522 = scmp.lt.s32.totalorder %s521, 63
        %s523 = scalar_select %p522, %s521, 63
        %s524 = smul.addr %s523, 8
        %s525 = scalar_lea.vmem %s3, %s524
      $region44: #{unet_hdc_forward.21} parent=39 // pred_fallthru
        _
    $region40: #{unet_hdc_forward.21} parent=5 // pred_fallthru
      _
  $region6: #{unet_hdc_forward.21} parent=0 // loop_footer
    %s13 = sadd.s32 1, %s9
  $region7: #{unet_hdc_forward.21} parent=0 // loop_footer_branch
    %8 = sbr.rel target = $region3
  $region8: #{unet_hdc_forward.21} parent=0 // loop_exit
    _

// kernel: unet_hdc_forward.28
$region0: #{unet_hdc_forward.28}
  #allocation0 [shape = 'u32[]', space=smem, size = 0x4, offset = 0x4, fixed_abs, tag = 'smem constant byte address 0x4 - core index']
  #allocation1 [shape = 'u32[72,128]{1,0:T(1,128)}', space=vmem, size = 0x9000, scoped, tag = 'internal scratch']
  %s0 = inlined_call_operand.vmem [shape: bf16[512,16], index: 0, kind: input, shape index: {}]
  %s1 = inlined_call_operand.vmem [shape: bf16[16,128], index: 1, kind: input, shape index: {}]
  %s2 = inlined_call_operand.vmem [shape: f32[1,128], index: 2, kind: input, shape index: {}]
  %s3 = inlined_call_operand.vmem [shape: bf16[128,128], index: 3, kind: input, shape index: {}]
  %s4 = inlined_call_operand.vmem [shape: f32[1,128], index: 4, kind: input, shape index: {}]
  %s5 = inlined_call_operand.vmem [shape: f32[512,128], index: 5, kind: output, shape index: {}]
  %s6 = sld [smem:[#allocation0]]
  $region53: #{unet_hdc_forward.28} parent=0
    _
  %s8 = ssub.s32 1, %s6
  %s9 = scalar_select 0, %s8, %s6
  loop: start=0, step=1, limit=4
  $region2: #{unet_hdc_forward.28} parent=0 // loop_pre_header
    _
  $region3: #{unet_hdc_forward.28} parent=0 // loop_header
    %s11 = sphi 0, %s15
    %p12 = scmp.ge.s32.totalorder %s11, 4
    %s21 = sphi 0, %s23
    %s24 = sphi 0, %s21
    %s25 = sphi 0, %s24
    %s41 = sphi 0, %s25
    %s45 = sphi 0, %s45
    %s47 = sphi 0, %s45
    %s48 = sphi 0, %s47
    %s62 = sphi 0, %s48
    %s66 = sphi 0, %s66
    %s68 = sphi 0, %s66
    %s69 = sphi 0, %s68
    %s83 = sphi 0, %s69
    %s87 = sphi 0, %s87
    %s89 = sphi 0, %s87
    %s90 = sphi 0, %s89
    %s104 = sphi 0, %s90
    %s108 = sphi 0, %s108
    %s110 = sphi 0, %s108
    %s111 = sphi 0, %s110
    %s125 = sphi 0, %s111
    %s131 = sphi 0, %s133
    %s134 = sphi 0, %s131
    %s135 = sphi 0, %s134
    %s151 = sphi 0, %s135
  $region4: #{unet_hdc_forward.28} parent=0 // loop_header_branch
    %14 = sbr.rel (%p12) target = $region8
  $region5: #{unet_hdc_forward.28} parent=0 // loop_body
    %s16 = ssub.s32 %s11, 1
    %s17 = ssub.s32 %s11, 2
    %s18 = sadd.s32 %s11, 1
    %s19 = ssub.s32 %s11, %s18
    %p20 = scmp.eq.s32.totalorder %s19, 0
    %s22 = sadd.s32 %s21, 1
    %s23 = scalar_select %p20, %s21, %s22
    %p26 = pneg %p20
    %p27 = scmp.eq.s32.totalorder %s11, 1
    %p28 = por %p26, %p27
    %p29 = scmp.ne.s32.totalorder %s21, %s24
    %p30 = scmp.eq.s32.totalorder %s11, 0
    %p31 = por %p29, %p30
    %p32 = scmp.ne.s32.totalorder %s21, %s24
    %p33 = scmp.eq.s32.totalorder %s16, 1
    %p34 = por %p32, %p33
    %p35 = scmp.ne.s32.totalorder %s24, %s25
    %p36 = scmp.eq.s32.totalorder %s16, 0
    %p37 = por %p35, %p36
    %p38 = scmp.ne.s32.totalorder %s24, %s25
    %p39 = scmp.eq.s32.totalorder %s17, 1
    %p40 = por %p38, %p39
    %p42 = scmp.ne.s32.totalorder %s25, %s41
    %p43 = scmp.eq.s32.totalorder %s17, 0
    %p44 = por %p42, %p43
    %s46 = sadd.s32 %s45, 1
    %p49 = scmp.eq.s32.totalorder %s11, 1
    %p50 = scmp.ne.s32.totalorder %s45, %s47
    %p51 = scmp.eq.s32.totalorder %s11, 0
    %p52 = por %p50, %p51
    %p53 = scmp.ne.s32.totalorder %s45, %s47
    %p54 = scmp.eq.s32.totalorder %s16, 1
    %p55 = por %p53, %p54
    %p56 = scmp.ne.s32.totalorder %s47, %s48
    %p57 = scmp.eq.s32.totalorder %s16, 0
    %p58 = por %p56, %p57
    %p59 = scmp.ne.s32.totalorder %s47, %s48
    %p60 = scmp.eq.s32.totalorder %s17, 1
    %p61 = por %p59, %p60
    %p63 = scmp.ne.s32.totalorder %s48, %s62
    %p64 = scmp.eq.s32.totalorder %s17, 0
    %p65 = por %p63, %p64
    %s67 = sadd.s32 %s66, 1
    %p70 = scmp.eq.s32.totalorder %s11, 1
    %p71 = scmp.ne.s32.totalorder %s66, %s68
    %p72 = scmp.eq.s32.totalorder %s11, 0
    %p73 = por %p71, %p72
    %p74 = scmp.ne.s32.totalorder %s66, %s68
    %p75 = scmp.eq.s32.totalorder %s16, 1
    %p76 = por %p74, %p75
    %p77 = scmp.ne.s32.totalorder %s68, %s69
    %p78 = scmp.eq.s32.totalorder %s16, 0
    %p79 = por %p77, %p78
    %p80 = scmp.ne.s32.totalorder %s68, %s69
    %p81 = scmp.eq.s32.totalorder %s17, 1
    %p82 = por %p80, %p81
    %p84 = scmp.ne.s32.totalorder %s69, %s83
    %p85 = scmp.eq.s32.totalorder %s17, 0
    %p86 = por %p84, %p85
    %s88 = sadd.s32 %s87, 1
    %p91 = scmp.eq.s32.totalorder %s11, 1
    %p92 = scmp.ne.s32.totalorder %s87, %s89
    %p93 = scmp.eq.s32.totalorder %s11, 0
    %p94 = por %p92, %p93
    %p95 = scmp.ne.s32.totalorder %s87, %s89
    %p96 = scmp.eq.s32.totalorder %s16, 1
    %p97 = por %p95, %p96
    %p98 = scmp.ne.s32.totalorder %s89, %s90
    %p99 = scmp.eq.s32.totalorder %s16, 0
    %p100 = por %p98, %p99
    %p101 = scmp.ne.s32.totalorder %s89, %s90
    %p102 = scmp.eq.s32.totalorder %s17, 1
    %p103 = por %p101, %p102
    %p105 = scmp.ne.s32.totalorder %s90, %s104
    %p106 = scmp.eq.s32.totalorder %s17, 0
    %p107 = por %p105, %p106
    %s109 = sadd.s32 %s108, 1
    %p112 = scmp.eq.s32.totalorder %s11, 1
    %p113 = scmp.ne.s32.totalorder %s108, %s110
    %p114 = scmp.eq.s32.totalorder %s11, 0
    %p115 = por %p113, %p114
    %p116 = scmp.ne.s32.totalorder %s108, %s110
    %p117 = scmp.eq.s32.totalorder %s16, 1
    %p118 = por %p116, %p117
    %p119 = scmp.ne.s32.totalorder %s110, %s111
    %p120 = scmp.eq.s32.totalorder %s16, 0
    %p121 = por %p119, %p120
    %p122 = scmp.ne.s32.totalorder %s110, %s111
    %p123 = scmp.eq.s32.totalorder %s17, 1
    %p124 = por %p122, %p123
    %p126 = scmp.ne.s32.totalorder %s111, %s125
    %p127 = scmp.eq.s32.totalorder %s17, 0
    %p128 = por %p126, %p127
    %s129 = ssub.s32 %s11, %s18
    %p130 = scmp.eq.s32.totalorder %s129, 0
    %s132 = sadd.s32 %s131, 1
    %s133 = scalar_select %p130, %s131, %s132
    %p136 = pneg %p130
    %p137 = scmp.eq.s32.totalorder %s11, 1
    %p138 = por %p136, %p137
    %p139 = scmp.ne.s32.totalorder %s131, %s134
    %p140 = scmp.eq.s32.totalorder %s11, 0
    %p141 = por %p139, %p140
    %p142 = scmp.ne.s32.totalorder %s131, %s134
    %p143 = scmp.eq.s32.totalorder %s16, 1
    %p144 = por %p142, %p143
    %p145 = scmp.ne.s32.totalorder %s134, %s135
    %p146 = scmp.eq.s32.totalorder %s16, 0
    %p147 = por %p145, %p146
    %p148 = scmp.ne.s32.totalorder %s134, %s135
    %p149 = scmp.eq.s32.totalorder %s17, 1
    %p150 = por %p148, %p149
    %p152 = scmp.ne.s32.totalorder %s135, %s151
    %p153 = scmp.eq.s32.totalorder %s17, 0
    %p154 = por %p152, %p153
    %p155 = scmp.le.s32.totalorder 1, %s11
    %p156 = scmp.lt.s32.totalorder %s11, 3
    %p157 = pnand %p155, %p156
    %p158 = pneg %p157
    // Predicated region
    $region9: #{unet_hdc_forward.28} parent=5 // pred_check
      _
    $region10: #{unet_hdc_forward.28} parent=5 // pred_check_branch
      %160 = sbr.rel (%p157) target = $region12
    $region11: #{unet_hdc_forward.28} parent=5 // pred_region
      %s161 = ssub.s32 %s11, 1
      // Predicated region
      $region13: #{unet_hdc_forward.28} parent=11 // pred_check
        %p162 = pneg %p58
      $region14: #{unet_hdc_forward.28} parent=11 // pred_check_branch
        %164 = sbr.rel (%p162) target = $region16
      $region15: #{unet_hdc_forward.28} parent=11 // pred_region
        _
      $region16: #{unet_hdc_forward.28} parent=11 // pred_fallthru
        _
      // Predicated region
      $region17: #{unet_hdc_forward.28} parent=11 // pred_check
        %p165 = pneg %p79
      $region18: #{unet_hdc_forward.28} parent=11 // pred_check_branch
        %167 = sbr.rel (%p165) target = $region20
      $region19: #{unet_hdc_forward.28} parent=11 // pred_region
        _
      $region20: #{unet_hdc_forward.28} parent=11 // pred_fallthru
        _
      // Predicated region
      $region21: #{unet_hdc_forward.28} parent=11 // pred_check
        %p168 = pneg %p100
      $region22: #{unet_hdc_forward.28} parent=11 // pred_check_branch
        %170 = sbr.rel (%p168) target = $region24
      $region23: #{unet_hdc_forward.28} parent=11 // pred_region
        _
      $region24: #{unet_hdc_forward.28} parent=11 // pred_fallthru
        _
      // Predicated region
      $region25: #{unet_hdc_forward.28} parent=11 // pred_check
        %p171 = pneg %p121
      $region26: #{unet_hdc_forward.28} parent=11 // pred_check_branch
        %173 = sbr.rel (%p171) target = $region28
      $region27: #{unet_hdc_forward.28} parent=11 // pred_region
        _
      $region28: #{unet_hdc_forward.28} parent=11 // pred_fallthru
        _
    $region12: #{unet_hdc_forward.28} parent=5 // pred_fallthru
      _
    %p174 = scmp.lt.s32.totalorder %s11, 2
    // Predicated region
    $region29: #{unet_hdc_forward.28} parent=5 // pred_check
      %p175 = pneg %p174
    $region30: #{unet_hdc_forward.28} parent=5 // pred_check_branch
      %177 = sbr.rel (%p175) target = $region32
    $region31: #{unet_hdc_forward.28} parent=5 // pred_region
      // Predicated region
      $region33: #{unet_hdc_forward.28} parent=31 // pred_check
        %p178 = pneg %p31
      $region34: #{unet_hdc_forward.28} parent=31 // pred_check_branch
        %180 = sbr.rel (%p178) target = $region36
      $region35: #{unet_hdc_forward.28} parent=31 // pred_region
        %s181 = smul.u32 32, %s11
        %p182 = scmp.lt.s32.totalorder %s181, 63
        %s183 = scalar_select %p182, %s181, 63
        %s184 = smul.addr %s183, 4
        %s185 = scalar_lea.vmem %s0, %s184
        %s186 = smul.u32 32, %s11
      $region36: #{unet_hdc_forward.28} parent=31 // pred_fallthru
        _
    $region32: #{unet_hdc_forward.28} parent=5 // pred_fallthru
      _
    %p187 = scmp.le.s32.totalorder 1, %s11
    %p188 = scmp.lt.s32.totalorder %s11, 3
    %p189 = pnand %p187, %p188
    %p190 = pneg %p189
    // Predicated region
    $region37: #{unet_hdc_forward.28} parent=5 // pred_check
      _
    $region38: #{unet_hdc_forward.28} parent=5 // pred_check_branch
      %192 = sbr.rel (%p189) target = $region40
    $region39: #{unet_hdc_forward.28} parent=5 // pred_region
      %s193 = ssub.s32 %s11, 1
      %s194 = smul.u32 32, %s16
      %p195 = scmp.lt.s32.totalorder %s194, 63
      %s196 = scalar_select %p195, %s194, 63
      %s197 = smul.addr %s196, 4
      %s198 = scalar_lea.vmem %s0, %s197
      %p199 = pneg %p37
      %p200 = pneg %p34
      %p201 = pneg %p58
      %p202 = pneg %p55
      %p203 = pneg %p79
      %p204 = pneg %p76
      %p205 = pneg %p100
      %p206 = pneg %p97
      %p207 = pneg %p121
      %p208 = pneg %p118
      %p209 = pneg %p147
      %p210 = pneg %p144
      %s211 = smul.u32 32, %s16
      %p212 = scmp.lt.s32.totalorder %s211, 63
      %s213 = scalar_select %p212, %s211, 63
      %s214 = smul.addr %s213, 8
      %s215 = scalar_lea.vmem %s5, %s214
      %s216 = smul.u32 32, %s16
      %p217 = scmp.lt.s32.totalorder %s216, 63
      %s218 = scalar_select %p217, %s216, 63
      %s219 = smul.addr %s218, 4
      %s220 = scalar_lea.vmem %s0, %s219
      %s221 = smul.u32 32, %s16
      %s222 = smul.u32 32, %s16
      %p223 = scmp.lt.s32.totalorder %s222, 63
      %s224 = scalar_select %p223, %s222, 63
      %s225 = smul.addr %s224, 8
      %s226 = scalar_lea.vmem %s5, %s225
      %s227 = smul.u32 32, %s16
      %v229 = vld [vmem:[%s220] sm:$0xf]
      %v230 = vld [vmem:[%s220 + $0x4] sm:$0xf]
      %v231 = vld [vmem:[%s220 + $0x8] sm:$0xf]
      %v232 = vld [vmem:[%s220 + $0xc] sm:$0xf]
      %v233 = vld [vmem:[%s220 + $0x10] sm:$0xf]
      %v234 = vld [vmem:[%s220 + $0x14] sm:$0xf]
      %v235 = vld [vmem:[%s220 + $0x18] sm:$0xf]
      %v236 = vld [vmem:[%s220 + $0x1c] sm:$0xf]
      %v237 = vld [vmem:[%s220 + $0x20] sm:$0xf]
      %v238 = vld [vmem:[%s220 + $0x24] sm:$0xf]
      %v239 = vld [vmem:[%s220 + $0x28] sm:$0xf]
      %v240 = vld [vmem:[%s220 + $0x2c] sm:$0xf]
      %v241 = vld [vmem:[%s220 + $0x30] sm:$0xf]
      %v242 = vld [vmem:[%s220 + $0x34] sm:$0xf]
      %v243 = vld [vmem:[%s220 + $0x38] sm:$0xf]
      %v244 = vld [vmem:[%s220 + $0x3c] sm:$0xf]
      %v245 = vld [vmem:[%s220 + $0x40] sm:$0xf]
      %v246 = vld [vmem:[%s220 + $0x44] sm:$0xf]
      %v247 = vld [vmem:[%s220 + $0x48] sm:$0xf]
      %v248 = vld [vmem:[%s220 + $0x4c] sm:$0xf]
      %v249 = vld [vmem:[%s220 + $0x50] sm:$0xf]
      %v250 = vld [vmem:[%s220 + $0x54] sm:$0xf]
      %v251 = vld [vmem:[%s220 + $0x58] sm:$0xf]
      %v252 = vld [vmem:[%s220 + $0x5c] sm:$0xf]
      %v253 = vld [vmem:[%s220 + $0x60] sm:$0xf]
      %v254 = vld [vmem:[%s220 + $0x64] sm:$0xf]
      %v255 = vld [vmem:[%s220 + $0x68] sm:$0xf]
      %v256 = vld [vmem:[%s220 + $0x6c] sm:$0xf]
      %v257 = vld [vmem:[%s220 + $0x70] sm:$0xf]
      %v258 = vld [vmem:[%s220 + $0x74] sm:$0xf]
      %v259 = vld [vmem:[%s220 + $0x78] sm:$0xf]
      %v260 = vld [vmem:[%s220 + $0x7c] sm:$0xf]
      %v261 = vld [vmem:[%s1] sm:$0xf]
      %v262 = vld [vmem:[%s1 + $0x4] sm:$0xf]
      %v263 = vld [vmem:[%s2] sm:$0x1]
      %v265 = vperm.slane %v263, 0
      %v299 = vunpack.c.l.b16 %v229
      %v300 = vunpack.c.l.b16 %v230
      %v301 = vunpack.c.l.b16 %v231
      %v302 = vunpack.c.l.b16 %v232
      %v303 = vunpack.c.l.b16 %v233
      %v304 = vunpack.c.l.b16 %v234
      %v305 = vunpack.c.l.b16 %v235
      %v306 = vunpack.c.l.b16 %v236
      %v307 = vunpack.c.l.b16 %v237
      %v308 = vunpack.c.l.b16 %v238
      %v309 = vunpack.c.l.b16 %v239
      %v310 = vunpack.c.l.b16 %v240
      %v311 = vunpack.c.l.b16 %v241
      %v312 = vunpack.c.l.b16 %v242
      %v313 = vunpack.c.l.b16 %v243
      %v314 = vunpack.c.l.b16 %v244
      %v315 = vunpack.c.l.b16 %v245
      %v316 = vunpack.c.l.b16 %v246
      %v317 = vunpack.c.l.b16 %v247
      %v318 = vunpack.c.l.b16 %v248
      %v319 = vunpack.c.l.b16 %v249
      %v320 = vunpack.c.l.b16 %v250
      %v321 = vunpack.c.l.b16 %v251
      %v322 = vunpack.c.l.b16 %v252
      %v323 = vunpack.c.l.b16 %v253
      %v324 = vunpack.c.l.b16 %v254
      %v325 = vunpack.c.l.b16 %v255
      %v326 = vunpack.c.l.b16 %v256
      %v327 = vunpack.c.l.b16 %v257
      %v328 = vunpack.c.l.b16 %v258
      %v329 = vunpack.c.l.b16 %v259
      %v330 = vunpack.c.l.b16 %v260
      %v331 = vpack.c.b16 %v300, %v299
      %v332 = vpack.c.b16 %v302, %v301
      %v333 = vpack.c.b16 %v304, %v303
      %v334 = vpack.c.b16 %v306, %v305
      %v335 = vpack.c.b16 %v308, %v307
      %v336 = vpack.c.b16 %v310, %v309
      %v337 = vpack.c.b16 %v312, %v311
      %v338 = vpack.c.b16 %v314, %v313
      %v339 = vpack.c.b16 %v316, %v315
      %v340 = vpack.c.b16 %v318, %v317
      %v341 = vpack.c.b16 %v320, %v319
      %v342 = vpack.c.b16 %v322, %v321
      %v343 = vpack.c.b16 %v324, %v323
      %v344 = vpack.c.b16 %v326, %v325
      %v345 = vpack.c.b16 %v328, %v327
      %v346 = vpack.c.b16 %v330, %v329
      %v349 = vunpack.c.l.b16 %v261
      %v350 = vunpack.c.l.b16 %v262
      %v351 = vpack.c.b16 %v350, %v349
      %vm353 = vcmask 130048
      %v355 = vsel %vm353, %v331, 0
      %v358 = vsel %vm353, %v332, 0
      %v361 = vsel %vm353, %v333, 0
      %v364 = vsel %vm353, %v334, 0
      %v367 = vsel %vm353, %v335, 0
      %v370 = vsel %vm353, %v336, 0
      %v373 = vsel %vm353, %v337, 0
      %v376 = vsel %vm353, %v338, 0
      %v379 = vsel %vm353, %v339, 0
      %v382 = vsel %vm353, %v340, 0
      %v385 = vsel %vm353, %v341, 0
      %v388 = vsel %vm353, %v342, 0
      %v391 = vsel %vm353, %v343, 0
      %v394 = vsel %vm353, %v344, 0
      %v397 = vsel %vm353, %v345, 0
      %v400 = vsel %vm353, %v346, 0
      %402 = vmatpush.bf16.msra.mxu0 0
      %403 = vmatpush.bf16.msra.mxu0 0
      %404 = vmatpush.bf16.msra.mxu0 0
      %405 = vmatpush.bf16.msra.mxu0 0
      %406 = vmatpush.bf16.msra.mxu0 0
      %407 = vmatpush.bf16.msra.mxu0 0
      %408 = vmatpush.bf16.msra.mxu0 0
      %409 = vmatpush.bf16.msra.mxu0 %v351
      %410 = vmatmul.bf16.gmra.mxu0 %v355
      %v411 = vpop.f32.mrf.mxu0
      %v412 = vadd.f32 %v265, %v411
      %v413 = vpop.f32.mrf.mxu0
      %v414 = vadd.f32 %v265, %v413
      %415 = vmatmul.bf16.gmra.mxu0 %v358
      %v416 = vpop.f32.mrf.mxu0
      %v417 = vadd.f32 %v265, %v416
      %v418 = vpop.f32.mrf.mxu0
      %v419 = vadd.f32 %v265, %v418
      %420 = vmatmul.bf16.gmra.mxu0 %v361
      %v421 = vpop.f32.mrf.mxu0
      %v422 = vadd.f32 %v265, %v421
      %v423 = vpop.f32.mrf.mxu0
      %v424 = vadd.f32 %v265, %v423
      %425 = vmatmul.bf16.gmra.mxu0 %v364
      %v426 = vpop.f32.mrf.mxu0
      %v427 = vadd.f32 %v265, %v426
      %v428 = vpop.f32.mrf.mxu0
      %v429 = vadd.f32 %v265, %v428
      %430 = vmatmul.bf16.gmra.mxu0 %v367
      %v431 = vpop.f32.mrf.mxu0
      %v432 = vadd.f32 %v265, %v431
      %v433 = vpop.f32.mrf.mxu0
      %v434 = vadd.f32 %v265, %v433
      %435 = vmatmul.bf16.gmra.mxu0 %v370
      %v436 = vpop.f32.mrf.mxu0
      %v437 = vadd.f32 %v265, %v436
      %v438 = vpop.f32.mrf.mxu0
      %v439 = vadd.f32 %v265, %v438
      %440 = vmatmul.bf16.gmra.mxu0 %v373
      %v441 = vpop.f32.mrf.mxu0
      %v442 = vadd.f32 %v265, %v441
      %v443 = vpop.f32.mrf.mxu0
      %v444 = vadd.f32 %v265, %v443
      %445 = vmatmul.bf16.gmra.mxu0 %v376
      %v446 = vpop.f32.mrf.mxu0
      %v447 = vadd.f32 %v265, %v446
      %v448 = vpop.f32.mrf.mxu0
      %v449 = vadd.f32 %v265, %v448
      %450 = vmatmul.bf16.gmra.mxu0 %v379
      %v451 = vpop.f32.mrf.mxu0
      %v452 = vadd.f32 %v265, %v451
      %v453 = vpop.f32.mrf.mxu0
      %v454 = vadd.f32 %v265, %v453
      %455 = vmatmul.bf16.gmra.mxu0 %v382
      %v456 = vpop.f32.mrf.mxu0
      %v457 = vadd.f32 %v265, %v456
      %v458 = vpop.f32.mrf.mxu0
      %v459 = vadd.f32 %v265, %v458
      %460 = vmatmul.bf16.gmra.mxu0 %v385
      %v461 = vpop.f32.mrf.mxu0
      %v462 = vadd.f32 %v265, %v461
      %v463 = vpop.f32.mrf.mxu0
      %v464 = vadd.f32 %v265, %v463
      %465 = vmatmul.bf16.gmra.mxu0 %v388
      %v466 = vpop.f32.mrf.mxu0
      %v467 = vadd.f32 %v265, %v466
      %v468 = vpop.f32.mrf.mxu0
      %v469 = vadd.f32 %v265, %v468
      %470 = vmatmul.bf16.gmra.mxu0 %v391
      %v471 = vpop.f32.mrf.mxu0
      %v472 = vadd.f32 %v265, %v471
      %v473 = vpop.f32.mrf.mxu0
      %v474 = vadd.f32 %v265, %v473
      %475 = vmatmul.bf16.gmra.mxu0 %v394
      %v476 = vpop.f32.mrf.mxu0
      %v477 = vadd.f32 %v265, %v476
      %v478 = vpop.f32.mrf.mxu0
      %v479 = vadd.f32 %v265, %v478
      %480 = vmatmul.bf16.gmra.mxu0 %v397
      %v481 = vpop.f32.mrf.mxu0
      %v482 = vadd.f32 %v265, %v481
      %v483 = vpop.f32.mrf.mxu0
      %v484 = vadd.f32 %v265, %v483
      %485 = vmatmul.bf16.gmra.mxu0 %v400
      %v486 = vpop.f32.mrf.mxu0
      %v487 = vadd.f32 %v265, %v486
      %v488 = vpop.f32.mrf.mxu0
      %v489 = vadd.f32 %v265, %v488
      %490 = vdwg.mxu0
      %vm491 = vcmp.gt.f32.partialorder %v412, 0.0
      %vm492 = vcmp.gt.f32.partialorder %v414, 0.0
      %vm493 = vcmp.gt.f32.partialorder %v417, 0.0
      %vm494 = vcmp.gt.f32.partialorder %v419, 0.0
      %vm495 = vcmp.gt.f32.partialorder %v422, 0.0
      %vm496 = vcmp.gt.f32.partialorder %v424, 0.0
      %vm497 = vcmp.gt.f32.partialorder %v427, 0.0
      %vm498 = vcmp.gt.f32.partialorder %v429, 0.0
      %vm499 = vcmp.gt.f32.partialorder %v432, 0.0
      %vm500 = vcmp.gt.f32.partialorder %v434, 0.0
      %vm501 = vcmp.gt.f32.partialorder %v437, 0.0
      %vm502 = vcmp.gt.f32.partialorder %v439, 0.0
      %vm503 = vcmp.gt.f32.partialorder %v442, 0.0
      %vm504 = vcmp.gt.f32.partialorder %v444, 0.0
      %vm505 = vcmp.gt.f32.partialorder %v447, 0.0
      %vm506 = vcmp.gt.f32.partialorder %v449, 0.0
      %vm507 = vcmp.gt.f32.partialorder %v452, 0.0
      %vm508 = vcmp.gt.f32.partialorder %v454, 0.0
      %vm509 = vcmp.gt.f32.partialorder %v457, 0.0
      %vm510 = vcmp.gt.f32.partialorder %v459, 0.0
      %vm511 = vcmp.gt.f32.partialorder %v462, 0.0
      %vm512 = vcmp.gt.f32.partialorder %v464, 0.0
      %vm513 = vcmp.gt.f32.partialorder %v467, 0.0
      %vm514 = vcmp.gt.f32.partialorder %v469, 0.0
      %vm515 = vcmp.gt.f32.partialorder %v472, 0.0
      %vm516 = vcmp.gt.f32.partialorder %v474, 0.0
      %vm517 = vcmp.gt.f32.partialorder %v477, 0.0
      %vm518 = vcmp.gt.f32.partialorder %v479, 0.0
      %vm519 = vcmp.gt.f32.partialorder %v482, 0.0
      %vm520 = vcmp.gt.f32.partialorder %v484, 0.0
      %vm521 = vcmp.gt.f32.partialorder %v487, 0.0
      %vm522 = vcmp.gt.f32.partialorder %v489, 0.0
      %v523 = vmul.f32 %v412, 0.1
      %v524 = vmul.f32 %v414, 0.1
      %v525 = vmul.f32 %v417, 0.1
      %v526 = vmul.f32 %v419, 0.1
      %v527 = vmul.f32 %v422, 0.1
      %v528 = vmul.f32 %v424, 0.1
      %v529 = vmul.f32 %v427, 0.1
      %v530 = vmul.f32 %v429, 0.1
      %v531 = vmul.f32 %v432, 0.1
      %v532 = vmul.f32 %v434, 0.1
      %v533 = vmul.f32 %v437, 0.1
      %v534 = vmul.f32 %v439, 0.1
      %v535 = vmul.f32 %v442, 0.1
      %v536 = vmul.f32 %v444, 0.1
      %v537 = vmul.f32 %v447, 0.1
      %v538 = vmul.f32 %v449, 0.1
      %v539 = vmul.f32 %v452, 0.1
      %v540 = vmul.f32 %v454, 0.1
      %v541 = vmul.f32 %v457, 0.1
      %v542 = vmul.f32 %v459, 0.1
      %v543 = vmul.f32 %v462, 0.1
      %v544 = vmul.f32 %v464, 0.1
      %v545 = vmul.f32 %v467, 0.1
      %v546 = vmul.f32 %v469, 0.1
      %v547 = vmul.f32 %v472, 0.1
      %v548 = vmul.f32 %v474, 0.1
      %v549 = vmul.f32 %v477, 0.1
      %v550 = vmul.f32 %v479, 0.1
      %v551 = vmul.f32 %v482, 0.1
      %v552 = vmul.f32 %v484, 0.1
      %v553 = vmul.f32 %v487, 0.1
      %v554 = vmul.f32 %v489, 0.1
      %v555 = vsel %vm491, %v412, %v523
      %v556 = vsel %vm492, %v414, %v524
      %v557 = vsel %vm493, %v417, %v525
      %v558 = vsel %vm494, %v419, %v526
      %v559 = vsel %vm495, %v422, %v527
      %v560 = vsel %vm496, %v424, %v528
      %v561 = vsel %vm497, %v427, %v529
      %v562 = vsel %vm498, %v429, %v530
      %v563 = vsel %vm499, %v432, %v531
      %v564 = vsel %vm500, %v434, %v532
      %v565 = vsel %vm501, %v437, %v533
      %v566 = vsel %vm502, %v439, %v534
      %v567 = vsel %vm503, %v442, %v535
      %v568 = vsel %vm504, %v444, %v536
      %v569 = vsel %vm505, %v447, %v537
      %v570 = vsel %vm506, %v449, %v538
      %v571 = vsel %vm507, %v452, %v539
      %v572 = vsel %vm508, %v454, %v540
      %v573 = vsel %vm509, %v457, %v541
      %v574 = vsel %vm510, %v459, %v542
      %v575 = vsel %vm511, %v462, %v543
      %v576 = vsel %vm512, %v464, %v544
      %v577 = vsel %vm513, %v467, %v545
      %v578 = vsel %vm514, %v469, %v546
      %v579 = vsel %vm515, %v472, %v547
      %v580 = vsel %vm516, %v474, %v548
      %v581 = vsel %vm517, %v477, %v549
      %v582 = vsel %vm518, %v479, %v550
      %v583 = vsel %vm519, %v482, %v551
      %v584 = vsel %vm520, %v484, %v552
      %v585 = vsel %vm521, %v487, %v553
      %v586 = vsel %vm522, %v489, %v554
      %v587 = vpack.c.bf16 %v556, %v555
      %v588 = vpack.c.bf16 %v558, %v557
      %v589 = vpack.c.bf16 %v560, %v559
      %v590 = vpack.c.bf16 %v562, %v561
      %v591 = vpack.c.bf16 %v564, %v563
      %v592 = vpack.c.bf16 %v566, %v565
      %v593 = vpack.c.bf16 %v568, %v567
      %v594 = vpack.c.bf16 %v570, %v569
      %v595 = vpack.c.bf16 %v572, %v571
      %v596 = vpack.c.bf16 %v574, %v573
      %v597 = vpack.c.bf16 %v576, %v575
      %v598 = vpack.c.bf16 %v578, %v577
      %v599 = vpack.c.bf16 %v580, %v579
      %v600 = vpack.c.bf16 %v582, %v581
      %v601 = vpack.c.bf16 %v584, %v583
      %v602 = vpack.c.bf16 %v586, %v585
      %v603 = vld [vmem:[%s3] sm:$0xf]
      %v604 = vld [vmem:[%s3 + $0x4] sm:$0xf]
      %v605 = vld [vmem:[%s3 + $0x8] sm:$0xf]
      %v606 = vld [vmem:[%s3 + $0xc] sm:$0xf]
      %v607 = vld [vmem:[%s3 + $0x10] sm:$0xf]
      %v608 = vld [vmem:[%s3 + $0x14] sm:$0xf]
      %v609 = vld [vmem:[%s3 + $0x18] sm:$0xf]
      %v610 = vld [vmem:[%s3 + $0x1c] sm:$0xf]
      %v611 = vld [vmem:[%s3 + $0x20] sm:$0xf]
      %v612 = vld [vmem:[%s3 + $0x24] sm:$0xf]
      %v613 = vld [vmem:[%s3 + $0x28] sm:$0xf]
      %v614 = vld [vmem:[%s3 + $0x2c] sm:$0xf]
      %v615 = vld [vmem:[%s3 + $0x30] sm:$0xf]
      %v616 = vld [vmem:[%s3 + $0x34] sm:$0xf]
      %v617 = vld [vmem:[%s3 + $0x38] sm:$0xf]
      %v618 = vld [vmem:[%s3 + $0x3c] sm:$0xf]
      %v619 = vld [vmem:[%s4] sm:$0x1]
      %v621 = vperm.slane %v619, 0
      %v639 = vunpack.c.l.b16 %v603
      %v640 = vunpack.c.l.b16 %v604
      %v641 = vunpack.c.l.b16 %v605
      %v642 = vunpack.c.l.b16 %v606
      %v643 = vunpack.c.l.b16 %v607
      %v644 = vunpack.c.l.b16 %v608
      %v645 = vunpack.c.l.b16 %v609
      %v646 = vunpack.c.l.b16 %v610
      %v647 = vunpack.c.l.b16 %v611
      %v648 = vunpack.c.l.b16 %v612
      %v649 = vunpack.c.l.b16 %v613
      %v650 = vunpack.c.l.b16 %v614
      %v651 = vunpack.c.l.b16 %v615
      %v652 = vunpack.c.l.b16 %v616
      %v653 = vunpack.c.l.b16 %v617
      %v654 = vunpack.c.l.b16 %v618
      %v655 = vpack.c.b16 %v640, %v639
      %v656 = vpack.c.b16 %v642, %v641
      %v657 = vpack.c.b16 %v644, %v643
      %v658 = vpack.c.b16 %v646, %v645
      %v659 = vpack.c.b16 %v648, %v647
      %v660 = vpack.c.b16 %v650, %v649
      %v661 = vpack.c.b16 %v652, %v651
      %v662 = vpack.c.b16 %v654, %v653
      %671 = vmatpush.bf16.msra.mxu0 %v662
      %672 = vmatpush.bf16.msra.mxu0 %v661
      %673 = vmatpush.bf16.msra.mxu0 %v660
      %674 = vmatpush.bf16.msra.mxu0 %v659
      %675 = vmatpush.bf16.msra.mxu0 %v658
      %676 = vmatpush.bf16.msra.mxu0 %v657
      %677 = vmatpush.bf16.msra.mxu0 %v656
      %678 = vmatpush.bf16.msra.mxu0 %v655
      %679 = vmatmul.bf16.gmra.mxu0 %v587
      %v680 = vpop.f32.mrf.mxu0
      %v681 = vadd.f32 %v621, %v680
      %v682 = vpop.f32.mrf.mxu0
      %v683 = vadd.f32 %v621, %v682
      %684 = vmatmul.bf16.gmra.mxu0 %v588
      %v685 = vpop.f32.mrf.mxu0
      %v686 = vadd.f32 %v621, %v685
      %v687 = vpop.f32.mrf.mxu0
      %v688 = vadd.f32 %v621, %v687
      %689 = vmatmul.bf16.gmra.mxu0 %v589
      %v690 = vpop.f32.mrf.mxu0
      %v691 = vadd.f32 %v621, %v690
      %v692 = vpop.f32.mrf.mxu0
      %v693 = vadd.f32 %v621, %v692
      %694 = vmatmul.bf16.gmra.mxu0 %v590
      %v695 = vpop.f32.mrf.mxu0
      %v696 = vadd.f32 %v621, %v695
      %v697 = vpop.f32.mrf.mxu0
      %v698 = vadd.f32 %v621, %v697
      %699 = vmatmul.bf16.gmra.mxu0 %v591
      %v700 = vpop.f32.mrf.mxu0
      %v701 = vadd.f32 %v621, %v700
      %v702 = vpop.f32.mrf.mxu0
      %v703 = vadd.f32 %v621, %v702
      %704 = vmatmul.bf16.gmra.mxu0 %v592
      %v705 = vpop.f32.mrf.mxu0
      %v706 = vadd.f32 %v621, %v705
      %v707 = vpop.f32.mrf.mxu0
      %v708 = vadd.f32 %v621, %v707
      %709 = vmatmul.bf16.gmra.mxu0 %v593
      %v710 = vpop.f32.mrf.mxu0
      %v711 = vadd.f32 %v621, %v710
      %v712 = vpop.f32.mrf.mxu0
      %v713 = vadd.f32 %v621, %v712
      %714 = vmatmul.bf16.gmra.mxu0 %v594
      %v715 = vpop.f32.mrf.mxu0
      %v716 = vadd.f32 %v621, %v715
      %v717 = vpop.f32.mrf.mxu0
      %v718 = vadd.f32 %v621, %v717
      %719 = vmatmul.bf16.gmra.mxu0 %v595
      %v720 = vpop.f32.mrf.mxu0
      %v721 = vadd.f32 %v621, %v720
      %v722 = vpop.f32.mrf.mxu0
      %v723 = vadd.f32 %v621, %v722
      %724 = vmatmul.bf16.gmra.mxu0 %v596
      %v725 = vpop.f32.mrf.mxu0
      %v726 = vadd.f32 %v621, %v725
      %v727 = vpop.f32.mrf.mxu0
      %v728 = vadd.f32 %v621, %v727
      %729 = vmatmul.bf16.gmra.mxu0 %v597
      %v730 = vpop.f32.mrf.mxu0
      %v731 = vadd.f32 %v621, %v730
      %v732 = vpop.f32.mrf.mxu0
      %v733 = vadd.f32 %v621, %v732
      %734 = vmatmul.bf16.gmra.mxu0 %v598
      %v735 = vpop.f32.mrf.mxu0
      %v736 = vadd.f32 %v621, %v735
      %v737 = vpop.f32.mrf.mxu0
      %v738 = vadd.f32 %v621, %v737
      %739 = vmatmul.bf16.gmra.mxu0 %v599
      %v740 = vpop.f32.mrf.mxu0
      %v741 = vadd.f32 %v621, %v740
      %v742 = vpop.f32.mrf.mxu0
      %v743 = vadd.f32 %v621, %v742
      %744 = vmatmul.bf16.gmra.mxu0 %v600
      %v745 = vpop.f32.mrf.mxu0
      %v746 = vadd.f32 %v621, %v745
      %v747 = vpop.f32.mrf.mxu0
      %v748 = vadd.f32 %v621, %v747
      %749 = vmatmul.bf16.gmra.mxu0 %v601
      %v750 = vpop.f32.mrf.mxu0
      %v751 = vadd.f32 %v621, %v750
      %v752 = vpop.f32.mrf.mxu0
      %v753 = vadd.f32 %v621, %v752
      %754 = vmatmul.bf16.gmra.mxu0 %v602
      %v755 = vpop.f32.mrf.mxu0
      %v756 = vadd.f32 %v621, %v755
      %v757 = vpop.f32.mrf.mxu0
      %v758 = vadd.f32 %v621, %v757
      %759 = vdwg.mxu0
      %v760 = vmax.f32 %v681, 0.0
      %v761 = vmax.f32 %v683, 0.0
      %v762 = vmax.f32 %v686, 0.0
      %v763 = vmax.f32 %v688, 0.0
      %v764 = vmax.f32 %v691, 0.0
      %v765 = vmax.f32 %v693, 0.0
      %v766 = vmax.f32 %v696, 0.0
      %v767 = vmax.f32 %v698, 0.0
      %v768 = vmax.f32 %v701, 0.0
      %v769 = vmax.f32 %v703, 0.0
      %v770 = vmax.f32 %v706, 0.0
      %v771 = vmax.f32 %v708, 0.0
      %v772 = vmax.f32 %v711, 0.0
      %v773 = vmax.f32 %v713, 0.0
      %v774 = vmax.f32 %v716, 0.0
      %v775 = vmax.f32 %v718, 0.0
      %v776 = vmax.f32 %v721, 0.0
      %v777 = vmax.f32 %v723, 0.0
      %v778 = vmax.f32 %v726, 0.0
      %v779 = vmax.f32 %v728, 0.0
      %v780 = vmax.f32 %v731, 0.0
      %v781 = vmax.f32 %v733, 0.0
      %v782 = vmax.f32 %v736, 0.0
      %v783 = vmax.f32 %v738, 0.0
      %v784 = vmax.f32 %v741, 0.0
      %v785 = vmax.f32 %v743, 0.0
      %v786 = vmax.f32 %v746, 0.0
      %v787 = vmax.f32 %v748, 0.0
      %v788 = vmax.f32 %v751, 0.0
      %v789 = vmax.f32 %v753, 0.0
      %v790 = vmax.f32 %v756, 0.0
      %v791 = vmax.f32 %v758, 0.0
      %792 = vst [vmem:[%s226] sm:$0xff] %v760
      %793 = vst [vmem:[%s226 + $0x8] sm:$0xff] %v761
      %794 = vst [vmem:[%s226 + $0x10] sm:$0xff] %v762
      %795 = vst [vmem:[%s226 + $0x18] sm:$0xff] %v763
      %796 = vst [vmem:[%s226 + $0x20] sm:$0xff] %v764
      %797 = vst [vmem:[%s226 + $0x28] sm:$0xff] %v765
      %798 = vst [vmem:[%s226 + $0x30] sm:$0xff] %v766
      %799 = vst [vmem:[%s226 + $0x38] sm:$0xff] %v767
      %800 = vst [vmem:[%s226 + $0x40] sm:$0xff] %v768
      %801 = vst [vmem:[%s226 + $0x48] sm:$0xff] %v769
      %802 = vst [vmem:[%s226 + $0x50] sm:$0xff] %v770
      %803 = vst [vmem:[%s226 + $0x58] sm:$0xff] %v771
      %804 = vst [vmem:[%s226 + $0x60] sm:$0xff] %v772
      %805 = vst [vmem:[%s226 + $0x68] sm:$0xff] %v773
      %806 = vst [vmem:[%s226 + $0x70] sm:$0xff] %v774
      %807 = vst [vmem:[%s226 + $0x78] sm:$0xff] %v775
      %808 = vst [vmem:[%s226 + $0x80] sm:$0xff] %v776
      %809 = vst [vmem:[%s226 + $0x88] sm:$0xff] %v777
      %810 = vst [vmem:[%s226 + $0x90] sm:$0xff] %v778
      %811 = vst [vmem:[%s226 + $0x98] sm:$0xff] %v779
      %812 = vst [vmem:[%s226 + $0xa0] sm:$0xff] %v780
      %813 = vst [vmem:[%s226 + $0xa8] sm:$0xff] %v781
      %814 = vst [vmem:[%s226 + $0xb0] sm:$0xff] %v782
      %815 = vst [vmem:[%s226 + $0xb8] sm:$0xff] %v783
      %816 = vst [vmem:[%s226 + $0xc0] sm:$0xff] %v784
      %817 = vst [vmem:[%s226 + $0xc8] sm:$0xff] %v785
      %818 = vst [vmem:[%s226 + $0xd0] sm:$0xff] %v786
      %819 = vst [vmem:[%s226 + $0xd8] sm:$0xff] %v787
      %820 = vst [vmem:[%s226 + $0xe0] sm:$0xff] %v788
      %821 = vst [vmem:[%s226 + $0xe8] sm:$0xff] %v789
      %822 = vst [vmem:[%s226 + $0xf0] sm:$0xff] %v790
      %823 = vst [vmem:[%s226 + $0xf8] sm:$0xff] %v791
      %s824 = smul.u32 32, %s16
      %p825 = scmp.lt.s32.totalorder %s824, 63
      %s826 = scalar_select %p825, %s824, 63
      %s827 = smul.addr %s826, 8
      %s828 = scalar_lea.vmem %s5, %s827
      // Predicated region
      $region41: #{unet_hdc_forward.28} parent=39 // pred_check
        %p829 = pneg %p144
      $region42: #{unet_hdc_forward.28} parent=39 // pred_check_branch
        %831 = sbr.rel (%p829) target = $region44
      $region43: #{unet_hdc_forward.28} parent=39 // pred_region
        %s832 = smul.u32 32, %s16
      $region44: #{unet_hdc_forward.28} parent=39 // pred_fallthru
        _
    $region40: #{unet_hdc_forward.28} parent=5 // pred_fallthru
      _
    %p833 = scmp.le.s32.totalorder 2, %s11
    // Predicated region
    $region45: #{unet_hdc_forward.28} parent=5 // pred_check
      %p834 = pneg %p833
    $region46: #{unet_hdc_forward.28} parent=5 // pred_check_branch
      %836 = sbr.rel (%p834) target = $region48
    $region47: #{unet_hdc_forward.28} parent=5 // pred_region
      %s837 = ssub.s32 %s11, 2
      // Predicated region
      $region49: #{unet_hdc_forward.28} parent=47 // pred_check
        %p838 = pneg %p150
      $region50: #{unet_hdc_forward.28} parent=47 // pred_check_branch
        %840 = sbr.rel (%p838) target = $region52
      $region51: #{unet_hdc_forward.28} parent=47 // pred_region
        %s841 = smul.u32 32, %s17
        %p842 = scmp.lt.s32.totalorder %s841, 63
        %s843 = scalar_select %p842, %s841, 63
        %s844 = smul.addr %s843, 8
        %s845 = scalar_lea.vmem %s5, %s844
      $region52: #{unet_hdc_forward.28} parent=47 // pred_fallthru
        _
    $region48: #{unet_hdc_forward.28} parent=5 // pred_fallthru
      _
  $region6: #{unet_hdc_forward.28} parent=0 // loop_footer
    %s15 = sadd.s32 1, %s11
  $region7: #{unet_hdc_forward.28} parent=0 // loop_footer_branch
    %10 = sbr.rel target = $region3
  $region8: #{unet_hdc_forward.28} parent=0 // loop_exit
    _

// kernel: unet_hdc_forward.37
$region0: #{unet_hdc_forward.37}
  #allocation0 [shape = 'u32[]', space=smem, size = 0x4, offset = 0x4, fixed_abs, tag = 'smem constant byte address 0x4 - core index']
  #allocation1 [shape = 'u32[72,128]{1,0:T(1,128)}', space=vmem, size = 0x9000, scoped, tag = 'internal scratch']
  %s0 = inlined_call_operand.vmem [shape: bf16[512,16], index: 0, kind: input, shape index: {}]
  %s1 = inlined_call_operand.vmem [shape: bf16[16,128], index: 1, kind: input, shape index: {}]
  %s2 = inlined_call_operand.vmem [shape: f32[1,128], index: 2, kind: input, shape index: {}]
  %s3 = inlined_call_operand.vmem [shape: f32[512,128], index: 3, kind: output, shape index: {}]
  %s4 = sld [smem:[#allocation0]]
  $region45: #{unet_hdc_forward.37} parent=0
    _
  %s6 = ssub.s32 1, %s4
  %s7 = scalar_select 0, %s6, %s4
  loop: start=0, step=1, limit=4
  $region2: #{unet_hdc_forward.37} parent=0 // loop_pre_header
    _
  $region3: #{unet_hdc_forward.37} parent=0 // loop_header
    %s9 = sphi 0, %s13
    %p10 = scmp.ge.s32.totalorder %s9, 4
    %s19 = sphi 0, %s21
    %s22 = sphi 0, %s19
    %s23 = sphi 0, %s22
    %s39 = sphi 0, %s23
    %s43 = sphi 0, %s43
    %s45 = sphi 0, %s43
    %s46 = sphi 0, %s45
    %s60 = sphi 0, %s46
    %s64 = sphi 0, %s64
    %s66 = sphi 0, %s64
    %s67 = sphi 0, %s66
    %s81 = sphi 0, %s67
    %s87 = sphi 0, %s89
    %s90 = sphi 0, %s87
    %s91 = sphi 0, %s90
    %s107 = sphi 0, %s91
  $region4: #{unet_hdc_forward.37} parent=0 // loop_header_branch
    %12 = sbr.rel (%p10) target = $region8
  $region5: #{unet_hdc_forward.37} parent=0 // loop_body
    %s14 = ssub.s32 %s9, 1
    %s15 = ssub.s32 %s9, 2
    %s16 = sadd.s32 %s9, 1
    %s17 = ssub.s32 %s9, %s16
    %p18 = scmp.eq.s32.totalorder %s17, 0
    %s20 = sadd.s32 %s19, 1
    %s21 = scalar_select %p18, %s19, %s20
    %p24 = pneg %p18
    %p25 = scmp.eq.s32.totalorder %s9, 1
    %p26 = por %p24, %p25
    %p27 = scmp.ne.s32.totalorder %s19, %s22
    %p28 = scmp.eq.s32.totalorder %s9, 0
    %p29 = por %p27, %p28
    %p30 = scmp.ne.s32.totalorder %s19, %s22
    %p31 = scmp.eq.s32.totalorder %s14, 1
    %p32 = por %p30, %p31
    %p33 = scmp.ne.s32.totalorder %s22, %s23
    %p34 = scmp.eq.s32.totalorder %s14, 0
    %p35 = por %p33, %p34
    %p36 = scmp.ne.s32.totalorder %s22, %s23
    %p37 = scmp.eq.s32.totalorder %s15, 1
    %p38 = por %p36, %p37
    %p40 = scmp.ne.s32.totalorder %s23, %s39
    %p41 = scmp.eq.s32.totalorder %s15, 0
    %p42 = por %p40, %p41
    %s44 = sadd.s32 %s43, 1
    %p47 = scmp.eq.s32.totalorder %s9, 1
    %p48 = scmp.ne.s32.totalorder %s43, %s45
    %p49 = scmp.eq.s32.totalorder %s9, 0
    %p50 = por %p48, %p49
    %p51 = scmp.ne.s32.totalorder %s43, %s45
    %p52 = scmp.eq.s32.totalorder %s14, 1
    %p53 = por %p51, %p52
    %p54 = scmp.ne.s32.totalorder %s45, %s46
    %p55 = scmp.eq.s32.totalorder %s14, 0
    %p56 = por %p54, %p55
    %p57 = scmp.ne.s32.totalorder %s45, %s46
    %p58 = scmp.eq.s32.totalorder %s15, 1
    %p59 = por %p57, %p58
    %p61 = scmp.ne.s32.totalorder %s46, %s60
    %p62 = scmp.eq.s32.totalorder %s15, 0
    %p63 = por %p61, %p62
    %s65 = sadd.s32 %s64, 1
    %p68 = scmp.eq.s32.totalorder %s9, 1
    %p69 = scmp.ne.s32.totalorder %s64, %s66
    %p70 = scmp.eq.s32.totalorder %s9, 0
    %p71 = por %p69, %p70
    %p72 = scmp.ne.s32.totalorder %s64, %s66
    %p73 = scmp.eq.s32.totalorder %s14, 1
    %p74 = por %p72, %p73
    %p75 = scmp.ne.s32.totalorder %s66, %s67
    %p76 = scmp.eq.s32.totalorder %s14, 0
    %p77 = por %p75, %p76
    %p78 = scmp.ne.s32.totalorder %s66, %s67
    %p79 = scmp.eq.s32.totalorder %s15, 1
    %p80 = por %p78, %p79
    %p82 = scmp.ne.s32.totalorder %s67, %s81
    %p83 = scmp.eq.s32.totalorder %s15, 0
    %p84 = por %p82, %p83
    %s85 = ssub.s32 %s9, %s16
    %p86 = scmp.eq.s32.totalorder %s85, 0
    %s88 = sadd.s32 %s87, 1
    %s89 = scalar_select %p86, %s87, %s88
    %p92 = pneg %p86
    %p93 = scmp.eq.s32.totalorder %s9, 1
    %p94 = por %p92, %p93
    %p95 = scmp.ne.s32.totalorder %s87, %s90
    %p96 = scmp.eq.s32.totalorder %s9, 0
    %p97 = por %p95, %p96
    %p98 = scmp.ne.s32.totalorder %s87, %s90
    %p99 = scmp.eq.s32.totalorder %s14, 1
    %p100 = por %p98, %p99
    %p101 = scmp.ne.s32.totalorder %s90, %s91
    %p102 = scmp.eq.s32.totalorder %s14, 0
    %p103 = por %p101, %p102
    %p104 = scmp.ne.s32.totalorder %s90, %s91
    %p105 = scmp.eq.s32.totalorder %s15, 1
    %p106 = por %p104, %p105
    %p108 = scmp.ne.s32.totalorder %s91, %s107
    %p109 = scmp.eq.s32.totalorder %s15, 0
    %p110 = por %p108, %p109
    %p111 = scmp.le.s32.totalorder 1, %s9
    %p112 = scmp.lt.s32.totalorder %s9, 3
    %p113 = pnand %p111, %p112
    %p114 = pneg %p113
    // Predicated region
    $region9: #{unet_hdc_forward.37} parent=5 // pred_check
      _
    $region10: #{unet_hdc_forward.37} parent=5 // pred_check_branch
      %116 = sbr.rel (%p113) target = $region12
    $region11: #{unet_hdc_forward.37} parent=5 // pred_region
      %s117 = ssub.s32 %s9, 1
      // Predicated region
      $region13: #{unet_hdc_forward.37} parent=11 // pred_check
        %p118 = pneg %p56
      $region14: #{unet_hdc_forward.37} parent=11 // pred_check_branch
        %120 = sbr.rel (%p118) target = $region16
      $region15: #{unet_hdc_forward.37} parent=11 // pred_region
        _
      $region16: #{unet_hdc_forward.37} parent=11 // pred_fallthru
        _
      // Predicated region
      $region17: #{unet_hdc_forward.37} parent=11 // pred_check
        %p121 = pneg %p77
      $region18: #{unet_hdc_forward.37} parent=11 // pred_check_branch
        %123 = sbr.rel (%p121) target = $region20
      $region19: #{unet_hdc_forward.37} parent=11 // pred_region
        _
      $region20: #{unet_hdc_forward.37} parent=11 // pred_fallthru
        _
    $region12: #{unet_hdc_forward.37} parent=5 // pred_fallthru
      _
    %p124 = scmp.lt.s32.totalorder %s9, 2
    // Predicated region
    $region21: #{unet_hdc_forward.37} parent=5 // pred_check
      %p125 = pneg %p124
    $region22: #{unet_hdc_forward.37} parent=5 // pred_check_branch
      %127 = sbr.rel (%p125) target = $region24
    $region23: #{unet_hdc_forward.37} parent=5 // pred_region
      // Predicated region
      $region25: #{unet_hdc_forward.37} parent=23 // pred_check
        %p128 = pneg %p29
      $region26: #{unet_hdc_forward.37} parent=23 // pred_check_branch
        %130 = sbr.rel (%p128) target = $region28
      $region27: #{unet_hdc_forward.37} parent=23 // pred_region
        %s131 = smul.u32 32, %s9
        %p132 = scmp.lt.s32.totalorder %s131, 63
        %s133 = scalar_select %p132, %s131, 63
        %s134 = smul.addr %s133, 4
        %s135 = scalar_lea.vmem %s0, %s134
        %s136 = smul.u32 32, %s9
      $region28: #{unet_hdc_forward.37} parent=23 // pred_fallthru
        _
    $region24: #{unet_hdc_forward.37} parent=5 // pred_fallthru
      _
    %p137 = scmp.le.s32.totalorder 1, %s9
    %p138 = scmp.lt.s32.totalorder %s9, 3
    %p139 = pnand %p137, %p138
    %p140 = pneg %p139
    // Predicated region
    $region29: #{unet_hdc_forward.37} parent=5 // pred_check
      _
    $region30: #{unet_hdc_forward.37} parent=5 // pred_check_branch
      %142 = sbr.rel (%p139) target = $region32
    $region31: #{unet_hdc_forward.37} parent=5 // pred_region
      %s143 = ssub.s32 %s9, 1
      %s144 = smul.u32 32, %s14
      %p145 = scmp.lt.s32.totalorder %s144, 63
      %s146 = scalar_select %p145, %s144, 63
      %s147 = smul.addr %s146, 4
      %s148 = scalar_lea.vmem %s0, %s147
      %p149 = pneg %p35
      %p150 = pneg %p32
      %p151 = pneg %p56
      %p152 = pneg %p53
      %p153 = pneg %p77
      %p154 = pneg %p74
      %p155 = pneg %p103
      %p156 = pneg %p100
      %s157 = smul.u32 32, %s14
      %p158 = scmp.lt.s32.totalorder %s157, 63
      %s159 = scalar_select %p158, %s157, 63
      %s160 = smul.addr %s159, 8
      %s161 = scalar_lea.vmem %s3, %s160
      %s162 = smul.u32 32, %s14
      %p163 = scmp.lt.s32.totalorder %s162, 63
      %s164 = scalar_select %p163, %s162, 63
      %s165 = smul.addr %s164, 4
      %s166 = scalar_lea.vmem %s0, %s165
      %s167 = smul.u32 32, %s14
      %s168 = smul.u32 32, %s14
      %p169 = scmp.lt.s32.totalorder %s168, 63
      %s170 = scalar_select %p169, %s168, 63
      %s171 = smul.addr %s170, 8
      %s172 = scalar_lea.vmem %s3, %s171
      %s173 = smul.u32 32, %s14
      %v175 = vld [vmem:[%s166] sm:$0xf]
      %v176 = vld [vmem:[%s166 + $0x4] sm:$0xf]
      %v177 = vld [vmem:[%s166 + $0x8] sm:$0xf]
      %v178 = vld [vmem:[%s166 + $0xc] sm:$0xf]
      %v179 = vld [vmem:[%s166 + $0x10] sm:$0xf]
      %v180 = vld [vmem:[%s166 + $0x14] sm:$0xf]
      %v181 = vld [vmem:[%s166 + $0x18] sm:$0xf]
      %v182 = vld [vmem:[%s166 + $0x1c] sm:$0xf]
      %v183 = vld [vmem:[%s166 + $0x20] sm:$0xf]
      %v184 = vld [vmem:[%s166 + $0x24] sm:$0xf]
      %v185 = vld [vmem:[%s166 + $0x28] sm:$0xf]
      %v186 = vld [vmem:[%s166 + $0x2c] sm:$0xf]
      %v187 = vld [vmem:[%s166 + $0x30] sm:$0xf]
      %v188 = vld [vmem:[%s166 + $0x34] sm:$0xf]
      %v189 = vld [vmem:[%s166 + $0x38] sm:$0xf]
      %v190 = vld [vmem:[%s166 + $0x3c] sm:$0xf]
      %v191 = vld [vmem:[%s166 + $0x40] sm:$0xf]
      %v192 = vld [vmem:[%s166 + $0x44] sm:$0xf]
      %v193 = vld [vmem:[%s166 + $0x48] sm:$0xf]
      %v194 = vld [vmem:[%s166 + $0x4c] sm:$0xf]
      %v195 = vld [vmem:[%s166 + $0x50] sm:$0xf]
      %v196 = vld [vmem:[%s166 + $0x54] sm:$0xf]
      %v197 = vld [vmem:[%s166 + $0x58] sm:$0xf]
      %v198 = vld [vmem:[%s166 + $0x5c] sm:$0xf]
      %v199 = vld [vmem:[%s166 + $0x60] sm:$0xf]
      %v200 = vld [vmem:[%s166 + $0x64] sm:$0xf]
      %v201 = vld [vmem:[%s166 + $0x68] sm:$0xf]
      %v202 = vld [vmem:[%s166 + $0x6c] sm:$0xf]
      %v203 = vld [vmem:[%s166 + $0x70] sm:$0xf]
      %v204 = vld [vmem:[%s166 + $0x74] sm:$0xf]
      %v205 = vld [vmem:[%s166 + $0x78] sm:$0xf]
      %v206 = vld [vmem:[%s166 + $0x7c] sm:$0xf]
      %v207 = vld [vmem:[%s1] sm:$0xf]
      %v208 = vld [vmem:[%s1 + $0x4] sm:$0xf]
      %v209 = vld [vmem:[%s2] sm:$0x1]
      %v211 = vperm.slane %v209, 0
      %v245 = vunpack.c.l.b16 %v175
      %v246 = vunpack.c.l.b16 %v176
      %v247 = vunpack.c.l.b16 %v177
      %v248 = vunpack.c.l.b16 %v178
      %v249 = vunpack.c.l.b16 %v179
      %v250 = vunpack.c.l.b16 %v180
      %v251 = vunpack.c.l.b16 %v181
      %v252 = vunpack.c.l.b16 %v182
      %v253 = vunpack.c.l.b16 %v183
      %v254 = vunpack.c.l.b16 %v184
      %v255 = vunpack.c.l.b16 %v185
      %v256 = vunpack.c.l.b16 %v186
      %v257 = vunpack.c.l.b16 %v187
      %v258 = vunpack.c.l.b16 %v188
      %v259 = vunpack.c.l.b16 %v189
      %v260 = vunpack.c.l.b16 %v190
      %v261 = vunpack.c.l.b16 %v191
      %v262 = vunpack.c.l.b16 %v192
      %v263 = vunpack.c.l.b16 %v193
      %v264 = vunpack.c.l.b16 %v194
      %v265 = vunpack.c.l.b16 %v195
      %v266 = vunpack.c.l.b16 %v196
      %v267 = vunpack.c.l.b16 %v197
      %v268 = vunpack.c.l.b16 %v198
      %v269 = vunpack.c.l.b16 %v199
      %v270 = vunpack.c.l.b16 %v200
      %v271 = vunpack.c.l.b16 %v201
      %v272 = vunpack.c.l.b16 %v202
      %v273 = vunpack.c.l.b16 %v203
      %v274 = vunpack.c.l.b16 %v204
      %v275 = vunpack.c.l.b16 %v205
      %v276 = vunpack.c.l.b16 %v206
      %v277 = vpack.c.b16 %v246, %v245
      %v278 = vpack.c.b16 %v248, %v247
      %v279 = vpack.c.b16 %v250, %v249
      %v280 = vpack.c.b16 %v252, %v251
      %v281 = vpack.c.b16 %v254, %v253
      %v282 = vpack.c.b16 %v256, %v255
      %v283 = vpack.c.b16 %v258, %v257
      %v284 = vpack.c.b16 %v260, %v259
      %v285 = vpack.c.b16 %v262, %v261
      %v286 = vpack.c.b16 %v264, %v263
      %v287 = vpack.c.b16 %v266, %v265
      %v288 = vpack.c.b16 %v268, %v267
      %v289 = vpack.c.b16 %v270, %v269
      %v290 = vpack.c.b16 %v272, %v271
      %v291 = vpack.c.b16 %v274, %v273
      %v292 = vpack.c.b16 %v276, %v275
      %v295 = vunpack.c.l.b16 %v207
      %v296 = vunpack.c.l.b16 %v208
      %v297 = vpack.c.b16 %v296, %v295
      %vm299 = vcmask 130048
      %v301 = vsel %vm299, %v277, 0
      %v304 = vsel %vm299, %v278, 0
      %v307 = vsel %vm299, %v279, 0
      %v310 = vsel %vm299, %v280, 0
      %v313 = vsel %vm299, %v281, 0
      %v316 = vsel %vm299, %v282, 0
      %v319 = vsel %vm299, %v283, 0
      %v322 = vsel %vm299, %v284, 0
      %v325 = vsel %vm299, %v285, 0
      %v328 = vsel %vm299, %v286, 0
      %v331 = vsel %vm299, %v287, 0
      %v334 = vsel %vm299, %v288, 0
      %v337 = vsel %vm299, %v289, 0
      %v340 = vsel %vm299, %v290, 0
      %v343 = vsel %vm299, %v291, 0
      %v346 = vsel %vm299, %v292, 0
      %348 = vmatpush.bf16.msra.mxu0 0
      %349 = vmatpush.bf16.msra.mxu0 0
      %350 = vmatpush.bf16.msra.mxu0 0
      %351 = vmatpush.bf16.msra.mxu0 0
      %352 = vmatpush.bf16.msra.mxu0 0
      %353 = vmatpush.bf16.msra.mxu0 0
      %354 = vmatpush.bf16.msra.mxu0 0
      %355 = vmatpush.bf16.msra.mxu0 %v297
      %356 = vmatmul.bf16.gmra.mxu0 %v301
      %v357 = vpop.f32.mrf.mxu0
      %v358 = vadd.f32 %v211, %v357
      %v359 = vpop.f32.mrf.mxu0
      %v360 = vadd.f32 %v211, %v359
      %361 = vmatmul.bf16.gmra.mxu0 %v304
      %v362 = vpop.f32.mrf.mxu0
      %v363 = vadd.f32 %v211, %v362
      %v364 = vpop.f32.mrf.mxu0
      %v365 = vadd.f32 %v211, %v364
      %366 = vmatmul.bf16.gmra.mxu0 %v307
      %v367 = vpop.f32.mrf.mxu0
      %v368 = vadd.f32 %v211, %v367
      %v369 = vpop.f32.mrf.mxu0
      %v370 = vadd.f32 %v211, %v369
      %371 = vmatmul.bf16.gmra.mxu0 %v310
      %v372 = vpop.f32.mrf.mxu0
      %v373 = vadd.f32 %v211, %v372
      %v374 = vpop.f32.mrf.mxu0
      %v375 = vadd.f32 %v211, %v374
      %376 = vmatmul.bf16.gmra.mxu0 %v313
      %v377 = vpop.f32.mrf.mxu0
      %v378 = vadd.f32 %v211, %v377
      %v379 = vpop.f32.mrf.mxu0
      %v380 = vadd.f32 %v211, %v379
      %381 = vmatmul.bf16.gmra.mxu0 %v316
      %v382 = vpop.f32.mrf.mxu0
      %v383 = vadd.f32 %v211, %v382
      %v384 = vpop.f32.mrf.mxu0
      %v385 = vadd.f32 %v211, %v384
      %386 = vmatmul.bf16.gmra.mxu0 %v319
      %v387 = vpop.f32.mrf.mxu0
      %v388 = vadd.f32 %v211, %v387
      %v389 = vpop.f32.mrf.mxu0
      %v390 = vadd.f32 %v211, %v389
      %391 = vmatmul.bf16.gmra.mxu0 %v322
      %v392 = vpop.f32.mrf.mxu0
      %v393 = vadd.f32 %v211, %v392
      %v394 = vpop.f32.mrf.mxu0
      %v395 = vadd.f32 %v211, %v394
      %396 = vmatmul.bf16.gmra.mxu0 %v325
      %v397 = vpop.f32.mrf.mxu0
      %v398 = vadd.f32 %v211, %v397
      %v399 = vpop.f32.mrf.mxu0
      %v400 = vadd.f32 %v211, %v399
      %401 = vmatmul.bf16.gmra.mxu0 %v328
      %v402 = vpop.f32.mrf.mxu0
      %v403 = vadd.f32 %v211, %v402
      %v404 = vpop.f32.mrf.mxu0
      %v405 = vadd.f32 %v211, %v404
      %406 = vmatmul.bf16.gmra.mxu0 %v331
      %v407 = vpop.f32.mrf.mxu0
      %v408 = vadd.f32 %v211, %v407
      %v409 = vpop.f32.mrf.mxu0
      %v410 = vadd.f32 %v211, %v409
      %411 = vmatmul.bf16.gmra.mxu0 %v334
      %v412 = vpop.f32.mrf.mxu0
      %v413 = vadd.f32 %v211, %v412
      %v414 = vpop.f32.mrf.mxu0
      %v415 = vadd.f32 %v211, %v414
      %416 = vmatmul.bf16.gmra.mxu0 %v337
      %v417 = vpop.f32.mrf.mxu0
      %v418 = vadd.f32 %v211, %v417
      %v419 = vpop.f32.mrf.mxu0
      %v420 = vadd.f32 %v211, %v419
      %421 = vmatmul.bf16.gmra.mxu0 %v340
      %v422 = vpop.f32.mrf.mxu0
      %v423 = vadd.f32 %v211, %v422
      %v424 = vpop.f32.mrf.mxu0
      %v425 = vadd.f32 %v211, %v424
      %426 = vmatmul.bf16.gmra.mxu0 %v343
      %v427 = vpop.f32.mrf.mxu0
      %v428 = vadd.f32 %v211, %v427
      %v429 = vpop.f32.mrf.mxu0
      %v430 = vadd.f32 %v211, %v429
      %431 = vmatmul.bf16.gmra.mxu0 %v346
      %v432 = vpop.f32.mrf.mxu0
      %v433 = vadd.f32 %v211, %v432
      %v434 = vpop.f32.mrf.mxu0
      %v435 = vadd.f32 %v211, %v434
      %436 = vdwg.mxu0
      %vm437 = vcmp.gt.f32.partialorder %v358, 0.0
      %vm438 = vcmp.gt.f32.partialorder %v360, 0.0
      %vm439 = vcmp.gt.f32.partialorder %v363, 0.0
      %vm440 = vcmp.gt.f32.partialorder %v365, 0.0
      %vm441 = vcmp.gt.f32.partialorder %v368, 0.0
      %vm442 = vcmp.gt.f32.partialorder %v370, 0.0
      %vm443 = vcmp.gt.f32.partialorder %v373, 0.0
      %vm444 = vcmp.gt.f32.partialorder %v375, 0.0
      %vm445 = vcmp.gt.f32.partialorder %v378, 0.0
      %vm446 = vcmp.gt.f32.partialorder %v380, 0.0
      %vm447 = vcmp.gt.f32.partialorder %v383, 0.0
      %vm448 = vcmp.gt.f32.partialorder %v385, 0.0
      %vm449 = vcmp.gt.f32.partialorder %v388, 0.0
      %vm450 = vcmp.gt.f32.partialorder %v390, 0.0
      %vm451 = vcmp.gt.f32.partialorder %v393, 0.0
      %vm452 = vcmp.gt.f32.partialorder %v395, 0.0
      %vm453 = vcmp.gt.f32.partialorder %v398, 0.0
      %vm454 = vcmp.gt.f32.partialorder %v400, 0.0
      %vm455 = vcmp.gt.f32.partialorder %v403, 0.0
      %vm456 = vcmp.gt.f32.partialorder %v405, 0.0
      %vm457 = vcmp.gt.f32.partialorder %v408, 0.0
      %vm458 = vcmp.gt.f32.partialorder %v410, 0.0
      %vm459 = vcmp.gt.f32.partialorder %v413, 0.0
      %vm460 = vcmp.gt.f32.partialorder %v415, 0.0
      %vm461 = vcmp.gt.f32.partialorder %v418, 0.0
      %vm462 = vcmp.gt.f32.partialorder %v420, 0.0
      %vm463 = vcmp.gt.f32.partialorder %v423, 0.0
      %vm464 = vcmp.gt.f32.partialorder %v425, 0.0
      %vm465 = vcmp.gt.f32.partialorder %v428, 0.0
      %vm466 = vcmp.gt.f32.partialorder %v430, 0.0
      %vm467 = vcmp.gt.f32.partialorder %v433, 0.0
      %vm468 = vcmp.gt.f32.partialorder %v435, 0.0
      %v469 = vmul.f32 %v358, 0.1
      %v470 = vmul.f32 %v360, 0.1
      %v471 = vmul.f32 %v363, 0.1
      %v472 = vmul.f32 %v365, 0.1
      %v473 = vmul.f32 %v368, 0.1
      %v474 = vmul.f32 %v370, 0.1
      %v475 = vmul.f32 %v373, 0.1
      %v476 = vmul.f32 %v375, 0.1
      %v477 = vmul.f32 %v378, 0.1
      %v478 = vmul.f32 %v380, 0.1
      %v479 = vmul.f32 %v383, 0.1
      %v480 = vmul.f32 %v385, 0.1
      %v481 = vmul.f32 %v388, 0.1
      %v482 = vmul.f32 %v390, 0.1
      %v483 = vmul.f32 %v393, 0.1
      %v484 = vmul.f32 %v395, 0.1
      %v485 = vmul.f32 %v398, 0.1
      %v486 = vmul.f32 %v400, 0.1
      %v487 = vmul.f32 %v403, 0.1
      %v488 = vmul.f32 %v405, 0.1
      %v489 = vmul.f32 %v408, 0.1
      %v490 = vmul.f32 %v410, 0.1
      %v491 = vmul.f32 %v413, 0.1
      %v492 = vmul.f32 %v415, 0.1
      %v493 = vmul.f32 %v418, 0.1
      %v494 = vmul.f32 %v420, 0.1
      %v495 = vmul.f32 %v423, 0.1
      %v496 = vmul.f32 %v425, 0.1
      %v497 = vmul.f32 %v428, 0.1
      %v498 = vmul.f32 %v430, 0.1
      %v499 = vmul.f32 %v433, 0.1
      %v500 = vmul.f32 %v435, 0.1
      %v501 = vsel %vm437, %v358, %v469
      %v502 = vsel %vm438, %v360, %v470
      %v503 = vsel %vm439, %v363, %v471
      %v504 = vsel %vm440, %v365, %v472
      %v505 = vsel %vm441, %v368, %v473
      %v506 = vsel %vm442, %v370, %v474
      %v507 = vsel %vm443, %v373, %v475
      %v508 = vsel %vm444, %v375, %v476
      %v509 = vsel %vm445, %v378, %v477
      %v510 = vsel %vm446, %v380, %v478
      %v511 = vsel %vm447, %v383, %v479
      %v512 = vsel %vm448, %v385, %v480
      %v513 = vsel %vm449, %v388, %v481
      %v514 = vsel %vm450, %v390, %v482
      %v515 = vsel %vm451, %v393, %v483
      %v516 = vsel %vm452, %v395, %v484
      %v517 = vsel %vm453, %v398, %v485
      %v518 = vsel %vm454, %v400, %v486
      %v519 = vsel %vm455, %v403, %v487
      %v520 = vsel %vm456, %v405, %v488
      %v521 = vsel %vm457, %v408, %v489
      %v522 = vsel %vm458, %v410, %v490
      %v523 = vsel %vm459, %v413, %v491
      %v524 = vsel %vm460, %v415, %v492
      %v525 = vsel %vm461, %v418, %v493
      %v526 = vsel %vm462, %v420, %v494
      %v527 = vsel %vm463, %v423, %v495
      %v528 = vsel %vm464, %v425, %v496
      %v529 = vsel %vm465, %v428, %v497
      %v530 = vsel %vm466, %v430, %v498
      %v531 = vsel %vm467, %v433, %v499
      %v532 = vsel %vm468, %v435, %v500
      %533 = vst [vmem:[%s172] sm:$0xff] %v501
      %534 = vst [vmem:[%s172 + $0x8] sm:$0xff] %v502
      %535 = vst [vmem:[%s172 + $0x10] sm:$0xff] %v503
      %536 = vst [vmem:[%s172 + $0x18] sm:$0xff] %v504
      %537 = vst [vmem:[%s172 + $0x20] sm:$0xff] %v505
      %538 = vst [vmem:[%s172 + $0x28] sm:$0xff] %v506
      %539 = vst [vmem:[%s172 + $0x30] sm:$0xff] %v507
      %540 = vst [vmem:[%s172 + $0x38] sm:$0xff] %v508
      %541 = vst [vmem:[%s172 + $0x40] sm:$0xff] %v509
      %542 = vst [vmem:[%s172 + $0x48] sm:$0xff] %v510
      %543 = vst [vmem:[%s172 + $0x50] sm:$0xff] %v511
      %544 = vst [vmem:[%s172 + $0x58] sm:$0xff] %v512
      %545 = vst [vmem:[%s172 + $0x60] sm:$0xff] %v513
      %546 = vst [vmem:[%s172 + $0x68] sm:$0xff] %v514
      %547 = vst [vmem:[%s172 + $0x70] sm:$0xff] %v515
      %548 = vst [vmem:[%s172 + $0x78] sm:$0xff] %v516
      %549 = vst [vmem:[%s172 + $0x80] sm:$0xff] %v517
      %550 = vst [vmem:[%s172 + $0x88] sm:$0xff] %v518
      %551 = vst [vmem:[%s172 + $0x90] sm:$0xff] %v519
      %552 = vst [vmem:[%s172 + $0x98] sm:$0xff] %v520
      %553 = vst [vmem:[%s172 + $0xa0] sm:$0xff] %v521
      %554 = vst [vmem:[%s172 + $0xa8] sm:$0xff] %v522
      %555 = vst [vmem:[%s172 + $0xb0] sm:$0xff] %v523
      %556 = vst [vmem:[%s172 + $0xb8] sm:$0xff] %v524
      %557 = vst [vmem:[%s172 + $0xc0] sm:$0xff] %v525
      %558 = vst [vmem:[%s172 + $0xc8] sm:$0xff] %v526
      %559 = vst [vmem:[%s172 + $0xd0] sm:$0xff] %v527
      %560 = vst [vmem:[%s172 + $0xd8] sm:$0xff] %v528
      %561 = vst [vmem:[%s172 + $0xe0] sm:$0xff] %v529
      %562 = vst [vmem:[%s172 + $0xe8] sm:$0xff] %v530
      %563 = vst [vmem:[%s172 + $0xf0] sm:$0xff] %v531
      %564 = vst [vmem:[%s172 + $0xf8] sm:$0xff] %v532
      %s565 = smul.u32 32, %s14
      %p566 = scmp.lt.s32.totalorder %s565, 63
      %s567 = scalar_select %p566, %s565, 63
      %s568 = smul.addr %s567, 8
      %s569 = scalar_lea.vmem %s3, %s568
      // Predicated region
      $region33: #{unet_hdc_forward.37} parent=31 // pred_check
        %p570 = pneg %p100
      $region34: #{unet_hdc_forward.37} parent=31 // pred_check_branch
        %572 = sbr.rel (%p570) target = $region36
      $region35: #{unet_hdc_forward.37} parent=31 // pred_region
        %s573 = smul.u32 32, %s14
      $region36: #{unet_hdc_forward.37} parent=31 // pred_fallthru
        _
    $region32: #{unet_hdc_forward.37} parent=5 // pred_fallthru
      _
    %p574 = scmp.le.s32.totalorder 2, %s9
    // Predicated region
    $region37: #{unet_hdc_forward.37} parent=5 // pred_check
      %p575 = pneg %p574
    $region38: #{unet_hdc_forward.37} parent=5 // pred_check_branch
      %577 = sbr.rel (%p575) target = $region40
    $region39: #{unet_hdc_forward.37} parent=5 // pred_region
      %s578 = ssub.s32 %s9, 2
      // Predicated region
      $region41: #{unet_hdc_forward.37} parent=39 // pred_check
        %p579 = pneg %p106
      $region42: #{unet_hdc_forward.37} parent=39 // pred_check_branch
        %581 = sbr.rel (%p579) target = $region44
      $region43: #{unet_hdc_forward.37} parent=39 // pred_region
        %s582 = smul.u32 32, %s15
        %p583 = scmp.lt.s32.totalorder %s582, 63
        %s584 = scalar_select %p583, %s582, 63
        %s585 = smul.addr %s584, 8
        %s586 = scalar_lea.vmem %s3, %s585
      $region44: #{unet_hdc_forward.37} parent=39 // pred_fallthru
        _
    $region40: #{unet_hdc_forward.37} parent=5 // pred_fallthru
      _
  $region6: #{unet_hdc_forward.37} parent=0 // loop_footer
    %s13 = sadd.s32 1, %s9
  $region7: #{unet_hdc_forward.37} parent=0 // loop_footer_branch
    %8 = sbr.rel target = $region3
  $region8: #{unet_hdc_forward.37} parent=0 // loop_exit
    _

</llo_original>
